<compile_context>
chip_gen: v7x
topology: tpu7x:2x2x1
jax: 0.10.0
libtpu: 0.0.40
codegen_flags: <defaults>
</compile_context>

<pallas_src>
import jax
import jax.numpy as jnp
from jax.experimental import pallas as pl
from jax.experimental.pallas import tpu as pltpu


# ---------------------------------------------------------------------------- helpers

def _itemsize(dtype):
    return 2 if dtype == jnp.bfloat16 else 4


def _pick_tile(n, align, cap):
    """Largest multiple of `align` that divides n and is <= cap; fall back to n (full dim)."""
    best = None
    t = align
    while t <= min(n, cap):
        if n % t == 0:
            best = t
        t += align
    return best if best is not None else n


def _pick_row_tile(n, cap=256):
    """Destination-row tile: multiple of 16 (bf16 sublane safe), prefers >= 2 grid steps."""
    t = _pick_tile(n, 16, cap)
    if t == n and n >= 32:
        t2 = _pick_tile(n, 16, n // 2)
        if t2 != n:
            t = t2
    return t


def _mosaic_params(dimension_semantics, vmem_need_bytes):
    # Scoped-VMEM limit from the actual tile sizes (+ headroom), clamped to a range that is
    # valid on v5e/v6e (128 MiB) and v7x (64 MiB physical).
    limit = int(min(max(2 * vmem_need_bytes + (8 << 20), 32 << 20), 64 << 20))
    return pltpu.CompilerParams(dimension_semantics=dimension_semantics,
                                vmem_limit_bytes=limit)


# ---------------------------------------------------------------------------- projection

def _project(X, W_pack, norm):
    """Z[d] = ((X * norm) @ W_pack[d]) in bf16 -- grid-invariant, computed once per layer."""
    N, F = X.shape
    D, _, C = W_pack.shape
    tm = _pick_row_tile(N)
    grid = (N // tm,)

    def kernel(x_ref, w_ref, norm_ref, z_ref):
        # (X @ W) * norm == (X * norm) @ W ; multiply in f32, run the MXU in bf16.
        xn = (x_ref[...].astype(jnp.float32) * norm_ref[...]).astype(jnp.bfloat16)
        for d in range(D):
            z_ref[d] = jnp.dot(xn, w_ref[d],
                               preferred_element_type=jnp.float32).astype(jnp.bfloat16)

    vmem_need = 2 * (tm * F * _itemsize(X.dtype) + D * F * C * 2 + tm * 4 + D * tm * C * 2)
    return pl.pallas_call(
        kernel,
        out_shape=jax.ShapeDtypeStruct((D, N, C), jnp.bfloat16),
        grid_spec=pltpu.PrefetchScalarGridSpec(
            num_scalar_prefetch=0,
            grid=grid,
            in_specs=[
                pl.BlockSpec((tm, F), lambda i: (i, 0)),          # X rows for this tile
                pl.BlockSpec((D, F, C), lambda i: (0, 0, 0)),      # packed weights (resident)
                pl.BlockSpec((tm, 1), lambda i: (i, 0)),           # norm of source rows
            ],
            out_specs=pl.BlockSpec((D, tm, C), lambda i: (0, i, 0)),
        ),
        compiler_params=_mosaic_params(("parallel",), vmem_need),
        cost_estimate=pl.CostEstimate(
            flops=2 * D * N * F * C,
            transcendentals=0,
            bytes_accessed=(X.size * _itemsize(X.dtype) + (N // tm) * D * F * C * 2
                            + D * N * C * 2 + N * 4)),
    )(X, W_pack, norm)


# ---------------------------------------------------------------------------- aggregation

def _aggregate_cat(A_per_div, Z, norm, *, num_heads, out_per_head, apply_relu, out_dtype):
    """out[v, h*(D*O)+d*O+o] = act(norm[v] * sum_u A[d,v,u] * Z[d,u,h*O+o]).

    K-tiled over source nodes with a per-division f32 accumulator; the epilogue writes each
    (head, division) block directly to its PyTorch `cat` column slice (no concat tree)."""
    D, N, _ = A_per_div.shape
    H, O = num_heads, out_per_head
    C = H * O
    out_w = D * C
    tm = _pick_row_tile(N)
    tk = _pick_tile(N, 128, 512)
    grid = (N // tm, N // tk)

    def kernel(a_ref, z_ref, norm_ref, out_ref, acc_ref):
        k = pl.program_id(1)

        @pl.when(k == 0)
        def _():
            acc_ref[...] = jnp.zeros_like(acc_ref)

        for d in range(D):
            acc_ref[d] = acc_ref[d] + jnp.dot(a_ref[d], z_ref[d],
                                              preferred_element_type=jnp.float32)

        @pl.when(k == pl.num_programs(1) - 1)
        def _():
            norm_dst = norm_ref[...]
            for d in range(D):
                y = acc_ref[d] * norm_dst
                if apply_relu:
                    y = jnp.maximum(y, 0.0)
                y = y.astype(out_ref.dtype)
                for h in range(H):
                    out_ref[:, h * D * O + d * O: h * D * O + (d + 1) * O] = \
                        y[:, h * O:(h + 1) * O]

    vmem_need = (2 * (D * tm * tk * 2 + D * tk * C * 2 + tm * 4
                      + tm * out_w * _itemsize(out_dtype))
                 + D * tm * C * 4)
    return pl.pallas_call(
        kernel,
        out_shape=jax.ShapeDtypeStruct((N, out_w), out_dtype),
        grid_spec=pltpu.PrefetchScalarGridSpec(
            num_scalar_prefetch=0,
            grid=grid,
            in_specs=[
                pl.BlockSpec((D, tm, tk), lambda i, k: (0, i, k)),   # A rows / K tile
                pl.BlockSpec((D, tk, C), lambda i, k: (0, k, 0)),    # Z K tile
                pl.BlockSpec((tm, 1), lambda i, k: (i, 0)),          # norm of dest rows
            ],
            out_specs=pl.BlockSpec((tm, out_w), lambda i, k: (i, 0)),
            scratch_shapes=[pltpu.VMEM((D, tm, C), jnp.float32)],
        ),
        compiler_params=_mosaic_params(("parallel", "arbitrary"), vmem_need),
        cost_estimate=pl.CostEstimate(
            flops=2 * D * N * N * C,
            transcendentals=0,
            bytes_accessed=(A_per_div.size * 2 + (N // tm) * Z.size * 2
                            + N * out_w * _itemsize(out_dtype) + N * 4)),
    )(A_per_div, Z, norm)


def _aggregate_mean(A_row_major, Z_flat, norm, *, num_divisions, apply_relu, out_dtype):
    """out[v] = act((norm[v]/D) * sum_{d,u} A[d,v,u] * Z[d,u,:]) -- one stacked-K matmul."""
    N, K_total = A_row_major.shape
    _, C = Z_flat.shape
    D = num_divisions
    tm = _pick_row_tile(N)
    tk = _pick_tile(K_total, 128, 512)
    grid = (N // tm, K_total // tk)
    inv_d = 1.0 / float(D)

    def kernel(a_ref, z_ref, norm_ref, out_ref, acc_ref):
        k = pl.program_id(1)

        @pl.when(k == 0)
        def _():
            acc_ref[...] = jnp.zeros_like(acc_ref)

        acc_ref[...] += jnp.dot(a_ref[...], z_ref[...],
                                preferred_element_type=jnp.float32)

        @pl.when(k == pl.num_programs(1) - 1)
        def _():
            y = acc_ref[...] * (norm_ref[...] * inv_d)   # 1/D folded into the norm multiply
            if apply_relu:
                y = jnp.maximum(y, 0.0)
            out_ref[...] = y.astype(out_ref.dtype)

    vmem_need = (2 * (tm * tk * 2 + tk * C * 2 + tm * 4 + tm * C * _itemsize(out_dtype))
                 + tm * C * 4)
    return pl.pallas_call(
        kernel,
        out_shape=jax.ShapeDtypeStruct((N, C), out_dtype),
        grid_spec=pltpu.PrefetchScalarGridSpec(
            num_scalar_prefetch=0,
            grid=grid,
            in_specs=[
                pl.BlockSpec((tm, tk), lambda i, k: (i, k)),   # A (N, D*N) tile
                pl.BlockSpec((tk, C), lambda i, k: (k, 0)),    # Z (D*N, C) tile
                pl.BlockSpec((tm, 1), lambda i, k: (i, 0)),    # norm of dest rows
            ],
            out_specs=pl.BlockSpec((tm, C), lambda i, k: (i, 0)),
            scratch_shapes=[pltpu.VMEM((tm, C), jnp.float32)],
        ),
        compiler_params=_mosaic_params(("parallel", "arbitrary"), vmem_need),
        cost_estimate=pl.CostEstimate(
            flops=2 * N * K_total * C,
            transcendentals=0,
            bytes_accessed=(A_row_major.size * 2 + (N // tm) * Z_flat.size * 2
                            + N * C * _itemsize(out_dtype) + N * 4)),
    )(A_row_major, Z_flat, norm)


# ---------------------------------------------------------------------------- layers / net

def geomgcn_layer(A_per_div, A_row_major, X, W_heads, norm, *, ggcn_merge, channel_merge,
                  apply_relu, out_dtype=jnp.float32):
    """One GeomGCN layer: projection kernel (once) + aggregation kernel (row/K tiled)."""
    assert (ggcn_merge, channel_merge) in (("cat", "cat"), ("mean", "mean")), \
        "only the merge combinations used by GeomGCNNet are implemented"
    H, D, F, O = W_heads.shape
    N = X.shape[0]

    # Algebraic fold: with identity activation the channel 'mean' commutes with the linear
    # projection + aggregation, so average the heads' weights once instead of running H heads.
    fold_heads = (channel_merge == "mean") and (not apply_relu)
    W_eff = jnp.mean(W_heads, axis=0, keepdims=True) if fold_heads else W_heads
    H_eff = W_eff.shape[0]
    C = H_eff * O

    # Pack per-division weights with head-major columns: W_pack[d, :, h*O:(h+1)*O] = W_eff[h, d].
    W_pack = jnp.transpose(W_eff, (1, 2, 0, 3)).reshape(D, F, C).astype(jnp.bfloat16)

    # Stage 1: grid-invariant projection (hoisted out of the row-tile loop, bf16 MXU).
    Z = _project(X, W_pack, norm)                               # (D, N, C) bf16

    # Stage 2: aggregation over the graph.
    if ggcn_merge == "cat":
        return _aggregate_cat(A_per_div, Z, norm, num_heads=H_eff, out_per_head=O,
                              apply_relu=apply_relu, out_dtype=out_dtype)

    Z_flat = Z.reshape(D * N, C)                                # contiguous -> free reshape
    out = _aggregate_mean(A_row_major, Z_flat, norm, num_divisions=D,
                          apply_relu=apply_relu, out_dtype=out_dtype)
    if not fold_heads:                                          # mean over heads (unused path here)
        out = jnp.mean(out.reshape(N, H_eff, O), axis=1)
    return out


def geomgcn_net(A, X, norm, W1, W2):
    """GeomGCNNet forward: layer1 (relu, cat/cat) -> layer2 (identity, mean/mean)."""
    D, N, _ = A.shape
    A_per_div = A.astype(jnp.bfloat16)                          # (D, N, N); 0/1 exact in bf16
    # (N, D*N) layout so the 'mean' layer's division sum is one stacked-K matmul.
    # TODO(synk): for a static graph both adjacency layouts would be precomputed once.
    A_row_major = jnp.transpose(A_per_div, (1, 0, 2)).reshape(N, D * N)

    x = geomgcn_layer(A_per_div, A_row_major, X, W1, norm,
                      ggcn_merge="cat", channel_merge="cat",
                      apply_relu=True, out_dtype=jnp.bfloat16)  # layer 2 consumes bf16 anyway
    x = geomgcn_layer(A_per_div, A_row_major, x, W2, norm,
                      ggcn_merge="mean", channel_merge="mean",
                      apply_relu=False, out_dtype=jnp.float32)
    return x


# ---------------------------------------------------------------------------- reference / demo

def reference_geomgcn_net(A, X, norm, W1, W2):
    """Pure-JAX float32 reference with the exact PyTorch GeomGCNNet semantics."""
    def layer(Xl, W, ggcn_merge, channel_merge, act):
        H, D, F, O = W.shape
        xn = Xl.astype(jnp.float32) * norm
        heads = []
        for h in range(H):
            divs = [A[d] @ (xn @ W[h, d]) for d in range(D)]
            hh = (jnp.concatenate(divs, axis=-1) if ggcn_merge == "cat"
                  else jnp.mean(jnp.stack(divs, axis=-1), axis=-1))
            heads.append(act(hh * norm))
        return (jnp.concatenate(heads, axis=1) if channel_merge == "cat"
                else jnp.mean(jnp.stack(heads, axis=0), axis=0))

    x = layer(X, W1, "cat", "cat", jax.nn.relu)
    return layer(x, W2, "mean", "mean", lambda t: t)


def xavier_uniform(key, shape_out_in):
    """Matches nn.init.xavier_uniform_ on a (out, in) Linear weight; returned as (in, out)."""
    out_f, in_f = shape_out_in
    bound = (6.0 / (in_f + out_f)) ** 0.5
    w = jax.random.uniform(key, (out_f, in_f), jnp.float32, -bound, bound)
    return w.T


if __name__ == "__main__":
    N = 64        # nodes
    F_IN = 32     # num_input_features
    HIDDEN = 16   # num_hidden
    CLASSES = 8   # num_output_classes
    D = 3         # num_divisions
    H1 = 2        # num_heads_layer_one
    H2 = 2        # num_heads_layer_two

    key = jax.random.PRNGKey(0)
    k_adj, k_div, k_x, k_w = jax.random.split(key, 4)

    # Synthetic directed graph: adjacency, each edge assigned to one division.
    adj = (jax.random.uniform(k_adj, (N, N)) < 0.10).astype(jnp.float32)
    div_idx = jax.random.randint(k_div, (N, N), 0, D)
    A = jnp.stack([adj * (div_idx == d).astype(jnp.float32) for d in range(D)], axis=0)

    # Symmetric-norm style per-node scalar (stand-in for g.ndata['norm']).
    in_deg = jnp.sum(adj, axis=1, keepdims=True)
    norm = 1.0 / jnp.sqrt(jnp.maximum(in_deg, 1.0))

    X = jax.random.normal(k_x, (N, F_IN), jnp.float32)

    F2 = HIDDEN * D * H1
    w_keys = jax.random.split(k_w, H1 * D + H2 * D)
    W1 = jnp.stack([
        jnp.stack([xavier_uniform(w_keys[h * D + d], (HIDDEN, F_IN)) for d in range(D)], axis=0)
        for h in range(H1)], axis=0)                            # (H1, D, F_IN, HIDDEN)
    W2 = jnp.stack([
        jnp.stack([xavier_uniform(w_keys[H1 * D + h * D + d], (CLASSES, F2)) for d in range(D)], axis=0)
        for h in range(H2)], axis=0)                            # (H2, D, F2, CLASSES)

    out = jax.block_until_ready(jax.jit(geomgcn_net)(A, X, norm, W1, W2))
    ref = jax.block_until_ready(reference_geomgcn_net(A, X, norm, W1, W2))

    assert out.shape == (N, CLASSES), out.shape
    assert out.dtype == jnp.float32
    assert bool(jnp.all(jnp.isfinite(out)))
    max_err = float(jnp.max(jnp.abs(out - ref)))
    tol = 5e-2 * (1.0 + float(jnp.max(jnp.abs(ref))))           # bf16 Z / A / inter-layer path
    assert max_err < tol, (max_err, tol)
    print("KERNEL_OK")
</pallas_src>

<mosaic_0001>
module attributes {stable_mosaic.version = 11 : i64} {
  func.func @kernel(%arg0: i32, %arg1: memref<32x32xf32, #tpu.memory_space<vmem>>, %arg2: memref<3x32x32xbf16, #tpu.memory_space<vmem>>, %arg3: memref<32x1xf32, #tpu.memory_space<vmem>>, %arg4: memref<3x32x32xbf16, #tpu.memory_space<vmem>>) attributes {dimension_semantics = [#tpu.dimension_semantics<parallel>], iteration_bounds = array<i64: 2>, scalar_prefetch = 0 : i64, scratch_operands = 0 : i64, tpu.core_type = #tpu.core_type<tc>, window_params = [{transform_indices = @transform_0, window_bounds = array<i64: 32, 32>}, {pipeline_mode = #tpu.pipeline_mode<synchronous>, transform_indices = @transform_1, window_bounds = array<i64: 3, 32, 32>}, {transform_indices = @transform_2, window_bounds = array<i64: 32, 1>}, {transform_indices = @transform_3, window_bounds = array<i64: 3, 32, 32>}]} {
    %c0 = arith.constant 0 : index
    %c0_0 = arith.constant 0 : index
    %0 = vector.load %arg1[%c0, %c0_0] : memref<32x32xf32, #tpu.memory_space<vmem>>, vector<32x32xf32>
    %c0_1 = arith.constant 0 : index
    %c0_2 = arith.constant 0 : index
    %1 = vector.load %arg3[%c0_1, %c0_2] : memref<32x1xf32, #tpu.memory_space<vmem>>, vector<32x1xf32>
    %2 = vector.broadcast %1 : vector<32x1xf32> to vector<32x32xf32>
    %3 = arith.mulf %0, %2 : vector<32x32xf32>
    %4 = arith.truncf %3 : vector<32x32xf32> to vector<32x32xbf16>
    %c0_3 = arith.constant 0 : index
    %c0_4 = arith.constant 0 : index
    %c0_5 = arith.constant 0 : index
    %5 = vector.load %arg2[%c0_3, %c0_4, %c0_5] : memref<3x32x32xbf16, #tpu.memory_space<vmem>>, vector<1x32x32xbf16>
    %6 = vector.shape_cast %5 : vector<1x32x32xbf16> to vector<32x32xbf16>
    %cst = arith.constant dense<0.000000e+00> : vector<32x32xf32>
    %7 = tpu.matmul %4, %6, %cst {dimension_numbers = #tpu.dot_dimension_numbers<[1], [0], [0], [1], [0, 0, 1, 1], [], []>} : vector<32x32xbf16>, vector<32x32xbf16>, vector<32x32xf32> -> vector<32x32xf32>
    %8 = arith.truncf %7 : vector<32x32xf32> to vector<32x32xbf16>
    %c0_6 = arith.constant 0 : index
    %c0_7 = arith.constant 0 : index
    %c0_8 = arith.constant 0 : index
    %9 = vector.load %arg4[%c0_6, %c0_7, %c0_8] : memref<3x32x32xbf16, #tpu.memory_space<vmem>>, vector<1x32x32xbf16>
    %10 = vector.shape_cast %9 : vector<1x32x32xbf16> to vector<32x32xbf16>
    %11 = vector.shape_cast %8 : vector<32x32xbf16> to vector<1x32x32xbf16>
    tpu.vector_store %arg4[%c0_6, %c0_7, %c0_8], %11 {strides = array<i32>} : memref<3x32x32xbf16, #tpu.memory_space<vmem>>, vector<1x32x32xbf16>,
    %c1 = arith.constant 1 : index
    %c0_9 = arith.constant 0 : index
    %c0_10 = arith.constant 0 : index
    %12 = vector.load %arg2[%c1, %c0_9, %c0_10] : memref<3x32x32xbf16, #tpu.memory_space<vmem>>, vector<1x32x32xbf16>
    %13 = vector.shape_cast %12 : vector<1x32x32xbf16> to vector<32x32xbf16>
    %cst_11 = arith.constant dense<0.000000e+00> : vector<32x32xf32>
    %14 = tpu.matmul %4, %13, %cst_11 {dimension_numbers = #tpu.dot_dimension_numbers<[1], [0], [0], [1], [0, 0, 1, 1], [], []>} : vector<32x32xbf16>, vector<32x32xbf16>, vector<32x32xf32> -> vector<32x32xf32>
    %15 = arith.truncf %14 : vector<32x32xf32> to vector<32x32xbf16>
    %c1_12 = arith.constant 1 : index
    %c0_13 = arith.constant 0 : index
    %c0_14 = arith.constant 0 : index
    %16 = vector.load %arg4[%c1_12, %c0_13, %c0_14] : memref<3x32x32xbf16, #tpu.memory_space<vmem>>, vector<1x32x32xbf16>
    %17 = vector.shape_cast %16 : vector<1x32x32xbf16> to vector<32x32xbf16>
    %18 = vector.shape_cast %15 : vector<32x32xbf16> to vector<1x32x32xbf16>
    tpu.vector_store %arg4[%c1_12, %c0_13, %c0_14], %18 {strides = array<i32>} : memref<3x32x32xbf16, #tpu.memory_space<vmem>>, vector<1x32x32xbf16>,
    %c2 = arith.constant 2 : index
    %c0_15 = arith.constant 0 : index
    %c0_16 = arith.constant 0 : index
    %19 = vector.load %arg2[%c2, %c0_15, %c0_16] : memref<3x32x32xbf16, #tpu.memory_space<vmem>>, vector<1x32x32xbf16>
    %20 = vector.shape_cast %19 : vector<1x32x32xbf16> to vector<32x32xbf16>
    %cst_17 = arith.constant dense<0.000000e+00> : vector<32x32xf32>
    %21 = tpu.matmul %4, %20, %cst_17 {dimension_numbers = #tpu.dot_dimension_numbers<[1], [0], [0], [1], [0, 0, 1, 1], [], []>} : vector<32x32xbf16>, vector<32x32xbf16>, vector<32x32xf32> -> vector<32x32xf32>
    %22 = arith.truncf %21 : vector<32x32xf32> to vector<32x32xbf16>
    %c2_18 = arith.constant 2 : index
    %c0_19 = arith.constant 0 : index
    %c0_20 = arith.constant 0 : index
    %23 = vector.load %arg4[%c2_18, %c0_19, %c0_20] : memref<3x32x32xbf16, #tpu.memory_space<vmem>>, vector<1x32x32xbf16>
    %24 = vector.shape_cast %23 : vector<1x32x32xbf16> to vector<32x32xbf16>
    %25 = vector.shape_cast %22 : vector<32x32xbf16> to vector<1x32x32xbf16>
    tpu.vector_store %arg4[%c2_18, %c0_19, %c0_20], %25 {strides = array<i32>} : memref<3x32x32xbf16, #tpu.memory_space<vmem>>, vector<1x32x32xbf16>,
    return
  }
  func.func @transform_0(%arg0: i32) -> (i32, i32) {
    %c0_i32 = arith.constant 0 : i32
    %c0_i32_0 = arith.constant 0 : i32
    return %arg0, %c0_i32 : i32, i32
  }
  func.func @transform_1(%arg0: i32) -> (i32, i32, i32) {
    %c0_i32 = arith.constant 0 : i32
    %c0_i32_0 = arith.constant 0 : i32
    %c0_i32_1 = arith.constant 0 : i32
    %c0_i32_2 = arith.constant 0 : i32
    return %c0_i32, %c0_i32_0, %c0_i32_1 : i32, i32, i32
  }
  func.func @transform_2(%arg0: i32) -> (i32, i32) {
    %c0_i32 = arith.constant 0 : i32
    %c0_i32_0 = arith.constant 0 : i32
    return %arg0, %c0_i32 : i32, i32
  }
  func.func @transform_3(%arg0: i32) -> (i32, i32, i32) {
    %c0_i32 = arith.constant 0 : i32
    %c0_i32_0 = arith.constant 0 : i32
    %c0_i32_1 = arith.constant 0 : i32
    return %c0_i32, %arg0, %c0_i32_0 : i32, i32, i32
  }
}

module attributes {stable_mosaic.version = 11 : i64} {
  func.func @kernel(%arg0: i32, %arg1: memref<32x96xbf16, #tpu.memory_space<vmem>>, %arg2: memref<3x96x8xbf16, #tpu.memory_space<vmem>>, %arg3: memref<32x1xf32, #tpu.memory_space<vmem>>, %arg4: memref<3x32x8xbf16, #tpu.memory_space<vmem>>) attributes {dimension_semantics = [#tpu.dimension_semantics<parallel>], iteration_bounds = array<i64: 2>, scalar_prefetch = 0 : i64, scratch_operands = 0 : i64, tpu.core_type = #tpu.core_type<tc>, window_params = [{transform_indices = @transform_0, window_bounds = array<i64: 32, 96>}, {pipeline_mode = #tpu.pipeline_mode<synchronous>, transform_indices = @transform_1, window_bounds = array<i64: 3, 96, 8>}, {transform_indices = @transform_2, window_bounds = array<i64: 32, 1>}, {transform_indices = @transform_3, window_bounds = array<i64: 3, 32, 8>}]} {
    %c0 = arith.constant 0 : index
    %c0_0 = arith.constant 0 : index
    %0 = vector.load %arg1[%c0, %c0_0] : memref<32x96xbf16, #tpu.memory_space<vmem>>, vector<32x96xbf16>
    %1 = arith.extf %0 : vector<32x96xbf16> to vector<32x96xf32>
    %c0_1 = arith.constant 0 : index
    %c0_2 = arith.constant 0 : index
    %2 = vector.load %arg3[%c0_1, %c0_2] : memref<32x1xf32, #tpu.memory_space<vmem>>, vector<32x1xf32>
    %3 = vector.broadcast %2 : vector<32x1xf32> to vector<32x96xf32>
    %4 = arith.mulf %1, %3 : vector<32x96xf32>
    %5 = arith.truncf %4 : vector<32x96xf32> to vector<32x96xbf16>
    %c0_3 = arith.constant 0 : index
    %c0_4 = arith.constant 0 : index
    %c0_5 = arith.constant 0 : index
    %6 = vector.load %arg2[%c0_3, %c0_4, %c0_5] : memref<3x96x8xbf16, #tpu.memory_space<vmem>>, vector<1x96x8xbf16>
    %7 = vector.shape_cast %6 : vector<1x96x8xbf16> to vector<96x8xbf16>
    %cst = arith.constant dense<0.000000e+00> : vector<32x8xf32>
    %8 = tpu.matmul %5, %7, %cst {dimension_numbers = #tpu.dot_dimension_numbers<[1], [0], [0], [1], [0, 0, 1, 1], [], []>} : vector<32x96xbf16>, vector<96x8xbf16>, vector<32x8xf32> -> vector<32x8xf32>
    %9 = arith.truncf %8 : vector<32x8xf32> to vector<32x8xbf16>
    %c0_6 = arith.constant 0 : index
    %c0_7 = arith.constant 0 : index
    %c0_8 = arith.constant 0 : index
    %10 = vector.load %arg4[%c0_6, %c0_7, %c0_8] : memref<3x32x8xbf16, #tpu.memory_space<vmem>>, vector<1x32x8xbf16>
    %11 = vector.shape_cast %10 : vector<1x32x8xbf16> to vector<32x8xbf16>
    %12 = vector.shape_cast %9 : vector<32x8xbf16> to vector<1x32x8xbf16>
    tpu.vector_store %arg4[%c0_6, %c0_7, %c0_8], %12 {strides = array<i32>} : memref<3x32x8xbf16, #tpu.memory_space<vmem>>, vector<1x32x8xbf16>,
    %c1 = arith.constant 1 : index
    %c0_9 = arith.constant 0 : index
    %c0_10 = arith.constant 0 : index
    %13 = vector.load %arg2[%c1, %c0_9, %c0_10] : memref<3x96x8xbf16, #tpu.memory_space<vmem>>, vector<1x96x8xbf16>
    %14 = vector.shape_cast %13 : vector<1x96x8xbf16> to vector<96x8xbf16>
    %cst_11 = arith.constant dense<0.000000e+00> : vector<32x8xf32>
    %15 = tpu.matmul %5, %14, %cst_11 {dimension_numbers = #tpu.dot_dimension_numbers<[1], [0], [0], [1], [0, 0, 1, 1], [], []>} : vector<32x96xbf16>, vector<96x8xbf16>, vector<32x8xf32> -> vector<32x8xf32>
    %16 = arith.truncf %15 : vector<32x8xf32> to vector<32x8xbf16>
    %c1_12 = arith.constant 1 : index
    %c0_13 = arith.constant 0 : index
    %c0_14 = arith.constant 0 : index
    %17 = vector.load %arg4[%c1_12, %c0_13, %c0_14] : memref<3x32x8xbf16, #tpu.memory_space<vmem>>, vector<1x32x8xbf16>
    %18 = vector.shape_cast %17 : vector<1x32x8xbf16> to vector<32x8xbf16>
    %19 = vector.shape_cast %16 : vector<32x8xbf16> to vector<1x32x8xbf16>
    tpu.vector_store %arg4[%c1_12, %c0_13, %c0_14], %19 {strides = array<i32>} : memref<3x32x8xbf16, #tpu.memory_space<vmem>>, vector<1x32x8xbf16>,
    %c2 = arith.constant 2 : index
    %c0_15 = arith.constant 0 : index
    %c0_16 = arith.constant 0 : index
    %20 = vector.load %arg2[%c2, %c0_15, %c0_16] : memref<3x96x8xbf16, #tpu.memory_space<vmem>>, vector<1x96x8xbf16>
    %21 = vector.shape_cast %20 : vector<1x96x8xbf16> to vector<96x8xbf16>
    %cst_17 = arith.constant dense<0.000000e+00> : vector<32x8xf32>
    %22 = tpu.matmul %5, %21, %cst_17 {dimension_numbers = #tpu.dot_dimension_numbers<[1], [0], [0], [1], [0, 0, 1, 1], [], []>} : vector<32x96xbf16>, vector<96x8xbf16>, vector<32x8xf32> -> vector<32x8xf32>
    %23 = arith.truncf %22 : vector<32x8xf32> to vector<32x8xbf16>
    %c2_18 = arith.constant 2 : index
    %c0_19 = arith.constant 0 : index
    %c0_20 = arith.constant 0 : index
    %24 = vector.load %arg4[%c2_18, %c0_19, %c0_20] : memref<3x32x8xbf16, #tpu.memory_space<vmem>>, vector<1x32x8xbf16>
    %25 = vector.shape_cast %24 : vector<1x32x8xbf16> to vector<32x8xbf16>
    %26 = vector.shape_cast %23 : vector<32x8xbf16> to vector<1x32x8xbf16>
    tpu.vector_store %arg4[%c2_18, %c0_19, %c0_20], %26 {strides = array<i32>} : memref<3x32x8xbf16, #tpu.memory_space<vmem>>, vector<1x32x8xbf16>,
    return
  }
  func.func @transform_0(%arg0: i32) -> (i32, i32) {
    %c0_i32 = arith.constant 0 : i32
    %c0_i32_0 = arith.constant 0 : i32
    return %arg0, %c0_i32 : i32, i32
  }
  func.func @transform_1(%arg0: i32) -> (i32, i32, i32) {
    %c0_i32 = arith.constant 0 : i32
    %c0_i32_0 = arith.constant 0 : i32
    %c0_i32_1 = arith.constant 0 : i32
    %c0_i32_2 = arith.constant 0 : i32
    return %c0_i32, %c0_i32_0, %c0_i32_1 : i32, i32, i32
  }
  func.func @transform_2(%arg0: i32) -> (i32, i32) {
    %c0_i32 = arith.constant 0 : i32
    %c0_i32_0 = arith.constant 0 : i32
    return %arg0, %c0_i32 : i32, i32
  }
  func.func @transform_3(%arg0: i32) -> (i32, i32, i32) {
    %c0_i32 = arith.constant 0 : i32
    %c0_i32_0 = arith.constant 0 : i32
    %c0_i32_1 = arith.constant 0 : i32
    return %c0_i32, %arg0, %c0_i32_0 : i32, i32, i32
  }
}

module attributes {stable_mosaic.version = 11 : i64} {
  func.func @kernel(%arg0: i32, %arg1: i32, %arg2: memref<3x32x64xbf16, #tpu.memory_space<vmem>>, %arg3: memref<3x64x32xbf16, #tpu.memory_space<vmem>>, %arg4: memref<32x1xf32, #tpu.memory_space<vmem>>, %arg5: memref<32x96xbf16, #tpu.memory_space<vmem>>, %arg6: memref<3x32x32xf32, #tpu.memory_space<vmem>>) attributes {dimension_semantics = [#tpu.dimension_semantics<parallel>, #tpu.dimension_semantics<arbitrary>], iteration_bounds = array<i64: 2, 1>, scalar_prefetch = 0 : i64, scratch_operands = 1 : i64, tpu.core_type = #tpu.core_type<tc>, window_params = [{transform_indices = @transform_0, window_bounds = array<i64: 3, 32, 64>}, {transform_indices = @transform_1, window_bounds = array<i64: 3, 64, 32>}, {transform_indices = @transform_2, window_bounds = array<i64: 32, 1>}, {transform_indices = @transform_3, window_bounds = array<i64: 32, 96>}]} {
    %c0_i32 = arith.constant 0 : i32
    %0 = arith.cmpi eq, %arg1, %c0_i32 : i32
    %1 = arith.extui %0 : i1 to i32
    %c0_i32_0 = arith.constant 0 : i32
    %2 = arith.cmpi ne, %1, %c0_i32_0 : i32
    scf.if %2 {
      %cst_38 = arith.constant 0.000000e+00 : f32
      %39 = vector.broadcast %cst_38 : f32 to vector<3x32x32xf32>
      %c0_39 = arith.constant 0 : index
      %c0_40 = arith.constant 0 : index
      %c0_41 = arith.constant 0 : index
      %40 = vector.load %arg6[%c0_39, %c0_40, %c0_41] : memref<3x32x32xf32, #tpu.memory_space<vmem>>, vector<3x32x32xf32>
      tpu.vector_store %arg6[%c0_39, %c0_40, %c0_41], %39 {strides = array<i32>} : memref<3x32x32xf32, #tpu.memory_space<vmem>>, vector<3x32x32xf32>,
    } else {
    }
    %c0 = arith.constant 0 : index
    %c0_1 = arith.constant 0 : index
    %c0_2 = arith.constant 0 : index
    %3 = vector.load %arg6[%c0, %c0_1, %c0_2] : memref<3x32x32xf32, #tpu.memory_space<vmem>>, vector<1x32x32xf32>
    %4 = vector.shape_cast %3 : vector<1x32x32xf32> to vector<32x32xf32>
    %c0_3 = arith.constant 0 : index
    %c0_4 = arith.constant 0 : index
    %c0_5 = arith.constant 0 : index
    %5 = vector.load %arg2[%c0_3, %c0_4, %c0_5] : memref<3x32x64xbf16, #tpu.memory_space<vmem>>, vector<1x32x64xbf16>
    %6 = vector.shape_cast %5 : vector<1x32x64xbf16> to vector<32x64xbf16>
    %c0_6 = arith.constant 0 : index
    %c0_7 = arith.constant 0 : index
    %c0_8 = arith.constant 0 : index
    %7 = vector.load %arg3[%c0_6, %c0_7, %c0_8] : memref<3x64x32xbf16, #tpu.memory_space<vmem>>, vector<1x64x32xbf16>
    %8 = vector.shape_cast %7 : vector<1x64x32xbf16> to vector<64x32xbf16>
    %cst = arith.constant dense<0.000000e+00> : vector<32x32xf32>
    %9 = tpu.matmul %6, %8, %cst {dimension_numbers = #tpu.dot_dimension_numbers<[1], [0], [0], [1], [0, 0, 1, 1], [], []>} : vector<32x64xbf16>, vector<64x32xbf16>, vector<32x32xf32> -> vector<32x32xf32>
    %10 = arith.addf %4, %9 : vector<32x32xf32>
    %c0_9 = arith.constant 0 : index
    %c0_10 = arith.constant 0 : index
    %c0_11 = arith.constant 0 : index
    %11 = vector.load %arg6[%c0_9, %c0_10, %c0_11] : memref<3x32x32xf32, #tpu.memory_space<vmem>>, vector<1x32x32xf32>
    %12 = vector.shape_cast %11 : vector<1x32x32xf32> to vector<32x32xf32>
    %13 = vector.shape_cast %10 : vector<32x32xf32> to vector<1x32x32xf32>
    tpu.vector_store %arg6[%c0_9, %c0_10, %c0_11], %13 {strides = array<i32>} : memref<3x32x32xf32, #tpu.memory_space<vmem>>, vector<1x32x32xf32>,
    %c1 = arith.constant 1 : index
    %c0_12 = arith.constant 0 : index
    %c0_13 = arith.constant 0 : index
    %14 = vector.load %arg6[%c1, %c0_12, %c0_13] : memref<3x32x32xf32, #tpu.memory_space<vmem>>, vector<1x32x32xf32>
    %15 = vector.shape_cast %14 : vector<1x32x32xf32> to vector<32x32xf32>
    %c1_14 = arith.constant 1 : index
    %c0_15 = arith.constant 0 : index
    %c0_16 = arith.constant 0 : index
    %16 = vector.load %arg2[%c1_14, %c0_15, %c0_16] : memref<3x32x64xbf16, #tpu.memory_space<vmem>>, vector<1x32x64xbf16>
    %17 = vector.shape_cast %16 : vector<1x32x64xbf16> to vector<32x64xbf16>
    %c1_17 = arith.constant 1 : index
    %c0_18 = arith.constant 0 : index
    %c0_19 = arith.constant 0 : index
    %18 = vector.load %arg3[%c1_17, %c0_18, %c0_19] : memref<3x64x32xbf16, #tpu.memory_space<vmem>>, vector<1x64x32xbf16>
    %19 = vector.shape_cast %18 : vector<1x64x32xbf16> to vector<64x32xbf16>
    %cst_20 = arith.constant dense<0.000000e+00> : vector<32x32xf32>
    %20 = tpu.matmul %17, %19, %cst_20 {dimension_numbers = #tpu.dot_dimension_numbers<[1], [0], [0], [1], [0, 0, 1, 1], [], []>} : vector<32x64xbf16>, vector<64x32xbf16>, vector<32x32xf32> -> vector<32x32xf32>
    %21 = arith.addf %15, %20 : vector<32x32xf32>
    %c1_21 = arith.constant 1 : index
    %c0_22 = arith.constant 0 : index
    %c0_23 = arith.constant 0 : index
    %22 = vector.load %arg6[%c1_21, %c0_22, %c0_23] : memref<3x32x32xf32, #tpu.memory_space<vmem>>, vector<1x32x32xf32>
    %23 = vector.shape_cast %22 : vector<1x32x32xf32> to vector<32x32xf32>
    %24 = vector.shape_cast %21 : vector<32x32xf32> to vector<1x32x32xf32>
    tpu.vector_store %arg6[%c1_21, %c0_22, %c0_23], %24 {strides = array<i32>} : memref<3x32x32xf32, #tpu.memory_space<vmem>>, vector<1x32x32xf32>,
    %c2 = arith.constant 2 : index
    %c0_24 = arith.constant 0 : index
    %c0_25 = arith.constant 0 : index
    %25 = vector.load %arg6[%c2, %c0_24, %c0_25] : memref<3x32x32xf32, #tpu.memory_space<vmem>>, vector<1x32x32xf32>
    %26 = vector.shape_cast %25 : vector<1x32x32xf32> to vector<32x32xf32>
    %c2_26 = arith.constant 2 : index
    %c0_27 = arith.constant 0 : index
    %c0_28 = arith.constant 0 : index
    %27 = vector.load %arg2[%c2_26, %c0_27, %c0_28] : memref<3x32x64xbf16, #tpu.memory_space<vmem>>, vector<1x32x64xbf16>
    %28 = vector.shape_cast %27 : vector<1x32x64xbf16> to vector<32x64xbf16>
    %c2_29 = arith.constant 2 : index
    %c0_30 = arith.constant 0 : index
    %c0_31 = arith.constant 0 : index
    %29 = vector.load %arg3[%c2_29, %c0_30, %c0_31] : memref<3x64x32xbf16, #tpu.memory_space<vmem>>, vector<1x64x32xbf16>
    %30 = vector.shape_cast %29 : vector<1x64x32xbf16> to vector<64x32xbf16>
    %cst_32 = arith.constant dense<0.000000e+00> : vector<32x32xf32>
    %31 = tpu.matmul %28, %30, %cst_32 {dimension_numbers = #tpu.dot_dimension_numbers<[1], [0], [0], [1], [0, 0, 1, 1], [], []>} : vector<32x64xbf16>, vector<64x32xbf16>, vector<32x32xf32> -> vector<32x32xf32>
    %32 = arith.addf %26, %31 : vector<32x32xf32>
    %c2_33 = arith.constant 2 : index
    %c0_34 = arith.constant 0 : index
    %c0_35 = arith.constant 0 : index
    %33 = vector.load %arg6[%c2_33, %c0_34, %c0_35] : memref<3x32x32xf32, #tpu.memory_space<vmem>>, vector<1x32x32xf32>
    %34 = vector.shape_cast %33 : vector<1x32x32xf32> to vector<32x32xf32>
    %35 = vector.shape_cast %32 : vector<32x32xf32> to vector<1x32x32xf32>
    tpu.vector_store %arg6[%c2_33, %c0_34, %c0_35], %35 {strides = array<i32>} : memref<3x32x32xf32, #tpu.memory_space<vmem>>, vector<1x32x32xf32>,
    %c0_i32_36 = arith.constant 0 : i32
    %36 = arith.cmpi eq, %arg1, %c0_i32_36 : i32
    %37 = arith.extui %36 : i1 to i32
    %c0_i32_37 = arith.constant 0 : i32
    %38 = arith.cmpi ne, %37, %c0_i32_37 : i32
    scf.if %38 {
      %c0_38 = arith.constant 0 : index
      %c0_39 = arith.constant 0 : index
      %39 = vector.load %arg4[%c0_38, %c0_39] : memref<32x1xf32, #tpu.memory_space<vmem>>, vector<32x1xf32>
      %c0_40 = arith.constant 0 : index
      %c0_41 = arith.constant 0 : index
      %c0_42 = arith.constant 0 : index
      %40 = vector.load %arg6[%c0_40, %c0_41, %c0_42] : memref<3x32x32xf32, #tpu.memory_space<vmem>>, vector<1x32x32xf32>
      %41 = vector.shape_cast %40 : vector<1x32x32xf32> to vector<32x32xf32>
      %42 = vector.broadcast %39 : vector<32x1xf32> to vector<32x32xf32>
      %43 = arith.mulf %41, %42 : vector<32x32xf32>
      %cst_43 = arith.constant 0.000000e+00 : f32
      %44 = vector.broadcast %cst_43 : f32 to vector<32x32xf32>
      %45 = arith.maximumf %43, %44 : vector<32x32xf32>
      %46 = arith.truncf %45 : vector<32x32xf32> to vector<32x32xbf16>
      %47 = vector.extract_strided_slice %46 {offsets = [0, 0], sizes = [32, 16], strides = [1, 1]} : vector<32x32xbf16> to vector<32x16xbf16>
      %c0_44 = arith.constant 0 : index
      %c0_45 = arith.constant 0 : index
      %48 = vector.load %arg5[%c0_44, %c0_45] : memref<32x96xbf16, #tpu.memory_space<vmem>>, vector<32x16xbf16>
      tpu.vector_store %arg5[%c0_44, %c0_45], %47 {strides = array<i32>} : memref<32x96xbf16, #tpu.memory_space<vmem>>, vector<32x16xbf16>,
      %49 = vector.extract_strided_slice %46 {offsets = [0, 16], sizes = [32, 16], strides = [1, 1]} : vector<32x32xbf16> to vector<32x16xbf16>
      %c0_46 = arith.constant 0 : index
      %c48 = arith.constant 48 : index
      %50 = vector.load %arg5[%c0_46, %c48] : memref<32x96xbf16, #tpu.memory_space<vmem>>, vector<32x16xbf16>
      tpu.vector_store %arg5[%c0_46, %c48], %49 {strides = array<i32>} : memref<32x96xbf16, #tpu.memory_space<vmem>>, vector<32x16xbf16>,
      %c1_47 = arith.constant 1 : index
      %c0_48 = arith.constant 0 : index
      %c0_49 = arith.constant 0 : index
      %51 = vector.load %arg6[%c1_47, %c0_48, %c0_49] : memref<3x32x32xf32, #tpu.memory_space<vmem>>, vector<1x32x32xf32>
      %52 = vector.shape_cast %51 : vector<1x32x32xf32> to vector<32x32xf32>
      %53 = vector.broadcast %39 : vector<32x1xf32> to vector<32x32xf32>
      %54 = arith.mulf %52, %53 : vector<32x32xf32>
      %cst_50 = arith.constant 0.000000e+00 : f32
      %55 = vector.broadcast %cst_50 : f32 to vector<32x32xf32>
      %56 = arith.maximumf %54, %55 : vector<32x32xf32>
      %57 = arith.truncf %56 : vector<32x32xf32> to vector<32x32xbf16>
      %58 = vector.extract_strided_slice %57 {offsets = [0, 0], sizes = [32, 16], strides = [1, 1]} : vector<32x32xbf16> to vector<32x16xbf16>
      %c0_51 = arith.constant 0 : index
      %c16 = arith.constant 16 : index
      %59 = vector.load %arg5[%c0_51, %c16] : memref<32x96xbf16, #tpu.memory_space<vmem>>, vector<32x16xbf16>
      tpu.vector_store %arg5[%c0_51, %c16], %58 {strides = array<i32>} : memref<32x96xbf16, #tpu.memory_space<vmem>>, vector<32x16xbf16>,
      %60 = vector.extract_strided_slice %57 {offsets = [0, 16], sizes = [32, 16], strides = [1, 1]} : vector<32x32xbf16> to vector<32x16xbf16>
      %c0_52 = arith.constant 0 : index
      %c64 = arith.constant 64 : index
      %61 = vector.load %arg5[%c0_52, %c64] : memref<32x96xbf16, #tpu.memory_space<vmem>>, vector<32x16xbf16>
      tpu.vector_store %arg5[%c0_52, %c64], %60 {strides = array<i32>} : memref<32x96xbf16, #tpu.memory_space<vmem>>, vector<32x16xbf16>,
      %c2_53 = arith.constant 2 : index
      %c0_54 = arith.constant 0 : index
      %c0_55 = arith.constant 0 : index
      %62 = vector.load %arg6[%c2_53, %c0_54, %c0_55] : memref<3x32x32xf32, #tpu.memory_space<vmem>>, vector<1x32x32xf32>
      %63 = vector.shape_cast %62 : vector<1x32x32xf32> to vector<32x32xf32>
      %64 = vector.broadcast %39 : vector<32x1xf32> to vector<32x32xf32>
      %65 = arith.mulf %63, %64 : vector<32x32xf32>
      %cst_56 = arith.constant 0.000000e+00 : f32
      %66 = vector.broadcast %cst_56 : f32 to vector<32x32xf32>
      %67 = arith.maximumf %65, %66 : vector<32x32xf32>
      %68 = arith.truncf %67 : vector<32x32xf32> to vector<32x32xbf16>
      %69 = vector.extract_strided_slice %68 {offsets = [0, 0], sizes = [32, 16], strides = [1, 1]} : vector<32x32xbf16> to vector<32x16xbf16>
      %c0_57 = arith.constant 0 : index
      %c32 = arith.constant 32 : index
      %70 = vector.load %arg5[%c0_57, %c32] : memref<32x96xbf16, #tpu.memory_space<vmem>>, vector<32x16xbf16>
      tpu.vector_store %arg5[%c0_57, %c32], %69 {strides = array<i32>} : memref<32x96xbf16, #tpu.memory_space<vmem>>, vector<32x16xbf16>,
      %71 = vector.extract_strided_slice %68 {offsets = [0, 16], sizes = [32, 16], strides = [1, 1]} : vector<32x32xbf16> to vector<32x16xbf16>
      %c0_58 = arith.constant 0 : index
      %c80 = arith.constant 80 : index
      %72 = vector.load %arg5[%c0_58, %c80] : memref<32x96xbf16, #tpu.memory_space<vmem>>, vector<32x16xbf16>
      tpu.vector_store %arg5[%c0_58, %c80], %71 {strides = array<i32>} : memref<32x96xbf16, #tpu.memory_space<vmem>>, vector<32x16xbf16>,
    } else {
    }
    return
  }
  func.func @transform_0(%arg0: i32, %arg1: i32) -> (i32, i32, i32) {
    %c0_i32 = arith.constant 0 : i32
    %c0_i32_0 = arith.constant 0 : i32
    return %c0_i32, %arg0, %arg1 : i32, i32, i32
  }
  func.func @transform_1(%arg0: i32, %arg1: i32) -> (i32, i32, i32) {
    %c0_i32 = arith.constant 0 : i32
    %c0_i32_0 = arith.constant 0 : i32
    %c0_i32_1 = arith.constant 0 : i32
    return %c0_i32, %arg1, %c0_i32_0 : i32, i32, i32
  }
  func.func @transform_2(%arg0: i32, %arg1: i32) -> (i32, i32) {
    %c0_i32 = arith.constant 0 : i32
    %c0_i32_0 = arith.constant 0 : i32
    return %arg0, %c0_i32 : i32, i32
  }
  func.func @transform_3(%arg0: i32, %arg1: i32) -> (i32, i32) {
    %c0_i32 = arith.constant 0 : i32
    %c0_i32_0 = arith.constant 0 : i32
    return %arg0, %c0_i32 : i32, i32
  }
}

module attributes {stable_mosaic.version = 11 : i64} {
  func.func @kernel(%arg0: i32, %arg1: i32, %arg2: memref<32x192xbf16, #tpu.memory_space<vmem>>, %arg3: memref<192x8xbf16, #tpu.memory_space<vmem>>, %arg4: memref<32x1xf32, #tpu.memory_space<vmem>>, %arg5: memref<32x8xf32, #tpu.memory_space<vmem>>, %arg6: memref<32x8xf32, #tpu.memory_space<vmem>>) attributes {dimension_semantics = [#tpu.dimension_semantics<parallel>, #tpu.dimension_semantics<arbitrary>], iteration_bounds = array<i64: 2, 1>, scalar_prefetch = 0 : i64, scratch_operands = 1 : i64, tpu.core_type = #tpu.core_type<tc>, window_params = [{transform_indices = @transform_0, window_bounds = array<i64: 32, 192>}, {transform_indices = @transform_1, window_bounds = array<i64: 192, 8>}, {transform_indices = @transform_2, window_bounds = array<i64: 32, 1>}, {transform_indices = @transform_3, window_bounds = array<i64: 32, 8>}]} {
    %c0_i32 = arith.constant 0 : i32
    %0 = arith.cmpi eq, %arg1, %c0_i32 : i32
    %1 = arith.extui %0 : i1 to i32
    %c0_i32_0 = arith.constant 0 : i32
    %2 = arith.cmpi ne, %1, %c0_i32_0 : i32
    scf.if %2 {
      %cst_10 = arith.constant 0.000000e+00 : f32
      %12 = vector.broadcast %cst_10 : f32 to vector<32x8xf32>
      %c0_11 = arith.constant 0 : index
      %c0_12 = arith.constant 0 : index
      %13 = vector.load %arg6[%c0_11, %c0_12] : memref<32x8xf32, #tpu.memory_space<vmem>>, vector<32x8xf32>
      tpu.vector_store %arg6[%c0_11, %c0_12], %12 {strides = array<i32>} : memref<32x8xf32, #tpu.memory_space<vmem>>, vector<32x8xf32>,
    } else {
    }
    %c0 = arith.constant 0 : index
    %c0_1 = arith.constant 0 : index
    %3 = vector.load %arg6[%c0, %c0_1] : memref<32x8xf32, #tpu.memory_space<vmem>>, vector<32x8xf32>
    %c0_2 = arith.constant 0 : index
    %c0_3 = arith.constant 0 : index
    %4 = vector.load %arg2[%c0_2, %c0_3] : memref<32x192xbf16, #tpu.memory_space<vmem>>, vector<32x192xbf16>
    %c0_4 = arith.constant 0 : index
    %c0_5 = arith.constant 0 : index
    %5 = vector.load %arg3[%c0_4, %c0_5] : memref<192x8xbf16, #tpu.memory_space<vmem>>, vector<192x8xbf16>
    %cst = arith.constant dense<0.000000e+00> : vector<32x8xf32>
    %6 = tpu.matmul %4, %5, %cst {dimension_numbers = #tpu.dot_dimension_numbers<[1], [0], [0], [1], [0, 0, 1, 1], [], []>} : vector<32x192xbf16>, vector<192x8xbf16>, vector<32x8xf32> -> vector<32x8xf32>
    %7 = arith.addf %3, %6 : vector<32x8xf32>
    %c0_6 = arith.constant 0 : index
    %c0_7 = arith.constant 0 : index
    %8 = vector.load %arg6[%c0_6, %c0_7] : memref<32x8xf32, #tpu.memory_space<vmem>>, vector<32x8xf32>
    tpu.vector_store %arg6[%c0_6, %c0_7], %7 {strides = array<i32>} : memref<32x8xf32, #tpu.memory_space<vmem>>, vector<32x8xf32>,
    %c0_i32_8 = arith.constant 0 : i32
    %9 = arith.cmpi eq, %arg1, %c0_i32_8 : i32
    %10 = arith.extui %9 : i1 to i32
    %c0_i32_9 = arith.constant 0 : i32
    %11 = arith.cmpi ne, %10, %c0_i32_9 : i32
    scf.if %11 {
      %c0_10 = arith.constant 0 : index
      %c0_11 = arith.constant 0 : index
      %12 = vector.load %arg6[%c0_10, %c0_11] : memref<32x8xf32, #tpu.memory_space<vmem>>, vector<32x8xf32>
      %c0_12 = arith.constant 0 : index
      %c0_13 = arith.constant 0 : index
      %13 = vector.load %arg4[%c0_12, %c0_13] : memref<32x1xf32, #tpu.memory_space<vmem>>, vector<32x1xf32>
      %cst_14 = arith.constant 0.333333343 : f32
      %14 = vector.broadcast %cst_14 : f32 to vector<32x1xf32>
      %15 = arith.mulf %13, %14 : vector<32x1xf32>
      %16 = vector.broadcast %15 : vector<32x1xf32> to vector<32x8xf32>
      %17 = arith.mulf %12, %16 : vector<32x8xf32>
      %c0_15 = arith.constant 0 : index
      %c0_16 = arith.constant 0 : index
      %18 = vector.load %arg5[%c0_15, %c0_16] : memref<32x8xf32, #tpu.memory_space<vmem>>, vector<32x8xf32>
      tpu.vector_store %arg5[%c0_15, %c0_16], %17 {strides = array<i32>} : memref<32x8xf32, #tpu.memory_space<vmem>>, vector<32x8xf32>,
    } else {
    }
    return
  }
  func.func @transform_0(%arg0: i32, %arg1: i32) -> (i32, i32) {
    %c0_i32 = arith.constant 0 : i32
    return %arg0, %arg1 : i32, i32
  }
  func.func @transform_1(%arg0: i32, %arg1: i32) -> (i32, i32) {
    %c0_i32 = arith.constant 0 : i32
    %c0_i32_0 = arith.constant 0 : i32
    return %arg1, %c0_i32 : i32, i32
  }
  func.func @transform_2(%arg0: i32, %arg1: i32) -> (i32, i32) {
    %c0_i32 = arith.constant 0 : i32
    %c0_i32_0 = arith.constant 0 : i32
    return %arg0, %c0_i32 : i32, i32
  }
  func.func @transform_3(%arg0: i32, %arg1: i32) -> (i32, i32) {
    %c0_i32 = arith.constant 0 : i32
    %c0_i32_0 = arith.constant 0 : i32
    return %arg0, %c0_i32 : i32, i32
  }
}

</mosaic_0001>

<llo_original>
// kernel: geomgcn_net.4
$region0: #{geomgcn_net.4}
  #allocation0 [shape = 'u32[]', space=smem, size = 0x4, offset = 0x4, fixed_abs, tag = 'smem constant byte address 0x4 - core index']
  #allocation1 [shape = 'u32[144,128]{1,0:T(1,128)}', space=vmem, size = 0x12000, scoped, tag = 'internal scratch']
  %s0 = inlined_call_operand.vmem [shape: f32[64,32], index: 0, kind: input, shape index: {}]
  %s1 = inlined_call_operand.vmem [shape: bf16[3,32,32], index: 1, kind: input, shape index: {}]
  %s2 = inlined_call_operand.vmem [shape: f32[64,1], index: 2, kind: input, shape index: {}]
  %s3 = inlined_call_operand.vmem [shape: bf16[3,64,32], index: 3, kind: output, shape index: {}]
  %s4 = sld [smem:[#allocation0]]
  $region82: #{geomgcn_net.4} parent=0
    _
  %s6 = ssub.s32 1, %s4
  %s7 = scalar_select 0, %s6, %s4
  $region1: #{geomgcn_net.4} parent=0
    #allocation2 [shape = 'u8[49152]{0}', space=vmem, size = 0xc000, scoped, tag = 'output window, operand 0']
    loop: start=0, step=1, limit=4
    $region2: #{geomgcn_net.4} parent=1 // loop_pre_header
      _
    $region3: #{geomgcn_net.4} parent=1 // loop_header
      %s9 = sphi 0, %s13
      %p10 = scmp.ge.s32.totalorder %s9, 4
      %s19 = sphi 0, %s21
      %s22 = sphi 0, %s19
      %s23 = sphi 0, %s22
      %s39 = sphi 0, %s23
      %s43 = sphi 0, %s43
      %s45 = sphi 0, %s43
      %s46 = sphi 0, %s45
      %s60 = sphi 0, %s46
      %s66 = sphi 0, %s68
      %s69 = sphi 0, %s66
      %s70 = sphi 0, %s69
      %s86 = sphi 0, %s70
      %s92 = sphi 0, %s94
      %s95 = sphi 0, %s92
      %s96 = sphi 0, %s95
      %s112 = sphi 0, %s96
    $region4: #{geomgcn_net.4} parent=1 // loop_header_branch
      %12 = sbr.rel (%p10) target = $region8
    $region5: #{geomgcn_net.4} parent=1 // loop_body
      %s14 = ssub.s32 %s9, 1
      %s15 = ssub.s32 %s9, 2
      %s16 = sadd.s32 %s9, 1
      %s17 = ssub.s32 %s9, %s16
      %p18 = scmp.eq.s32.totalorder %s17, 0
      %s20 = sadd.s32 %s19, 1
      %s21 = scalar_select %p18, %s19, %s20
      %p24 = pneg %p18
      %p25 = scmp.eq.s32.totalorder %s9, 1
      %p26 = por %p24, %p25
      %p27 = scmp.ne.s32.totalorder %s19, %s22
      %p28 = scmp.eq.s32.totalorder %s9, 0
      %p29 = por %p27, %p28
      %p30 = scmp.ne.s32.totalorder %s19, %s22
      %p31 = scmp.eq.s32.totalorder %s14, 1
      %p32 = por %p30, %p31
      %p33 = scmp.ne.s32.totalorder %s22, %s23
      %p34 = scmp.eq.s32.totalorder %s14, 0
      %p35 = por %p33, %p34
      %p36 = scmp.ne.s32.totalorder %s22, %s23
      %p37 = scmp.eq.s32.totalorder %s15, 1
      %p38 = por %p36, %p37
      %p40 = scmp.ne.s32.totalorder %s23, %s39
      %p41 = scmp.eq.s32.totalorder %s15, 0
      %p42 = por %p40, %p41
      %s44 = sadd.s32 %s43, 1
      %p47 = scmp.eq.s32.totalorder %s9, 1
      %p48 = scmp.ne.s32.totalorder %s43, %s45
      %p49 = scmp.eq.s32.totalorder %s9, 0
      %p50 = por %p48, %p49
      %p51 = scmp.ne.s32.totalorder %s43, %s45
      %p52 = scmp.eq.s32.totalorder %s14, 1
      %p53 = por %p51, %p52
      %p54 = scmp.ne.s32.totalorder %s45, %s46
      %p55 = scmp.eq.s32.totalorder %s14, 0
      %p56 = por %p54, %p55
      %p57 = scmp.ne.s32.totalorder %s45, %s46
      %p58 = scmp.eq.s32.totalorder %s15, 1
      %p59 = por %p57, %p58
      %p61 = scmp.ne.s32.totalorder %s46, %s60
      %p62 = scmp.eq.s32.totalorder %s15, 0
      %p63 = por %p61, %p62
      %s64 = ssub.s32 %s9, %s16
      %p65 = scmp.eq.s32.totalorder %s64, 0
      %s67 = sadd.s32 %s66, 1
      %s68 = scalar_select %p65, %s66, %s67
      %p71 = pneg %p65
      %p72 = scmp.eq.s32.totalorder %s9, 1
      %p73 = por %p71, %p72
      %p74 = scmp.ne.s32.totalorder %s66, %s69
      %p75 = scmp.eq.s32.totalorder %s9, 0
      %p76 = por %p74, %p75
      %p77 = scmp.ne.s32.totalorder %s66, %s69
      %p78 = scmp.eq.s32.totalorder %s14, 1
      %p79 = por %p77, %p78
      %p80 = scmp.ne.s32.totalorder %s69, %s70
      %p81 = scmp.eq.s32.totalorder %s14, 0
      %p82 = por %p80, %p81
      %p83 = scmp.ne.s32.totalorder %s69, %s70
      %p84 = scmp.eq.s32.totalorder %s15, 1
      %p85 = por %p83, %p84
      %p87 = scmp.ne.s32.totalorder %s70, %s86
      %p88 = scmp.eq.s32.totalorder %s15, 0
      %p89 = por %p87, %p88
      %s90 = ssub.s32 %s9, %s16
      %p91 = scmp.eq.s32.totalorder %s90, 0
      %s93 = sadd.s32 %s92, 1
      %s94 = scalar_select %p91, %s92, %s93
      %p97 = pneg %p91
      %p98 = scmp.eq.s32.totalorder %s9, 1
      %p99 = por %p97, %p98
      %p100 = scmp.ne.s32.totalorder %s92, %s95
      %p101 = scmp.eq.s32.totalorder %s9, 0
      %p102 = por %p100, %p101
      %p103 = scmp.ne.s32.totalorder %s92, %s95
      %p104 = scmp.eq.s32.totalorder %s14, 1
      %p105 = por %p103, %p104
      %p106 = scmp.ne.s32.totalorder %s95, %s96
      %p107 = scmp.eq.s32.totalorder %s14, 0
      %p108 = por %p106, %p107
      %p109 = scmp.ne.s32.totalorder %s95, %s96
      %p110 = scmp.eq.s32.totalorder %s15, 1
      %p111 = por %p109, %p110
      %p113 = scmp.ne.s32.totalorder %s96, %s112
      %p114 = scmp.eq.s32.totalorder %s15, 0
      %p115 = por %p113, %p114
      %p116 = scmp.le.s32.totalorder 1, %s9
      %p117 = scmp.lt.s32.totalorder %s9, 3
      %p118 = pnand %p116, %p117
      %p119 = pneg %p118
      // Predicated region
      $region9: #{geomgcn_net.4} parent=5 // pred_check
        _
      $region10: #{geomgcn_net.4} parent=5 // pred_check_branch
        %121 = sbr.rel (%p118) target = $region12
      $region11: #{geomgcn_net.4} parent=5 // pred_region
        %s122 = ssub.s32 %s9, 1
        // Predicated region
        $region13: #{geomgcn_net.4} parent=11 // pred_check
          %p123 = pneg %p56
        $region14: #{geomgcn_net.4} parent=11 // pred_check_branch
          %125 = sbr.rel (%p123) target = $region16
        $region15: #{geomgcn_net.4} parent=11 // pred_region
          _
        $region16: #{geomgcn_net.4} parent=11 // pred_fallthru
          _
      $region12: #{geomgcn_net.4} parent=5 // pred_fallthru
        _
      %p126 = scmp.lt.s32.totalorder %s9, 2
      // Predicated region
      $region17: #{geomgcn_net.4} parent=5 // pred_check
        %p127 = pneg %p126
      $region18: #{geomgcn_net.4} parent=5 // pred_check_branch
        %129 = sbr.rel (%p127) target = $region20
      $region19: #{geomgcn_net.4} parent=5 // pred_region
        // Predicated region
        $region21: #{geomgcn_net.4} parent=19 // pred_check
          %p130 = pneg %p29
        $region22: #{geomgcn_net.4} parent=19 // pred_check_branch
          %132 = sbr.rel (%p130) target = $region24
        $region23: #{geomgcn_net.4} parent=19 // pred_region
          %s133 = smul.u32 4, %s9
          %p134 = scmp.lt.s32.totalorder %s133, 7
          %s135 = scalar_select %p134, %s133, 7
          %s136 = smul.addr %s135, 8
          %s137 = scalar_lea.vmem %s0, %s136
          %s138 = smul.u32 4, %s9
        $region24: #{geomgcn_net.4} parent=19 // pred_fallthru
          _
        // Predicated region
        $region25: #{geomgcn_net.4} parent=19 // pred_check
          %p139 = pneg %p76
        $region26: #{geomgcn_net.4} parent=19 // pred_check_branch
          %141 = sbr.rel (%p139) target = $region28
        $region27: #{geomgcn_net.4} parent=19 // pred_region
          %s142 = smul.u32 4, %s9
          %p143 = scmp.lt.s32.totalorder %s142, 7
          %s144 = scalar_select %p143, %s142, 7
          %s145 = smul.addr %s144, 8
          %s146 = scalar_lea.vmem %s2, %s145
          %s147 = smul.u32 4, %s9
        $region28: #{geomgcn_net.4} parent=19 // pred_fallthru
          _
      $region20: #{geomgcn_net.4} parent=5 // pred_fallthru
        _
      %p148 = scmp.le.s32.totalorder 1, %s9
      %p149 = scmp.lt.s32.totalorder %s9, 3
      %p150 = pnand %p148, %p149
      %p151 = pneg %p150
      // Predicated region
      $region29: #{geomgcn_net.4} parent=5 // pred_check
        _
      $region30: #{geomgcn_net.4} parent=5 // pred_check_branch
        %153 = sbr.rel (%p150) target = $region32
      $region31: #{geomgcn_net.4} parent=5 // pred_region
        %s154 = ssub.s32 %s9, 1
        %s155 = smul.u32 4, %s14
        %p156 = scmp.lt.s32.totalorder %s155, 7
        %s157 = scalar_select %p156, %s155, 7
        %s158 = smul.addr %s157, 8
        %s159 = scalar_lea.vmem %s0, %s158
        %p160 = pneg %p35
        %p161 = pneg %p32
        %p162 = pneg %p56
        %p163 = pneg %p53
        %s164 = smul.u32 4, %s14
        %p165 = scmp.lt.s32.totalorder %s164, 7
        %s166 = scalar_select %p165, %s164, 7
        %s167 = smul.addr %s166, 8
        %s168 = scalar_lea.vmem %s2, %s167
        %p169 = pneg %p82
        %p170 = pneg %p79
        %p171 = pneg %p108
        %p172 = pneg %p105
        %s173 = sand.u32 %s95, 1
        %s174 = sand.u32 %s95, 1
        %s175 = smul.addr %s174, 48
        %s176 = scalar_lea.vmem [#allocation2], %s175
        %s177 = smul.u32 4, %s14
        %p178 = scmp.lt.s32.totalorder %s177, 7
        %s179 = scalar_select %p178, %s177, 7
        %s180 = smul.addr %s179, 8
        %s181 = scalar_lea.vmem %s0, %s180
        %s182 = smul.u32 4, %s14
        %s183 = smul.u32 4, %s14
        %p184 = scmp.lt.s32.totalorder %s183, 7
        %s185 = scalar_select %p184, %s183, 7
        %s186 = smul.addr %s185, 8
        %s187 = scalar_lea.vmem %s2, %s186
        %s188 = smul.u32 4, %s14
        %s189 = smul.u32 4, %s14
        %v191 = vld [vmem:[%s181] sm:$0xff]
        %v192 = vld [vmem:[%s181 + $0x8] sm:$0xff]
        %v193 = vld [vmem:[%s181 + $0x10] sm:$0xff]
        %v194 = vld [vmem:[%s181 + $0x18] sm:$0xff]
        %v195 = vld [vmem:[%s187] sm:$0xff]
        %v196 = vld [vmem:[%s187 + $0x8] sm:$0xff]
        %v197 = vld [vmem:[%s187 + $0x10] sm:$0xff]
        %v198 = vld [vmem:[%s187 + $0x18] sm:$0xff]
        %200 = vset.pattern.permute.xlu0 0
        %201 = vperm.xlu0 %200, %v195
        %v202 = vpop.permute.xlu0 %201
        %205 = vset.pattern.permute.xlu0 0
        %206 = vperm.xlu0 %205, %v196
        %v207 = vpop.permute.xlu0 %206
        %210 = vset.pattern.permute.xlu0 0
        %211 = vperm.xlu0 %210, %v197
        %v212 = vpop.permute.xlu0 %211
        %215 = vset.pattern.permute.xlu0 0
        %216 = vperm.xlu0 %215, %v198
        %v217 = vpop.permute.xlu0 %216
        %v219 = vmul.f32 %v191, %v202
        %v220 = vmul.f32 %v192, %v207
        %v221 = vmul.f32 %v193, %v212
        %v222 = vmul.f32 %v194, %v217
        %v223 = vpack.c.bf16 %v220, %v219
        %v224 = vpack.c.bf16 %v222, %v221
        %v225 = vld [vmem:[%s1] sm:$0xf]
        %v226 = vld [vmem:[%s1 + $0x4] sm:$0xf]
        %v227 = vld [vmem:[%s1 + $0x8] sm:$0xf]
        %v228 = vld [vmem:[%s1 + $0xc] sm:$0xf]
        %v233 = vunpack.c.l.b16 %v225
        %v234 = vunpack.c.l.b16 %v226
        %v235 = vunpack.c.l.b16 %v227
        %v236 = vunpack.c.l.b16 %v228
        %v237 = vpack.c.b16 %v234, %v233
        %v238 = vpack.c.b16 %v236, %v235
        %vm241 = vcmask 261120
        %v243 = vsel %vm241, %v223, 0
        %v246 = vsel %vm241, %v224, 0
        %248 = vmatprep.subr.bf16.mxu0 0
        %249 = vmatpush1.bf16.msra.mxu0 %v237
        %250 = vmatprep.subr.bf16.mxu0 0
        %251 = vmatpush1.bf16.msra.mxu0 %v238
        %252 = vmatprep.subr.bf16.mxu0 0
        %253 = vmatpush1.bf16.msra.mxu0 0
        %254 = vmatprep.subr.bf16.mxu0 0
        %255 = vmatpush1.bf16.msra.mxu0 0
        %256 = vmatprep.subr.bf16.mxu0 0
        %257 = vmatpush1.bf16.msra.mxu0 0
        %258 = vmatprep.subr.bf16.mxu0 0
        %259 = vmatpush1.bf16.msra.mxu0 0
        %260 = vmatprep.subr.bf16.mxu0 0
        %261 = vmatpush1.bf16.msra.mxu0 0
        %262 = vmatprep.subr.bf16.mxu0 0
        %263 = vmatpush1.bf16.msra.mxu0 0
        %264 = vmatprep.subr.bf16.mxu0 0
        %265 = vmatpush1.bf16.msra.mxu0 0
        %266 = vmatprep.subr.bf16.mxu0 0
        %267 = vmatpush1.bf16.msra.mxu0 0
        %268 = vmatprep.subr.bf16.mxu0 0
        %269 = vmatpush1.bf16.msra.mxu0 0
        %270 = vmatprep.subr.bf16.mxu0 0
        %271 = vmatpush1.bf16.msra.mxu0 0
        %272 = vmatprep.subr.bf16.mxu0 0
        %273 = vmatpush1.bf16.msra.mxu0 0
        %274 = vmatprep.subr.bf16.mxu0 0
        %275 = vmatpush1.bf16.msra.mxu0 0
        %276 = vmatprep.subr.bf16.mxu0 0
        %277 = vmatpush1.bf16.msra.mxu0 0
        %278 = vmatprep.subr.bf16.mxu0 0
        %279 = vmatpush1.bf16.msra.mxu0 0
        %280 = vmatprep.mubr.bf16.mxu0 0
        %281 = vmatmul.mubr.bf16.gmra.mrb[0].mxu0 %v243
        %v282 = vpop.f32.mrb[0].mxu0
        %v283 = vadd.f32 0.0, %v282
        %v284 = vpop.f32.mrb[0].mxu0
        %v285 = vpop.f32.mrb[0].mxu0
        %v286 = vadd.f32 0.0, %v285
        %v287 = vpop.f32.mrb[0].mxu0
        %288 = vmatprep.mubr.bf16.mxu0 0
        %289 = vmatmul.mubr.bf16.gmra.mrb[0].mxu0 %v246
        %v290 = vpop.f32.mrb[0].mxu0
        %v291 = vadd.f32 0.0, %v290
        %v292 = vpop.f32.mrb[0].mxu0
        %v293 = vpop.f32.mrb[0].mxu0
        %v294 = vadd.f32 0.0, %v293
        %v295 = vpop.f32.mrb[0].mxu0
        %296 = vdwg.mxu0
        %v297 = vpack.c.bf16 %v286, %v283
        %v298 = vpack.c.bf16 %v294, %v291
        %v301 = vunpack.c.l.b16 %v297
        %v302 = vunpack.c.h.b16 %v297
        %v303 = vunpack.c.l.b16 %v298
        %v304 = vunpack.c.h.b16 %v298
        %v305 = vpack.c.b16 %v301, %v301
        %v306 = vpack.c.b16 %v302, %v302
        %v307 = vpack.c.b16 %v303, %v303
        %v308 = vpack.c.b16 %v304, %v304
        %vm313 = vcmask 257024
        %314 = vst.msk [vmem:[%s176] sm:$0xf] %vm313, %v305
        %315 = vst.msk [vmem:[%s176 + $0x4] sm:$0xf] %vm313, %v306
        %316 = vst.msk [vmem:[%s176 + $0x8] sm:$0xf] %vm313, %v307
        %317 = vst.msk [vmem:[%s176 + $0xc] sm:$0xf] %vm313, %v308
        %s318 = scalar_lea.vmem %s1, 16
        %v319 = vld [vmem:[%s318] sm:$0xf]
        %v320 = vld [vmem:[%s318 + $0x4] sm:$0xf]
        %v321 = vld [vmem:[%s318 + $0x8] sm:$0xf]
        %v322 = vld [vmem:[%s318 + $0xc] sm:$0xf]
        %v327 = vunpack.c.l.b16 %v319
        %v328 = vunpack.c.l.b16 %v320
        %v329 = vunpack.c.l.b16 %v321
        %v330 = vunpack.c.l.b16 %v322
        %v331 = vpack.c.b16 %v328, %v327
        %v332 = vpack.c.b16 %v330, %v329
        %335 = vmatprep.subr.bf16.mxu0 0
        %336 = vmatpush1.bf16.msra.mxu0 %v331
        %337 = vmatprep.subr.bf16.mxu0 0
        %338 = vmatpush1.bf16.msra.mxu0 %v332
        %339 = vmatprep.subr.bf16.mxu0 0
        %340 = vmatpush1.bf16.msra.mxu0 0
        %341 = vmatprep.subr.bf16.mxu0 0
        %342 = vmatpush1.bf16.msra.mxu0 0
        %343 = vmatprep.subr.bf16.mxu0 0
        %344 = vmatpush1.bf16.msra.mxu0 0
        %345 = vmatprep.subr.bf16.mxu0 0
        %346 = vmatpush1.bf16.msra.mxu0 0
        %347 = vmatprep.subr.bf16.mxu0 0
        %348 = vmatpush1.bf16.msra.mxu0 0
        %349 = vmatprep.subr.bf16.mxu0 0
        %350 = vmatpush1.bf16.msra.mxu0 0
        %351 = vmatprep.subr.bf16.mxu0 0
        %352 = vmatpush1.bf16.msra.mxu0 0
        %353 = vmatprep.subr.bf16.mxu0 0
        %354 = vmatpush1.bf16.msra.mxu0 0
        %355 = vmatprep.subr.bf16.mxu0 0
        %356 = vmatpush1.bf16.msra.mxu0 0
        %357 = vmatprep.subr.bf16.mxu0 0
        %358 = vmatpush1.bf16.msra.mxu0 0
        %359 = vmatprep.subr.bf16.mxu0 0
        %360 = vmatpush1.bf16.msra.mxu0 0
        %361 = vmatprep.subr.bf16.mxu0 0
        %362 = vmatpush1.bf16.msra.mxu0 0
        %363 = vmatprep.subr.bf16.mxu0 0
        %364 = vmatpush1.bf16.msra.mxu0 0
        %365 = vmatprep.subr.bf16.mxu0 0
        %366 = vmatpush1.bf16.msra.mxu0 0
        %367 = vmatprep.mubr.bf16.mxu0 0
        %368 = vmatmul.mubr.bf16.gmra.mrb[0].mxu0 %v243
        %v369 = vpop.f32.mrb[0].mxu0
        %v370 = vadd.f32 0.0, %v369
        %v371 = vpop.f32.mrb[0].mxu0
        %v372 = vpop.f32.mrb[0].mxu0
        %v373 = vadd.f32 0.0, %v372
        %v374 = vpop.f32.mrb[0].mxu0
        %375 = vmatprep.mubr.bf16.mxu0 0
        %376 = vmatmul.mubr.bf16.gmra.mrb[0].mxu0 %v246
        %v377 = vpop.f32.mrb[0].mxu0
        %v378 = vadd.f32 0.0, %v377
        %v379 = vpop.f32.mrb[0].mxu0
        %v380 = vpop.f32.mrb[0].mxu0
        %v381 = vadd.f32 0.0, %v380
        %v382 = vpop.f32.mrb[0].mxu0
        %383 = vdwg.mxu0
        %v384 = vpack.c.bf16 %v373, %v370
        %v385 = vpack.c.bf16 %v381, %v378
        %v388 = vunpack.c.l.b16 %v384
        %v389 = vunpack.c.h.b16 %v384
        %v390 = vunpack.c.l.b16 %v385
        %v391 = vunpack.c.h.b16 %v385
        %v392 = vpack.c.b16 %v388, %v388
        %v393 = vpack.c.b16 %v389, %v389
        %v394 = vpack.c.b16 %v390, %v390
        %v395 = vpack.c.b16 %v391, %v391
        %s400 = scalar_lea.vmem %s176, 16 [#allocation2]
        %401 = vst.msk [vmem:[%s400] sm:$0xf] %vm313, %v392
        %402 = vst.msk [vmem:[%s400 + $0x4] sm:$0xf] %vm313, %v393
        %403 = vst.msk [vmem:[%s400 + $0x8] sm:$0xf] %vm313, %v394
        %404 = vst.msk [vmem:[%s400 + $0xc] sm:$0xf] %vm313, %v395
        %s405 = scalar_lea.vmem %s1, 32
        %v406 = vld [vmem:[%s405] sm:$0xf]
        %v407 = vld [vmem:[%s405 + $0x4] sm:$0xf]
        %v408 = vld [vmem:[%s405 + $0x8] sm:$0xf]
        %v409 = vld [vmem:[%s405 + $0xc] sm:$0xf]
        %v414 = vunpack.c.l.b16 %v406
        %v415 = vunpack.c.l.b16 %v407
        %v416 = vunpack.c.l.b16 %v408
        %v417 = vunpack.c.l.b16 %v409
        %v418 = vpack.c.b16 %v415, %v414
        %v419 = vpack.c.b16 %v417, %v416
        %422 = vmatprep.subr.bf16.mxu0 0
        %423 = vmatpush1.bf16.msra.mxu0 %v418
        %424 = vmatprep.subr.bf16.mxu0 0
        %425 = vmatpush1.bf16.msra.mxu0 %v419
        %426 = vmatprep.subr.bf16.mxu0 0
        %427 = vmatpush1.bf16.msra.mxu0 0
        %428 = vmatprep.subr.bf16.mxu0 0
        %429 = vmatpush1.bf16.msra.mxu0 0
        %430 = vmatprep.subr.bf16.mxu0 0
        %431 = vmatpush1.bf16.msra.mxu0 0
        %432 = vmatprep.subr.bf16.mxu0 0
        %433 = vmatpush1.bf16.msra.mxu0 0
        %434 = vmatprep.subr.bf16.mxu0 0
        %435 = vmatpush1.bf16.msra.mxu0 0
        %436 = vmatprep.subr.bf16.mxu0 0
        %437 = vmatpush1.bf16.msra.mxu0 0
        %438 = vmatprep.subr.bf16.mxu0 0
        %439 = vmatpush1.bf16.msra.mxu0 0
        %440 = vmatprep.subr.bf16.mxu0 0
        %441 = vmatpush1.bf16.msra.mxu0 0
        %442 = vmatprep.subr.bf16.mxu0 0
        %443 = vmatpush1.bf16.msra.mxu0 0
        %444 = vmatprep.subr.bf16.mxu0 0
        %445 = vmatpush1.bf16.msra.mxu0 0
        %446 = vmatprep.subr.bf16.mxu0 0
        %447 = vmatpush1.bf16.msra.mxu0 0
        %448 = vmatprep.subr.bf16.mxu0 0
        %449 = vmatpush1.bf16.msra.mxu0 0
        %450 = vmatprep.subr.bf16.mxu0 0
        %451 = vmatpush1.bf16.msra.mxu0 0
        %452 = vmatprep.subr.bf16.mxu0 0
        %453 = vmatpush1.bf16.msra.mxu0 0
        %454 = vmatprep.mubr.bf16.mxu0 0
        %455 = vmatmul.mubr.bf16.gmra.mrb[0].mxu0 %v243
        %v456 = vpop.f32.mrb[0].mxu0
        %v457 = vadd.f32 0.0, %v456
        %v458 = vpop.f32.mrb[0].mxu0
        %v459 = vpop.f32.mrb[0].mxu0
        %v460 = vadd.f32 0.0, %v459
        %v461 = vpop.f32.mrb[0].mxu0
        %462 = vmatprep.mubr.bf16.mxu0 0
        %463 = vmatmul.mubr.bf16.gmra.mrb[0].mxu0 %v246
        %v464 = vpop.f32.mrb[0].mxu0
        %v465 = vadd.f32 0.0, %v464
        %v466 = vpop.f32.mrb[0].mxu0
        %v467 = vpop.f32.mrb[0].mxu0
        %v468 = vadd.f32 0.0, %v467
        %v469 = vpop.f32.mrb[0].mxu0
        %470 = vdwg.mxu0
        %v471 = vpack.c.bf16 %v460, %v457
        %v472 = vpack.c.bf16 %v468, %v465
        %v475 = vunpack.c.l.b16 %v471
        %v476 = vunpack.c.h.b16 %v471
        %v477 = vunpack.c.l.b16 %v472
        %v478 = vunpack.c.h.b16 %v472
        %v479 = vpack.c.b16 %v475, %v475
        %v480 = vpack.c.b16 %v476, %v476
        %v481 = vpack.c.b16 %v477, %v477
        %v482 = vpack.c.b16 %v478, %v478
        %s487 = scalar_lea.vmem %s176, 32 [#allocation2]
        %488 = vst.msk [vmem:[%s487] sm:$0xf] %vm313, %v479
        %489 = vst.msk [vmem:[%s487 + $0x4] sm:$0xf] %vm313, %v480
        %490 = vst.msk [vmem:[%s487 + $0x8] sm:$0xf] %vm313, %v481
        %491 = vst.msk [vmem:[%s487 + $0xc] sm:$0xf] %vm313, %v482
        %s492 = sand.u32 %s95, 1
        %s493 = sand.u32 %s95, 1
        %s494 = smul.addr %s493, 48
        %s495 = scalar_lea.vmem [#allocation2], %s494
        // Predicated region
        $region33: #{geomgcn_net.4} parent=31 // pred_check
          %p496 = pneg %p105
        $region34: #{geomgcn_net.4} parent=31 // pred_check_branch
          %498 = sbr.rel (%p496) target = $region36
        $region35: #{geomgcn_net.4} parent=31 // pred_region
          %s499 = smul.u32 4, %s14
          %s500 = smul.addr %s499, 4
          %s501 = scalar_lea.vmem %s3, %s500
          // Predicated region
          $region37: #{geomgcn_net.4} parent=35 // pred_check
            _
          $region38: #{geomgcn_net.4} parent=35 // pred_check_branch
            %503 = sbr.rel (0) target = $region40
          $region39: #{geomgcn_net.4} parent=35 // pred_region
            // Predicated region
            $region41: #{geomgcn_net.4} parent=39 // pred_check
              _
            $region42: #{geomgcn_net.4} parent=39 // pred_check_branch
              %505 = sbr.rel target = $region44
            $region43: #{geomgcn_net.4} parent=39 // pred_region
              // Predicated region
              $region56: #{geomgcn_net.4} parent=43 // pred_check
                _
              $region57: #{geomgcn_net.4} parent=43 // pred_check_branch
                %542 = sbr.rel (0) target = $region59
              $region58: #{geomgcn_net.4} parent=43 // pred_region
                loop: start=0, step=1, limit=1
                $region60: #{geomgcn_net.4} parent=58 // loop_pre_header
                  _
                $region61: #{geomgcn_net.4} parent=58 // loop_header
                  %s544 = sphi 0, %s548
                  %p545 = scmp.ge.s32.totalorder %s544, 1
                  %s549 = sphi %s495, %s495
                  %s550 = sphi %s501, %s501
                $region62: #{geomgcn_net.4} parent=58 // loop_header_branch
                  %547 = sbr.rel (%p545) target = $region66
                $region63: #{geomgcn_net.4} parent=58 // loop_body
                  _
                $region64: #{geomgcn_net.4} parent=58 // loop_footer
                  %s548 = sadd.s32 1, %s544
                $region65: #{geomgcn_net.4} parent=58 // loop_footer_branch
                  %543 = sbr.rel target = $region61
                $region66: #{geomgcn_net.4} parent=58 // loop_exit
                  _
                loop: start=0, step=1, limit=1
                $region67: #{geomgcn_net.4} parent=58 // loop_pre_header
                  _
                $region68: #{geomgcn_net.4} parent=58 // loop_header
                  %s553 = sphi 0, %s557
                  %p554 = scmp.ge.s32.totalorder %s553, 1
                  %s558 = sphi %s495, %s495
                  %s559 = sphi %s501, %s501
                $region69: #{geomgcn_net.4} parent=58 // loop_header_branch
                  %556 = sbr.rel (%p554) target = $region73
                $region70: #{geomgcn_net.4} parent=58 // loop_body
                  %v560 = vld [vmem:[%s558] sm:$0xf]
                  %561 = vst [vmem:[%s559] sm:$0xf] %v560
                  %v562 = vld [vmem:[%s558 + $0x4] sm:$0xf]
                  %563 = vst [vmem:[%s559 + $0x4] sm:$0xf] %v562
                  %v564 = vld [vmem:[%s558 + $0x8] sm:$0xf]
                  %565 = vst [vmem:[%s559 + $0x8] sm:$0xf] %v564
                  %v566 = vld [vmem:[%s558 + $0xc] sm:$0xf]
                  %567 = vst [vmem:[%s559 + $0xc] sm:$0xf] %v566
                  %v568 = vld [vmem:[%s558 + $0x10] sm:$0xf]
                  %569 = vst [vmem:[%s559 + $0x20] sm:$0xf] %v568
                  %v570 = vld [vmem:[%s558 + $0x14] sm:$0xf]
                  %571 = vst [vmem:[%s559 + $0x24] sm:$0xf] %v570
                  %v572 = vld [vmem:[%s558 + $0x18] sm:$0xf]
                  %573 = vst [vmem:[%s559 + $0x28] sm:$0xf] %v572
                  %v574 = vld [vmem:[%s558 + $0x1c] sm:$0xf]
                  %575 = vst [vmem:[%s559 + $0x2c] sm:$0xf] %v574
                  %v576 = vld [vmem:[%s558 + $0x20] sm:$0xf]
                  %577 = vst [vmem:[%s559 + $0x40] sm:$0xf] %v576
                  %v578 = vld [vmem:[%s558 + $0x24] sm:$0xf]
                  %579 = vst [vmem:[%s559 + $0x44] sm:$0xf] %v578
                  %v580 = vld [vmem:[%s558 + $0x28] sm:$0xf]
                  %581 = vst [vmem:[%s559 + $0x48] sm:$0xf] %v580
                  %v582 = vld [vmem:[%s558 + $0x2c] sm:$0xf]
                  %583 = vst [vmem:[%s559 + $0x4c] sm:$0xf] %v582
                $region71: #{geomgcn_net.4} parent=58 // loop_footer
                  %s557 = sadd.s32 1, %s553
                $region72: #{geomgcn_net.4} parent=58 // loop_footer_branch
                  %552 = sbr.rel target = $region68
                $region73: #{geomgcn_net.4} parent=58 // loop_exit
                  _
              $region59: #{geomgcn_net.4} parent=43 // pred_fallthru
                _
            $region44: #{geomgcn_net.4} parent=39 // pred_fallthru
              _
            // Predicated region
            $region45: #{geomgcn_net.4} parent=39 // pred_check
              _
            $region46: #{geomgcn_net.4} parent=39 // pred_check_branch
              %507 = sbr.rel (0) target = $region48
            $region47: #{geomgcn_net.4} parent=39 // pred_region
              loop: start=0, step=1, limit=1
              $region49: #{geomgcn_net.4} parent=47 // loop_pre_header
                _
              $region50: #{geomgcn_net.4} parent=47 // loop_header
                %s510 = sphi 0, %s514
                %p511 = scmp.ge.s32.totalorder %s510, 1
                %s515 = sphi %s495, %s495
                %s516 = sphi %s501, %s501
              $region51: #{geomgcn_net.4} parent=47 // loop_header_branch
                %513 = sbr.rel (%p511) target = $region55
              $region52: #{geomgcn_net.4} parent=47 // loop_body
                %v517 = vld [vmem:[%s515] sm:$0xf]
                %518 = vst [vmem:[%s516] sm:$0xf] %v517
                %v519 = vld [vmem:[%s515 + $0x4] sm:$0xf]
                %520 = vst [vmem:[%s516 + $0x4] sm:$0xf] %v519
                %v521 = vld [vmem:[%s515 + $0x8] sm:$0xf]
                %522 = vst [vmem:[%s516 + $0x8] sm:$0xf] %v521
                %v523 = vld [vmem:[%s515 + $0xc] sm:$0xf]
                %524 = vst [vmem:[%s516 + $0xc] sm:$0xf] %v523
                %v525 = vld [vmem:[%s515 + $0x10] sm:$0xf]
                %526 = vst [vmem:[%s516 + $0x20] sm:$0xf] %v525
                %v527 = vld [vmem:[%s515 + $0x14] sm:$0xf]
                %528 = vst [vmem:[%s516 + $0x24] sm:$0xf] %v527
                %v529 = vld [vmem:[%s515 + $0x18] sm:$0xf]
                %530 = vst [vmem:[%s516 + $0x28] sm:$0xf] %v529
                %v531 = vld [vmem:[%s515 + $0x1c] sm:$0xf]
                %532 = vst [vmem:[%s516 + $0x2c] sm:$0xf] %v531
                %v533 = vld [vmem:[%s515 + $0x20] sm:$0xf]
                %534 = vst [vmem:[%s516 + $0x40] sm:$0xf] %v533
                %v535 = vld [vmem:[%s515 + $0x24] sm:$0xf]
                %536 = vst [vmem:[%s516 + $0x44] sm:$0xf] %v535
                %v537 = vld [vmem:[%s515 + $0x28] sm:$0xf]
                %538 = vst [vmem:[%s516 + $0x48] sm:$0xf] %v537
                %v539 = vld [vmem:[%s515 + $0x2c] sm:$0xf]
                %540 = vst [vmem:[%s516 + $0x4c] sm:$0xf] %v539
              $region53: #{geomgcn_net.4} parent=47 // loop_footer
                %s514 = sadd.s32 1, %s510
              $region54: #{geomgcn_net.4} parent=47 // loop_footer_branch
                %509 = sbr.rel target = $region50
              $region55: #{geomgcn_net.4} parent=47 // loop_exit
                _
            $region48: #{geomgcn_net.4} parent=39 // pred_fallthru
              _
          $region40: #{geomgcn_net.4} parent=35 // pred_fallthru
            _
          %584 = vnop
        $region36: #{geomgcn_net.4} parent=31 // pred_fallthru
          _
      $region32: #{geomgcn_net.4} parent=5 // pred_fallthru
        _
      %p585 = scmp.le.s32.totalorder 2, %s9
      // Predicated region
      $region74: #{geomgcn_net.4} parent=5 // pred_check
        %p586 = pneg %p585
      $region75: #{geomgcn_net.4} parent=5 // pred_check_branch
        %588 = sbr.rel (%p586) target = $region77
      $region76: #{geomgcn_net.4} parent=5 // pred_region
        %s589 = ssub.s32 %s9, 2
        // Predicated region
        $region78: #{geomgcn_net.4} parent=76 // pred_check
          %p590 = pneg %p111
        $region79: #{geomgcn_net.4} parent=76 // pred_check_branch
          %592 = sbr.rel (%p590) target = $region81
        $region80: #{geomgcn_net.4} parent=76 // pred_region
          %s593 = sand.u32 %s96, 1
          %s594 = sand.u32 %s96, 1
          %s595 = smul.addr %s594, 48
          %s596 = scalar_lea.vmem [#allocation2], %s595
        $region81: #{geomgcn_net.4} parent=76 // pred_fallthru
          _
      $region77: #{geomgcn_net.4} parent=5 // pred_fallthru
        _
    $region6: #{geomgcn_net.4} parent=1 // loop_footer
      %s13 = sadd.s32 1, %s9
    $region7: #{geomgcn_net.4} parent=1 // loop_footer_branch
      %8 = sbr.rel target = $region3
    $region8: #{geomgcn_net.4} parent=1 // loop_exit
      _

// kernel: geomgcn_net.6
$region0: #{geomgcn_net.6}
  #allocation0 [shape = 'u32[]', space=smem, size = 0x4, offset = 0x4, fixed_abs, tag = 'smem constant byte address 0x4 - core index']
  #allocation1 [shape = 'u32[144,128]{1,0:T(1,128)}', space=vmem, size = 0x12000, scoped, tag = 'internal scratch']
  %s0 = inlined_call_operand.vmem [shape: bf16[64,96], index: 0, kind: input, shape index: {}]
  %s1 = inlined_call_operand.vmem [shape: bf16[3,96,8], index: 1, kind: input, shape index: {}]
  %s2 = inlined_call_operand.vmem [shape: f32[64,1], index: 2, kind: input, shape index: {}]
  %s3 = inlined_call_operand.vmem [shape: bf16[3,64,8], index: 3, kind: output, shape index: {}]
  %s4 = sld [smem:[#allocation0]]
  $region82: #{geomgcn_net.6} parent=0
    _
  %s6 = ssub.s32 1, %s4
  %s7 = scalar_select 0, %s6, %s4
  $region1: #{geomgcn_net.6} parent=0
    #allocation2 [shape = 'u8[49152]{0}', space=vmem, size = 0xc000, scoped, tag = 'output window, operand 0']
    loop: start=0, step=1, limit=4
    $region2: #{geomgcn_net.6} parent=1 // loop_pre_header
      _
    $region3: #{geomgcn_net.6} parent=1 // loop_header
      %s9 = sphi 0, %s13
      %p10 = scmp.ge.s32.totalorder %s9, 4
      %s19 = sphi 0, %s21
      %s22 = sphi 0, %s19
      %s23 = sphi 0, %s22
      %s39 = sphi 0, %s23
      %s43 = sphi 0, %s43
      %s45 = sphi 0, %s43
      %s46 = sphi 0, %s45
      %s60 = sphi 0, %s46
      %s66 = sphi 0, %s68
      %s69 = sphi 0, %s66
      %s70 = sphi 0, %s69
      %s86 = sphi 0, %s70
      %s92 = sphi 0, %s94
      %s95 = sphi 0, %s92
      %s96 = sphi 0, %s95
      %s112 = sphi 0, %s96
    $region4: #{geomgcn_net.6} parent=1 // loop_header_branch
      %12 = sbr.rel (%p10) target = $region8
    $region5: #{geomgcn_net.6} parent=1 // loop_body
      %s14 = ssub.s32 %s9, 1
      %s15 = ssub.s32 %s9, 2
      %s16 = sadd.s32 %s9, 1
      %s17 = ssub.s32 %s9, %s16
      %p18 = scmp.eq.s32.totalorder %s17, 0
      %s20 = sadd.s32 %s19, 1
      %s21 = scalar_select %p18, %s19, %s20
      %p24 = pneg %p18
      %p25 = scmp.eq.s32.totalorder %s9, 1
      %p26 = por %p24, %p25
      %p27 = scmp.ne.s32.totalorder %s19, %s22
      %p28 = scmp.eq.s32.totalorder %s9, 0
      %p29 = por %p27, %p28
      %p30 = scmp.ne.s32.totalorder %s19, %s22
      %p31 = scmp.eq.s32.totalorder %s14, 1
      %p32 = por %p30, %p31
      %p33 = scmp.ne.s32.totalorder %s22, %s23
      %p34 = scmp.eq.s32.totalorder %s14, 0
      %p35 = por %p33, %p34
      %p36 = scmp.ne.s32.totalorder %s22, %s23
      %p37 = scmp.eq.s32.totalorder %s15, 1
      %p38 = por %p36, %p37
      %p40 = scmp.ne.s32.totalorder %s23, %s39
      %p41 = scmp.eq.s32.totalorder %s15, 0
      %p42 = por %p40, %p41
      %s44 = sadd.s32 %s43, 1
      %p47 = scmp.eq.s32.totalorder %s9, 1
      %p48 = scmp.ne.s32.totalorder %s43, %s45
      %p49 = scmp.eq.s32.totalorder %s9, 0
      %p50 = por %p48, %p49
      %p51 = scmp.ne.s32.totalorder %s43, %s45
      %p52 = scmp.eq.s32.totalorder %s14, 1
      %p53 = por %p51, %p52
      %p54 = scmp.ne.s32.totalorder %s45, %s46
      %p55 = scmp.eq.s32.totalorder %s14, 0
      %p56 = por %p54, %p55
      %p57 = scmp.ne.s32.totalorder %s45, %s46
      %p58 = scmp.eq.s32.totalorder %s15, 1
      %p59 = por %p57, %p58
      %p61 = scmp.ne.s32.totalorder %s46, %s60
      %p62 = scmp.eq.s32.totalorder %s15, 0
      %p63 = por %p61, %p62
      %s64 = ssub.s32 %s9, %s16
      %p65 = scmp.eq.s32.totalorder %s64, 0
      %s67 = sadd.s32 %s66, 1
      %s68 = scalar_select %p65, %s66, %s67
      %p71 = pneg %p65
      %p72 = scmp.eq.s32.totalorder %s9, 1
      %p73 = por %p71, %p72
      %p74 = scmp.ne.s32.totalorder %s66, %s69
      %p75 = scmp.eq.s32.totalorder %s9, 0
      %p76 = por %p74, %p75
      %p77 = scmp.ne.s32.totalorder %s66, %s69
      %p78 = scmp.eq.s32.totalorder %s14, 1
      %p79 = por %p77, %p78
      %p80 = scmp.ne.s32.totalorder %s69, %s70
      %p81 = scmp.eq.s32.totalorder %s14, 0
      %p82 = por %p80, %p81
      %p83 = scmp.ne.s32.totalorder %s69, %s70
      %p84 = scmp.eq.s32.totalorder %s15, 1
      %p85 = por %p83, %p84
      %p87 = scmp.ne.s32.totalorder %s70, %s86
      %p88 = scmp.eq.s32.totalorder %s15, 0
      %p89 = por %p87, %p88
      %s90 = ssub.s32 %s9, %s16
      %p91 = scmp.eq.s32.totalorder %s90, 0
      %s93 = sadd.s32 %s92, 1
      %s94 = scalar_select %p91, %s92, %s93
      %p97 = pneg %p91
      %p98 = scmp.eq.s32.totalorder %s9, 1
      %p99 = por %p97, %p98
      %p100 = scmp.ne.s32.totalorder %s92, %s95
      %p101 = scmp.eq.s32.totalorder %s9, 0
      %p102 = por %p100, %p101
      %p103 = scmp.ne.s32.totalorder %s92, %s95
      %p104 = scmp.eq.s32.totalorder %s14, 1
      %p105 = por %p103, %p104
      %p106 = scmp.ne.s32.totalorder %s95, %s96
      %p107 = scmp.eq.s32.totalorder %s14, 0
      %p108 = por %p106, %p107
      %p109 = scmp.ne.s32.totalorder %s95, %s96
      %p110 = scmp.eq.s32.totalorder %s15, 1
      %p111 = por %p109, %p110
      %p113 = scmp.ne.s32.totalorder %s96, %s112
      %p114 = scmp.eq.s32.totalorder %s15, 0
      %p115 = por %p113, %p114
      %p116 = scmp.le.s32.totalorder 1, %s9
      %p117 = scmp.lt.s32.totalorder %s9, 3
      %p118 = pnand %p116, %p117
      %p119 = pneg %p118
      // Predicated region
      $region9: #{geomgcn_net.6} parent=5 // pred_check
        _
      $region10: #{geomgcn_net.6} parent=5 // pred_check_branch
        %121 = sbr.rel (%p118) target = $region12
      $region11: #{geomgcn_net.6} parent=5 // pred_region
        %s122 = ssub.s32 %s9, 1
        // Predicated region
        $region13: #{geomgcn_net.6} parent=11 // pred_check
          %p123 = pneg %p56
        $region14: #{geomgcn_net.6} parent=11 // pred_check_branch
          %125 = sbr.rel (%p123) target = $region16
        $region15: #{geomgcn_net.6} parent=11 // pred_region
          _
        $region16: #{geomgcn_net.6} parent=11 // pred_fallthru
          _
      $region12: #{geomgcn_net.6} parent=5 // pred_fallthru
        _
      %p126 = scmp.lt.s32.totalorder %s9, 2
      // Predicated region
      $region17: #{geomgcn_net.6} parent=5 // pred_check
        %p127 = pneg %p126
      $region18: #{geomgcn_net.6} parent=5 // pred_check_branch
        %129 = sbr.rel (%p127) target = $region20
      $region19: #{geomgcn_net.6} parent=5 // pred_region
        // Predicated region
        $region21: #{geomgcn_net.6} parent=19 // pred_check
          %p130 = pneg %p29
        $region22: #{geomgcn_net.6} parent=19 // pred_check_branch
          %132 = sbr.rel (%p130) target = $region24
        $region23: #{geomgcn_net.6} parent=19 // pred_region
          %s133 = smul.u32 4, %s9
          %p134 = scmp.lt.s32.totalorder %s133, 7
          %s135 = scalar_select %p134, %s133, 7
          %s136 = smul.addr %s135, 4
          %s137 = scalar_lea.vmem %s0, %s136
          %s138 = smul.u32 4, %s9
        $region24: #{geomgcn_net.6} parent=19 // pred_fallthru
          _
        // Predicated region
        $region25: #{geomgcn_net.6} parent=19 // pred_check
          %p139 = pneg %p76
        $region26: #{geomgcn_net.6} parent=19 // pred_check_branch
          %141 = sbr.rel (%p139) target = $region28
        $region27: #{geomgcn_net.6} parent=19 // pred_region
          %s142 = smul.u32 4, %s9
          %p143 = scmp.lt.s32.totalorder %s142, 7
          %s144 = scalar_select %p143, %s142, 7
          %s145 = smul.addr %s144, 8
          %s146 = scalar_lea.vmem %s2, %s145
          %s147 = smul.u32 4, %s9
        $region28: #{geomgcn_net.6} parent=19 // pred_fallthru
          _
      $region20: #{geomgcn_net.6} parent=5 // pred_fallthru
        _
      %p148 = scmp.le.s32.totalorder 1, %s9
      %p149 = scmp.lt.s32.totalorder %s9, 3
      %p150 = pnand %p148, %p149
      %p151 = pneg %p150
      // Predicated region
      $region29: #{geomgcn_net.6} parent=5 // pred_check
        _
      $region30: #{geomgcn_net.6} parent=5 // pred_check_branch
        %153 = sbr.rel (%p150) target = $region32
      $region31: #{geomgcn_net.6} parent=5 // pred_region
        %s154 = ssub.s32 %s9, 1
        %s155 = smul.u32 4, %s14
        %p156 = scmp.lt.s32.totalorder %s155, 7
        %s157 = scalar_select %p156, %s155, 7
        %s158 = smul.addr %s157, 4
        %s159 = scalar_lea.vmem %s0, %s158
        %p160 = pneg %p35
        %p161 = pneg %p32
        %p162 = pneg %p56
        %p163 = pneg %p53
        %s164 = smul.u32 4, %s14
        %p165 = scmp.lt.s32.totalorder %s164, 7
        %s166 = scalar_select %p165, %s164, 7
        %s167 = smul.addr %s166, 8
        %s168 = scalar_lea.vmem %s2, %s167
        %p169 = pneg %p82
        %p170 = pneg %p79
        %p171 = pneg %p108
        %p172 = pneg %p105
        %s173 = sand.u32 %s95, 1
        %s174 = sand.u32 %s95, 1
        %s175 = smul.addr %s174, 48
        %s176 = scalar_lea.vmem [#allocation2], %s175
        %s177 = smul.u32 4, %s14
        %p178 = scmp.lt.s32.totalorder %s177, 7
        %s179 = scalar_select %p178, %s177, 7
        %s180 = smul.addr %s179, 4
        %s181 = scalar_lea.vmem %s0, %s180
        %s182 = smul.u32 4, %s14
        %s183 = smul.u32 4, %s14
        %p184 = scmp.lt.s32.totalorder %s183, 7
        %s185 = scalar_select %p184, %s183, 7
        %s186 = smul.addr %s185, 8
        %s187 = scalar_lea.vmem %s2, %s186
        %s188 = smul.u32 4, %s14
        %s189 = smul.u32 4, %s14
        %v191 = vld [vmem:[%s181] sm:$0xf]
        %v192 = vld [vmem:[%s181 + $0x4] sm:$0xf]
        %v193 = vld [vmem:[%s181 + $0x8] sm:$0xf]
        %v194 = vld [vmem:[%s181 + $0xc] sm:$0xf]
        %v195 = vunpack.c.l.bf16 %v191
        %v196 = vunpack.c.l.bf16 %v192
        %v197 = vunpack.c.l.bf16 %v193
        %v198 = vunpack.c.l.bf16 %v194
        %v199 = vld [vmem:[%s187] sm:$0xff]
        %v200 = vld [vmem:[%s187 + $0x8] sm:$0xff]
        %v201 = vld [vmem:[%s187 + $0x10] sm:$0xff]
        %v202 = vld [vmem:[%s187 + $0x18] sm:$0xff]
        %204 = vset.pattern.permute.xlu0 0
        %205 = vperm.xlu0 %204, %v199
        %v206 = vpop.permute.xlu0 %205
        %209 = vset.pattern.permute.xlu0 0
        %210 = vperm.xlu0 %209, %v200
        %v211 = vpop.permute.xlu0 %210
        %214 = vset.pattern.permute.xlu0 0
        %215 = vperm.xlu0 %214, %v201
        %v216 = vpop.permute.xlu0 %215
        %219 = vset.pattern.permute.xlu0 0
        %220 = vperm.xlu0 %219, %v202
        %v221 = vpop.permute.xlu0 %220
        %v223 = vmul.f32 %v195, %v206
        %v224 = vmul.f32 %v196, %v211
        %v225 = vmul.f32 %v197, %v216
        %v226 = vmul.f32 %v198, %v221
        %v227 = vpack.c.bf16 %v224, %v223
        %v228 = vpack.c.bf16 %v226, %v225
        %v229 = vld [vmem:[%s1] sm:$0xf]
        %v230 = vld [vmem:[%s1 + $0x4] sm:$0xf]
        %v231 = vld [vmem:[%s1 + $0x8] sm:$0xf]
        %v232 = vld [vmem:[%s1 + $0xc] sm:$0xf]
        %v233 = vld [vmem:[%s1 + $0x10] sm:$0xf]
        %v234 = vld [vmem:[%s1 + $0x14] sm:$0xf]
        %v235 = vld [vmem:[%s1 + $0x18] sm:$0xf]
        %v236 = vld [vmem:[%s1 + $0x1c] sm:$0xf]
        %v237 = vld [vmem:[%s1 + $0x20] sm:$0xf]
        %v238 = vld [vmem:[%s1 + $0x24] sm:$0xf]
        %v239 = vld [vmem:[%s1 + $0x28] sm:$0xf]
        %v240 = vld [vmem:[%s1 + $0x2c] sm:$0xf]
        %v253 = vunpack.c.l.b16 %v229
        %v254 = vunpack.c.l.b16 %v230
        %v255 = vunpack.c.l.b16 %v231
        %v256 = vunpack.c.l.b16 %v232
        %v257 = vunpack.c.l.b16 %v233
        %v258 = vunpack.c.l.b16 %v234
        %v259 = vunpack.c.l.b16 %v235
        %v260 = vunpack.c.l.b16 %v236
        %v261 = vunpack.c.l.b16 %v237
        %v262 = vunpack.c.l.b16 %v238
        %v263 = vunpack.c.l.b16 %v239
        %v264 = vunpack.c.l.b16 %v240
        %v265 = vpack.c.b16 %v254, %v253
        %v266 = vpack.c.b16 %v256, %v255
        %v267 = vpack.c.b16 %v258, %v257
        %v268 = vpack.c.b16 %v260, %v259
        %v269 = vpack.c.b16 %v262, %v261
        %v270 = vpack.c.b16 %v264, %v263
        %vm277 = vcmask 785408
        %v279 = vsel %vm277, %v227, 0
        %v282 = vsel %vm277, %v228, 0
        %284 = vmatprep.subr.bf16.mxu0 0
        %285 = vmatpush1.bf16.msra.mxu0 %v265
        %286 = vmatprep.subr.bf16.mxu0 0
        %287 = vmatpush1.bf16.msra.mxu0 %v266
        %288 = vmatprep.subr.bf16.mxu0 0
        %289 = vmatpush1.bf16.msra.mxu0 %v267
        %290 = vmatprep.subr.bf16.mxu0 0
        %291 = vmatpush1.bf16.msra.mxu0 %v268
        %292 = vmatprep.subr.bf16.mxu0 0
        %293 = vmatpush1.bf16.msra.mxu0 %v269
        %294 = vmatprep.subr.bf16.mxu0 0
        %295 = vmatpush1.bf16.msra.mxu0 %v270
        %296 = vmatprep.subr.bf16.mxu0 0
        %297 = vmatpush1.bf16.msra.mxu0 0
        %298 = vmatprep.subr.bf16.mxu0 0
        %299 = vmatpush1.bf16.msra.mxu0 0
        %300 = vmatprep.subr.bf16.mxu0 0
        %301 = vmatpush1.bf16.msra.mxu0 0
        %302 = vmatprep.subr.bf16.mxu0 0
        %303 = vmatpush1.bf16.msra.mxu0 0
        %304 = vmatprep.subr.bf16.mxu0 0
        %305 = vmatpush1.bf16.msra.mxu0 0
        %306 = vmatprep.subr.bf16.mxu0 0
        %307 = vmatpush1.bf16.msra.mxu0 0
        %308 = vmatprep.subr.bf16.mxu0 0
        %309 = vmatpush1.bf16.msra.mxu0 0
        %310 = vmatprep.subr.bf16.mxu0 0
        %311 = vmatpush1.bf16.msra.mxu0 0
        %312 = vmatprep.subr.bf16.mxu0 0
        %313 = vmatpush1.bf16.msra.mxu0 0
        %314 = vmatprep.subr.bf16.mxu0 0
        %315 = vmatpush1.bf16.msra.mxu0 0
        %316 = vmatprep.mubr.bf16.mxu0 0
        %317 = vmatmul.mubr.bf16.gmra.mrb[0].mxu0 %v279
        %v318 = vpop.f32.mrb[0].mxu0
        %v319 = vadd.f32 0.0, %v318
        %v320 = vpop.f32.mrb[0].mxu0
        %v321 = vpop.f32.mrb[0].mxu0
        %v322 = vadd.f32 0.0, %v321
        %v323 = vpop.f32.mrb[0].mxu0
        %324 = vmatprep.mubr.bf16.mxu0 0
        %325 = vmatmul.mubr.bf16.gmra.mrb[0].mxu0 %v282
        %v326 = vpop.f32.mrb[0].mxu0
        %v327 = vadd.f32 0.0, %v326
        %v328 = vpop.f32.mrb[0].mxu0
        %v329 = vpop.f32.mrb[0].mxu0
        %v330 = vadd.f32 0.0, %v329
        %v331 = vpop.f32.mrb[0].mxu0
        %332 = vdwg.mxu0
        %v333 = vpack.c.bf16 %v322, %v319
        %v334 = vpack.c.bf16 %v330, %v327
        %v337 = vunpack.c.l.b16 %v333
        %v338 = vunpack.c.h.b16 %v333
        %v339 = vunpack.c.l.b16 %v334
        %v340 = vunpack.c.h.b16 %v334
        %v341 = vpack.c.b16 %v337, %v337
        %v342 = vpack.c.b16 %v338, %v338
        %v343 = vpack.c.b16 %v339, %v339
        %v344 = vpack.c.b16 %v340, %v340
        %vm349 = vcmask 60416
        %350 = vst.msk [vmem:[%s176] sm:$0xf] %vm349, %v341
        %351 = vst.msk [vmem:[%s176 + $0x4] sm:$0xf] %vm349, %v342
        %352 = vst.msk [vmem:[%s176 + $0x8] sm:$0xf] %vm349, %v343
        %353 = vst.msk [vmem:[%s176 + $0xc] sm:$0xf] %vm349, %v344
        %s354 = scalar_lea.vmem %s1, 48
        %v355 = vld [vmem:[%s354] sm:$0xf]
        %v356 = vld [vmem:[%s354 + $0x4] sm:$0xf]
        %v357 = vld [vmem:[%s354 + $0x8] sm:$0xf]
        %v358 = vld [vmem:[%s354 + $0xc] sm:$0xf]
        %v359 = vld [vmem:[%s354 + $0x10] sm:$0xf]
        %v360 = vld [vmem:[%s354 + $0x14] sm:$0xf]
        %v361 = vld [vmem:[%s354 + $0x18] sm:$0xf]
        %v362 = vld [vmem:[%s354 + $0x1c] sm:$0xf]
        %v363 = vld [vmem:[%s354 + $0x20] sm:$0xf]
        %v364 = vld [vmem:[%s354 + $0x24] sm:$0xf]
        %v365 = vld [vmem:[%s354 + $0x28] sm:$0xf]
        %v366 = vld [vmem:[%s354 + $0x2c] sm:$0xf]
        %v379 = vunpack.c.l.b16 %v355
        %v380 = vunpack.c.l.b16 %v356
        %v381 = vunpack.c.l.b16 %v357
        %v382 = vunpack.c.l.b16 %v358
        %v383 = vunpack.c.l.b16 %v359
        %v384 = vunpack.c.l.b16 %v360
        %v385 = vunpack.c.l.b16 %v361
        %v386 = vunpack.c.l.b16 %v362
        %v387 = vunpack.c.l.b16 %v363
        %v388 = vunpack.c.l.b16 %v364
        %v389 = vunpack.c.l.b16 %v365
        %v390 = vunpack.c.l.b16 %v366
        %v391 = vpack.c.b16 %v380, %v379
        %v392 = vpack.c.b16 %v382, %v381
        %v393 = vpack.c.b16 %v384, %v383
        %v394 = vpack.c.b16 %v386, %v385
        %v395 = vpack.c.b16 %v388, %v387
        %v396 = vpack.c.b16 %v390, %v389
        %403 = vmatprep.subr.bf16.mxu0 0
        %404 = vmatpush1.bf16.msra.mxu0 %v391
        %405 = vmatprep.subr.bf16.mxu0 0
        %406 = vmatpush1.bf16.msra.mxu0 %v392
        %407 = vmatprep.subr.bf16.mxu0 0
        %408 = vmatpush1.bf16.msra.mxu0 %v393
        %409 = vmatprep.subr.bf16.mxu0 0
        %410 = vmatpush1.bf16.msra.mxu0 %v394
        %411 = vmatprep.subr.bf16.mxu0 0
        %412 = vmatpush1.bf16.msra.mxu0 %v395
        %413 = vmatprep.subr.bf16.mxu0 0
        %414 = vmatpush1.bf16.msra.mxu0 %v396
        %415 = vmatprep.subr.bf16.mxu0 0
        %416 = vmatpush1.bf16.msra.mxu0 0
        %417 = vmatprep.subr.bf16.mxu0 0
        %418 = vmatpush1.bf16.msra.mxu0 0
        %419 = vmatprep.subr.bf16.mxu0 0
        %420 = vmatpush1.bf16.msra.mxu0 0
        %421 = vmatprep.subr.bf16.mxu0 0
        %422 = vmatpush1.bf16.msra.mxu0 0
        %423 = vmatprep.subr.bf16.mxu0 0
        %424 = vmatpush1.bf16.msra.mxu0 0
        %425 = vmatprep.subr.bf16.mxu0 0
        %426 = vmatpush1.bf16.msra.mxu0 0
        %427 = vmatprep.subr.bf16.mxu0 0
        %428 = vmatpush1.bf16.msra.mxu0 0
        %429 = vmatprep.subr.bf16.mxu0 0
        %430 = vmatpush1.bf16.msra.mxu0 0
        %431 = vmatprep.subr.bf16.mxu0 0
        %432 = vmatpush1.bf16.msra.mxu0 0
        %433 = vmatprep.subr.bf16.mxu0 0
        %434 = vmatpush1.bf16.msra.mxu0 0
        %435 = vmatprep.mubr.bf16.mxu0 0
        %436 = vmatmul.mubr.bf16.gmra.mrb[0].mxu0 %v279
        %v437 = vpop.f32.mrb[0].mxu0
        %v438 = vadd.f32 0.0, %v437
        %v439 = vpop.f32.mrb[0].mxu0
        %v440 = vpop.f32.mrb[0].mxu0
        %v441 = vadd.f32 0.0, %v440
        %v442 = vpop.f32.mrb[0].mxu0
        %443 = vmatprep.mubr.bf16.mxu0 0
        %444 = vmatmul.mubr.bf16.gmra.mrb[0].mxu0 %v282
        %v445 = vpop.f32.mrb[0].mxu0
        %v446 = vadd.f32 0.0, %v445
        %v447 = vpop.f32.mrb[0].mxu0
        %v448 = vpop.f32.mrb[0].mxu0
        %v449 = vadd.f32 0.0, %v448
        %v450 = vpop.f32.mrb[0].mxu0
        %451 = vdwg.mxu0
        %v452 = vpack.c.bf16 %v441, %v438
        %v453 = vpack.c.bf16 %v449, %v446
        %v456 = vunpack.c.l.b16 %v452
        %v457 = vunpack.c.h.b16 %v452
        %v458 = vunpack.c.l.b16 %v453
        %v459 = vunpack.c.h.b16 %v453
        %v460 = vpack.c.b16 %v456, %v456
        %v461 = vpack.c.b16 %v457, %v457
        %v462 = vpack.c.b16 %v458, %v458
        %v463 = vpack.c.b16 %v459, %v459
        %s468 = scalar_lea.vmem %s176, 16 [#allocation2]
        %469 = vst.msk [vmem:[%s468] sm:$0xf] %vm349, %v460
        %470 = vst.msk [vmem:[%s468 + $0x4] sm:$0xf] %vm349, %v461
        %471 = vst.msk [vmem:[%s468 + $0x8] sm:$0xf] %vm349, %v462
        %472 = vst.msk [vmem:[%s468 + $0xc] sm:$0xf] %vm349, %v463
        %s473 = scalar_lea.vmem %s1, 96
        %v474 = vld [vmem:[%s473] sm:$0xf]
        %v475 = vld [vmem:[%s473 + $0x4] sm:$0xf]
        %v476 = vld [vmem:[%s473 + $0x8] sm:$0xf]
        %v477 = vld [vmem:[%s473 + $0xc] sm:$0xf]
        %v478 = vld [vmem:[%s473 + $0x10] sm:$0xf]
        %v479 = vld [vmem:[%s473 + $0x14] sm:$0xf]
        %v480 = vld [vmem:[%s473 + $0x18] sm:$0xf]
        %v481 = vld [vmem:[%s473 + $0x1c] sm:$0xf]
        %v482 = vld [vmem:[%s473 + $0x20] sm:$0xf]
        %v483 = vld [vmem:[%s473 + $0x24] sm:$0xf]
        %v484 = vld [vmem:[%s473 + $0x28] sm:$0xf]
        %v485 = vld [vmem:[%s473 + $0x2c] sm:$0xf]
        %v498 = vunpack.c.l.b16 %v474
        %v499 = vunpack.c.l.b16 %v475
        %v500 = vunpack.c.l.b16 %v476
        %v501 = vunpack.c.l.b16 %v477
        %v502 = vunpack.c.l.b16 %v478
        %v503 = vunpack.c.l.b16 %v479
        %v504 = vunpack.c.l.b16 %v480
        %v505 = vunpack.c.l.b16 %v481
        %v506 = vunpack.c.l.b16 %v482
        %v507 = vunpack.c.l.b16 %v483
        %v508 = vunpack.c.l.b16 %v484
        %v509 = vunpack.c.l.b16 %v485
        %v510 = vpack.c.b16 %v499, %v498
        %v511 = vpack.c.b16 %v501, %v500
        %v512 = vpack.c.b16 %v503, %v502
        %v513 = vpack.c.b16 %v505, %v504
        %v514 = vpack.c.b16 %v507, %v506
        %v515 = vpack.c.b16 %v509, %v508
        %522 = vmatprep.subr.bf16.mxu0 0
        %523 = vmatpush1.bf16.msra.mxu0 %v510
        %524 = vmatprep.subr.bf16.mxu0 0
        %525 = vmatpush1.bf16.msra.mxu0 %v511
        %526 = vmatprep.subr.bf16.mxu0 0
        %527 = vmatpush1.bf16.msra.mxu0 %v512
        %528 = vmatprep.subr.bf16.mxu0 0
        %529 = vmatpush1.bf16.msra.mxu0 %v513
        %530 = vmatprep.subr.bf16.mxu0 0
        %531 = vmatpush1.bf16.msra.mxu0 %v514
        %532 = vmatprep.subr.bf16.mxu0 0
        %533 = vmatpush1.bf16.msra.mxu0 %v515
        %534 = vmatprep.subr.bf16.mxu0 0
        %535 = vmatpush1.bf16.msra.mxu0 0
        %536 = vmatprep.subr.bf16.mxu0 0
        %537 = vmatpush1.bf16.msra.mxu0 0
        %538 = vmatprep.subr.bf16.mxu0 0
        %539 = vmatpush1.bf16.msra.mxu0 0
        %540 = vmatprep.subr.bf16.mxu0 0
        %541 = vmatpush1.bf16.msra.mxu0 0
        %542 = vmatprep.subr.bf16.mxu0 0
        %543 = vmatpush1.bf16.msra.mxu0 0
        %544 = vmatprep.subr.bf16.mxu0 0
        %545 = vmatpush1.bf16.msra.mxu0 0
        %546 = vmatprep.subr.bf16.mxu0 0
        %547 = vmatpush1.bf16.msra.mxu0 0
        %548 = vmatprep.subr.bf16.mxu0 0
        %549 = vmatpush1.bf16.msra.mxu0 0
        %550 = vmatprep.subr.bf16.mxu0 0
        %551 = vmatpush1.bf16.msra.mxu0 0
        %552 = vmatprep.subr.bf16.mxu0 0
        %553 = vmatpush1.bf16.msra.mxu0 0
        %554 = vmatprep.mubr.bf16.mxu0 0
        %555 = vmatmul.mubr.bf16.gmra.mrb[0].mxu0 %v279
        %v556 = vpop.f32.mrb[0].mxu0
        %v557 = vadd.f32 0.0, %v556
        %v558 = vpop.f32.mrb[0].mxu0
        %v559 = vpop.f32.mrb[0].mxu0
        %v560 = vadd.f32 0.0, %v559
        %v561 = vpop.f32.mrb[0].mxu0
        %562 = vmatprep.mubr.bf16.mxu0 0
        %563 = vmatmul.mubr.bf16.gmra.mrb[0].mxu0 %v282
        %v564 = vpop.f32.mrb[0].mxu0
        %v565 = vadd.f32 0.0, %v564
        %v566 = vpop.f32.mrb[0].mxu0
        %v567 = vpop.f32.mrb[0].mxu0
        %v568 = vadd.f32 0.0, %v567
        %v569 = vpop.f32.mrb[0].mxu0
        %570 = vdwg.mxu0
        %v571 = vpack.c.bf16 %v560, %v557
        %v572 = vpack.c.bf16 %v568, %v565
        %v575 = vunpack.c.l.b16 %v571
        %v576 = vunpack.c.h.b16 %v571
        %v577 = vunpack.c.l.b16 %v572
        %v578 = vunpack.c.h.b16 %v572
        %v579 = vpack.c.b16 %v575, %v575
        %v580 = vpack.c.b16 %v576, %v576
        %v581 = vpack.c.b16 %v577, %v577
        %v582 = vpack.c.b16 %v578, %v578
        %s587 = scalar_lea.vmem %s176, 32 [#allocation2]
        %588 = vst.msk [vmem:[%s587] sm:$0xf] %vm349, %v579
        %589 = vst.msk [vmem:[%s587 + $0x4] sm:$0xf] %vm349, %v580
        %590 = vst.msk [vmem:[%s587 + $0x8] sm:$0xf] %vm349, %v581
        %591 = vst.msk [vmem:[%s587 + $0xc] sm:$0xf] %vm349, %v582
        %s592 = sand.u32 %s95, 1
        %s593 = sand.u32 %s95, 1
        %s594 = smul.addr %s593, 48
        %s595 = scalar_lea.vmem [#allocation2], %s594
        // Predicated region
        $region33: #{geomgcn_net.6} parent=31 // pred_check
          %p596 = pneg %p105
        $region34: #{geomgcn_net.6} parent=31 // pred_check_branch
          %598 = sbr.rel (%p596) target = $region36
        $region35: #{geomgcn_net.6} parent=31 // pred_region
          %s599 = smul.u32 4, %s14
          %s600 = smul.addr %s599, 4
          %s601 = scalar_lea.vmem %s3, %s600
          // Predicated region
          $region37: #{geomgcn_net.6} parent=35 // pred_check
            _
          $region38: #{geomgcn_net.6} parent=35 // pred_check_branch
            %603 = sbr.rel (0) target = $region40
          $region39: #{geomgcn_net.6} parent=35 // pred_region
            // Predicated region
            $region41: #{geomgcn_net.6} parent=39 // pred_check
              _
            $region42: #{geomgcn_net.6} parent=39 // pred_check_branch
              %605 = sbr.rel target = $region44
            $region43: #{geomgcn_net.6} parent=39 // pred_region
              // Predicated region
              $region56: #{geomgcn_net.6} parent=43 // pred_check
                _
              $region57: #{geomgcn_net.6} parent=43 // pred_check_branch
                %642 = sbr.rel (0) target = $region59
              $region58: #{geomgcn_net.6} parent=43 // pred_region
                loop: start=0, step=1, limit=1
                $region60: #{geomgcn_net.6} parent=58 // loop_pre_header
                  _
                $region61: #{geomgcn_net.6} parent=58 // loop_header
                  %s644 = sphi 0, %s648
                  %p645 = scmp.ge.s32.totalorder %s644, 1
                  %s649 = sphi %s595, %s595
                  %s650 = sphi %s601, %s601
                $region62: #{geomgcn_net.6} parent=58 // loop_header_branch
                  %647 = sbr.rel (%p645) target = $region66
                $region63: #{geomgcn_net.6} parent=58 // loop_body
                  _
                $region64: #{geomgcn_net.6} parent=58 // loop_footer
                  %s648 = sadd.s32 1, %s644
                $region65: #{geomgcn_net.6} parent=58 // loop_footer_branch
                  %643 = sbr.rel target = $region61
                $region66: #{geomgcn_net.6} parent=58 // loop_exit
                  _
                loop: start=0, step=1, limit=1
                $region67: #{geomgcn_net.6} parent=58 // loop_pre_header
                  _
                $region68: #{geomgcn_net.6} parent=58 // loop_header
                  %s653 = sphi 0, %s657
                  %p654 = scmp.ge.s32.totalorder %s653, 1
                  %s658 = sphi %s595, %s595
                  %s659 = sphi %s601, %s601
                $region69: #{geomgcn_net.6} parent=58 // loop_header_branch
                  %656 = sbr.rel (%p654) target = $region73
                $region70: #{geomgcn_net.6} parent=58 // loop_body
                  %v660 = vld [vmem:[%s658] sm:$0xf]
                  %661 = vst [vmem:[%s659] sm:$0xf] %v660
                  %v662 = vld [vmem:[%s658 + $0x4] sm:$0xf]
                  %663 = vst [vmem:[%s659 + $0x4] sm:$0xf] %v662
                  %v664 = vld [vmem:[%s658 + $0x8] sm:$0xf]
                  %665 = vst [vmem:[%s659 + $0x8] sm:$0xf] %v664
                  %v666 = vld [vmem:[%s658 + $0xc] sm:$0xf]
                  %667 = vst [vmem:[%s659 + $0xc] sm:$0xf] %v666
                  %v668 = vld [vmem:[%s658 + $0x10] sm:$0xf]
                  %669 = vst [vmem:[%s659 + $0x20] sm:$0xf] %v668
                  %v670 = vld [vmem:[%s658 + $0x14] sm:$0xf]
                  %671 = vst [vmem:[%s659 + $0x24] sm:$0xf] %v670
                  %v672 = vld [vmem:[%s658 + $0x18] sm:$0xf]
                  %673 = vst [vmem:[%s659 + $0x28] sm:$0xf] %v672
                  %v674 = vld [vmem:[%s658 + $0x1c] sm:$0xf]
                  %675 = vst [vmem:[%s659 + $0x2c] sm:$0xf] %v674
                  %v676 = vld [vmem:[%s658 + $0x20] sm:$0xf]
                  %677 = vst [vmem:[%s659 + $0x40] sm:$0xf] %v676
                  %v678 = vld [vmem:[%s658 + $0x24] sm:$0xf]
                  %679 = vst [vmem:[%s659 + $0x44] sm:$0xf] %v678
                  %v680 = vld [vmem:[%s658 + $0x28] sm:$0xf]
                  %681 = vst [vmem:[%s659 + $0x48] sm:$0xf] %v680
                  %v682 = vld [vmem:[%s658 + $0x2c] sm:$0xf]
                  %683 = vst [vmem:[%s659 + $0x4c] sm:$0xf] %v682
                $region71: #{geomgcn_net.6} parent=58 // loop_footer
                  %s657 = sadd.s32 1, %s653
                $region72: #{geomgcn_net.6} parent=58 // loop_footer_branch
                  %652 = sbr.rel target = $region68
                $region73: #{geomgcn_net.6} parent=58 // loop_exit
                  _
              $region59: #{geomgcn_net.6} parent=43 // pred_fallthru
                _
            $region44: #{geomgcn_net.6} parent=39 // pred_fallthru
              _
            // Predicated region
            $region45: #{geomgcn_net.6} parent=39 // pred_check
              _
            $region46: #{geomgcn_net.6} parent=39 // pred_check_branch
              %607 = sbr.rel (0) target = $region48
            $region47: #{geomgcn_net.6} parent=39 // pred_region
              loop: start=0, step=1, limit=1
              $region49: #{geomgcn_net.6} parent=47 // loop_pre_header
                _
              $region50: #{geomgcn_net.6} parent=47 // loop_header
                %s610 = sphi 0, %s614
                %p611 = scmp.ge.s32.totalorder %s610, 1
                %s615 = sphi %s595, %s595
                %s616 = sphi %s601, %s601
              $region51: #{geomgcn_net.6} parent=47 // loop_header_branch
                %613 = sbr.rel (%p611) target = $region55
              $region52: #{geomgcn_net.6} parent=47 // loop_body
                %v617 = vld [vmem:[%s615] sm:$0xf]
                %618 = vst [vmem:[%s616] sm:$0xf] %v617
                %v619 = vld [vmem:[%s615 + $0x4] sm:$0xf]
                %620 = vst [vmem:[%s616 + $0x4] sm:$0xf] %v619
                %v621 = vld [vmem:[%s615 + $0x8] sm:$0xf]
                %622 = vst [vmem:[%s616 + $0x8] sm:$0xf] %v621
                %v623 = vld [vmem:[%s615 + $0xc] sm:$0xf]
                %624 = vst [vmem:[%s616 + $0xc] sm:$0xf] %v623
                %v625 = vld [vmem:[%s615 + $0x10] sm:$0xf]
                %626 = vst [vmem:[%s616 + $0x20] sm:$0xf] %v625
                %v627 = vld [vmem:[%s615 + $0x14] sm:$0xf]
                %628 = vst [vmem:[%s616 + $0x24] sm:$0xf] %v627
                %v629 = vld [vmem:[%s615 + $0x18] sm:$0xf]
                %630 = vst [vmem:[%s616 + $0x28] sm:$0xf] %v629
                %v631 = vld [vmem:[%s615 + $0x1c] sm:$0xf]
                %632 = vst [vmem:[%s616 + $0x2c] sm:$0xf] %v631
                %v633 = vld [vmem:[%s615 + $0x20] sm:$0xf]
                %634 = vst [vmem:[%s616 + $0x40] sm:$0xf] %v633
                %v635 = vld [vmem:[%s615 + $0x24] sm:$0xf]
                %636 = vst [vmem:[%s616 + $0x44] sm:$0xf] %v635
                %v637 = vld [vmem:[%s615 + $0x28] sm:$0xf]
                %638 = vst [vmem:[%s616 + $0x48] sm:$0xf] %v637
                %v639 = vld [vmem:[%s615 + $0x2c] sm:$0xf]
                %640 = vst [vmem:[%s616 + $0x4c] sm:$0xf] %v639
              $region53: #{geomgcn_net.6} parent=47 // loop_footer
                %s614 = sadd.s32 1, %s610
              $region54: #{geomgcn_net.6} parent=47 // loop_footer_branch
                %609 = sbr.rel target = $region50
              $region55: #{geomgcn_net.6} parent=47 // loop_exit
                _
            $region48: #{geomgcn_net.6} parent=39 // pred_fallthru
              _
          $region40: #{geomgcn_net.6} parent=35 // pred_fallthru
            _
          %684 = vnop
        $region36: #{geomgcn_net.6} parent=31 // pred_fallthru
          _
      $region32: #{geomgcn_net.6} parent=5 // pred_fallthru
        _
      %p685 = scmp.le.s32.totalorder 2, %s9
      // Predicated region
      $region74: #{geomgcn_net.6} parent=5 // pred_check
        %p686 = pneg %p685
      $region75: #{geomgcn_net.6} parent=5 // pred_check_branch
        %688 = sbr.rel (%p686) target = $region77
      $region76: #{geomgcn_net.6} parent=5 // pred_region
        %s689 = ssub.s32 %s9, 2
        // Predicated region
        $region78: #{geomgcn_net.6} parent=76 // pred_check
          %p690 = pneg %p111
        $region79: #{geomgcn_net.6} parent=76 // pred_check_branch
          %692 = sbr.rel (%p690) target = $region81
        $region80: #{geomgcn_net.6} parent=76 // pred_region
          %s693 = sand.u32 %s96, 1
          %s694 = sand.u32 %s96, 1
          %s695 = smul.addr %s694, 48
          %s696 = scalar_lea.vmem [#allocation2], %s695
        $region81: #{geomgcn_net.6} parent=76 // pred_fallthru
          _
      $region77: #{geomgcn_net.6} parent=5 // pred_fallthru
        _
    $region6: #{geomgcn_net.6} parent=1 // loop_footer
      %s13 = sadd.s32 1, %s9
    $region7: #{geomgcn_net.6} parent=1 // loop_footer_branch
      %8 = sbr.rel target = $region3
    $region8: #{geomgcn_net.6} parent=1 // loop_exit
      _

// kernel: geomgcn_net.5
$region0: #{geomgcn_net.5}
  #allocation0 [shape = 'u32[]', space=smem, size = 0x4, offset = 0x4, fixed_abs, tag = 'smem constant byte address 0x4 - core index']
  #allocation1 [shape = 'u32[144,128]{1,0:T(1,128)}', space=vmem, size = 0x12000, scoped, tag = 'internal scratch']
  #allocation2 [shape = 'f32[3,32,32]{2,1,0:T(8,128)}', space=vmem, size = 0xc000, scoped, tag = 'scratch operand']
  %s0 = inlined_call_operand.vmem [shape: bf16[3,64,64], index: 0, kind: input, shape index: {}]
  %s1 = inlined_call_operand.vmem [shape: bf16[3,64,32], index: 1, kind: input, shape index: {}]
  %s2 = inlined_call_operand.vmem [shape: f32[64,1], index: 2, kind: input, shape index: {}]
  %s3 = inlined_call_operand.vmem [shape: bf16[64,96], index: 3, kind: output, shape index: {}]
  %s4 = sld [smem:[#allocation0]]
  $region94: #{geomgcn_net.5} parent=0
    _
  %s6 = ssub.s32 1, %s4
  %s7 = scalar_select 0, %s6, %s4
  $region1: #{geomgcn_net.5} parent=0
    #allocation3 [shape = 'u8[49152]{0}', space=vmem, size = 0xc000, scoped, tag = 'input window, operand 0']
    loop: start=0, step=1, limit=4
    $region2: #{geomgcn_net.5} parent=1 // loop_pre_header
      _
    $region3: #{geomgcn_net.5} parent=1 // loop_header
      %s9 = sphi 0, %s13
      %p10 = scmp.ge.s32.totalorder %s9, 4
      %s16 = sphi 0, %s28
      %s17 = sphi 0, %s24
      %s18 = sphi 0, %s16
      %s19 = sphi 0, %s17
      %s20 = sphi 0, %s18
      %s21 = sphi 0, %s19
      %s33 = sphi 0, %s35
      %s36 = sphi 0, %s33
      %s37 = sphi 0, %s36
      %s53 = sphi 0, %s37
      %s59 = sphi 0, %s61
      %s62 = sphi 0, %s59
      %s63 = sphi 0, %s62
      %s79 = sphi 0, %s63
      %s85 = sphi 0, %s87
      %s88 = sphi 0, %s85
      %s89 = sphi 0, %s88
      %s105 = sphi 0, %s89
      %s111 = sphi 0, %s113
      %s114 = sphi 0, %s111
      %s115 = sphi 0, %s114
      %s131 = sphi 0, %s115
    $region4: #{geomgcn_net.5} parent=1 // loop_header_branch
      %12 = sbr.rel (%p10) target = $region8
    $region5: #{geomgcn_net.5} parent=1 // loop_body
      %s14 = ssub.s32 %s9, 1
      %s15 = ssub.s32 %s9, 2
      %s22 = sadd.s32 1, %s17
      %p23 = scmp.ge.s32.totalorder %s22, 1
      %s24 = scalar_select %p23, 0, %s22
      %s25 = sadd.s32 1, %s16
      %s26 = scalar_select %p23, %s25, %s16
      %p27 = scmp.ge.s32.totalorder %s26, 2
      %s28 = scalar_select %p27, 0, %s26
      %s29 = ssub.s32 %s16, %s28
      %s30 = ssub.s32 %s17, %s24
      %s31 = sor.u32 %s29, %s30
      %p32 = scmp.eq.s32.totalorder %s31, 0
      %s34 = sadd.s32 %s33, 1
      %s35 = scalar_select %p32, %s33, %s34
      %p38 = pneg %p32
      %p39 = scmp.eq.s32.totalorder %s9, 1
      %p40 = por %p38, %p39
      %p41 = scmp.ne.s32.totalorder %s33, %s36
      %p42 = scmp.eq.s32.totalorder %s9, 0
      %p43 = por %p41, %p42
      %p44 = scmp.ne.s32.totalorder %s33, %s36
      %p45 = scmp.eq.s32.totalorder %s14, 1
      %p46 = por %p44, %p45
      %p47 = scmp.ne.s32.totalorder %s36, %s37
      %p48 = scmp.eq.s32.totalorder %s14, 0
      %p49 = por %p47, %p48
      %p50 = scmp.ne.s32.totalorder %s36, %s37
      %p51 = scmp.eq.s32.totalorder %s15, 1
      %p52 = por %p50, %p51
      %p54 = scmp.ne.s32.totalorder %s37, %s53
      %p55 = scmp.eq.s32.totalorder %s15, 0
      %p56 = por %p54, %p55
      %s57 = ssub.s32 %s17, %s24
      %p58 = scmp.eq.s32.totalorder %s57, 0
      %s60 = sadd.s32 %s59, 1
      %s61 = scalar_select %p58, %s59, %s60
      %p64 = pneg %p58
      %p65 = scmp.eq.s32.totalorder %s9, 1
      %p66 = por %p64, %p65
      %p67 = scmp.ne.s32.totalorder %s59, %s62
      %p68 = scmp.eq.s32.totalorder %s9, 0
      %p69 = por %p67, %p68
      %p70 = scmp.ne.s32.totalorder %s59, %s62
      %p71 = scmp.eq.s32.totalorder %s14, 1
      %p72 = por %p70, %p71
      %p73 = scmp.ne.s32.totalorder %s62, %s63
      %p74 = scmp.eq.s32.totalorder %s14, 0
      %p75 = por %p73, %p74
      %p76 = scmp.ne.s32.totalorder %s62, %s63
      %p77 = scmp.eq.s32.totalorder %s15, 1
      %p78 = por %p76, %p77
      %p80 = scmp.ne.s32.totalorder %s63, %s79
      %p81 = scmp.eq.s32.totalorder %s15, 0
      %p82 = por %p80, %p81
      %s83 = ssub.s32 %s16, %s28
      %p84 = scmp.eq.s32.totalorder %s83, 0
      %s86 = sadd.s32 %s85, 1
      %s87 = scalar_select %p84, %s85, %s86
      %p90 = pneg %p84
      %p91 = scmp.eq.s32.totalorder %s9, 1
      %p92 = por %p90, %p91
      %p93 = scmp.ne.s32.totalorder %s85, %s88
      %p94 = scmp.eq.s32.totalorder %s9, 0
      %p95 = por %p93, %p94
      %p96 = scmp.ne.s32.totalorder %s85, %s88
      %p97 = scmp.eq.s32.totalorder %s14, 1
      %p98 = por %p96, %p97
      %p99 = scmp.ne.s32.totalorder %s88, %s89
      %p100 = scmp.eq.s32.totalorder %s14, 0
      %p101 = por %p99, %p100
      %p102 = scmp.ne.s32.totalorder %s88, %s89
      %p103 = scmp.eq.s32.totalorder %s15, 1
      %p104 = por %p102, %p103
      %p106 = scmp.ne.s32.totalorder %s89, %s105
      %p107 = scmp.eq.s32.totalorder %s15, 0
      %p108 = por %p106, %p107
      %s109 = ssub.s32 %s16, %s28
      %p110 = scmp.eq.s32.totalorder %s109, 0
      %s112 = sadd.s32 %s111, 1
      %s113 = scalar_select %p110, %s111, %s112
      %p116 = pneg %p110
      %p117 = scmp.eq.s32.totalorder %s9, 1
      %p118 = por %p116, %p117
      %p119 = scmp.ne.s32.totalorder %s111, %s114
      %p120 = scmp.eq.s32.totalorder %s9, 0
      %p121 = por %p119, %p120
      %p122 = scmp.ne.s32.totalorder %s111, %s114
      %p123 = scmp.eq.s32.totalorder %s14, 1
      %p124 = por %p122, %p123
      %p125 = scmp.ne.s32.totalorder %s114, %s115
      %p126 = scmp.eq.s32.totalorder %s14, 0
      %p127 = por %p125, %p126
      %p128 = scmp.ne.s32.totalorder %s114, %s115
      %p129 = scmp.eq.s32.totalorder %s15, 1
      %p130 = por %p128, %p129
      %p132 = scmp.ne.s32.totalorder %s115, %s131
      %p133 = scmp.eq.s32.totalorder %s15, 0
      %p134 = por %p132, %p133
      %p135 = scmp.le.s32.totalorder 1, %s9
      %p136 = scmp.lt.s32.totalorder %s9, 3
      %p137 = pnand %p135, %p136
      %p138 = pneg %p137
      // Predicated region
      $region9: #{geomgcn_net.5} parent=5 // pred_check
        _
      $region10: #{geomgcn_net.5} parent=5 // pred_check_branch
        %140 = sbr.rel (%p137) target = $region12
      $region11: #{geomgcn_net.5} parent=5 // pred_region
        %s141 = ssub.s32 %s9, 1
        // Predicated region
        $region13: #{geomgcn_net.5} parent=11 // pred_check
          %p142 = pneg %p75
        $region14: #{geomgcn_net.5} parent=11 // pred_check_branch
          %144 = sbr.rel (%p142) target = $region16
        $region15: #{geomgcn_net.5} parent=11 // pred_region
          %s145 = smul.u32 8, %s19
          %p146 = scmp.lt.s32.totalorder %s145, 7
          %s147 = scalar_select %p146, %s145, 7
          %s148 = smul.addr %s147, 4
          %s149 = scalar_lea.vmem %s1, %s148
          %s150 = smul.u32 8, %s19
        $region16: #{geomgcn_net.5} parent=11 // pred_fallthru
          _
      $region12: #{geomgcn_net.5} parent=5 // pred_fallthru
        _
      %p151 = scmp.lt.s32.totalorder %s9, 2
      // Predicated region
      $region17: #{geomgcn_net.5} parent=5 // pred_check
        %p152 = pneg %p151
      $region18: #{geomgcn_net.5} parent=5 // pred_check_branch
        %154 = sbr.rel (%p152) target = $region20
      $region19: #{geomgcn_net.5} parent=5 // pred_region
        // Predicated region
        $region21: #{geomgcn_net.5} parent=19 // pred_check
          %p155 = pneg %p43
        $region22: #{geomgcn_net.5} parent=19 // pred_check_branch
          %157 = sbr.rel (%p155) target = $region24
        $region23: #{geomgcn_net.5} parent=19 // pred_region
          %s158 = sand.u32 %s33, 1
          %s159 = sand.u32 %s33, 1
          %s160 = smul.addr %s159, 48
          %s161 = scalar_lea.vmem [#allocation3], %s160
          %s162 = smul.u32 4, %s16
          %s163 = sadd.s32 %s17, %s162
          %s164 = smul.addr %s163, 4
          %s165 = scalar_lea.vmem %s0, %s164
          // Predicated region
          $region25: #{geomgcn_net.5} parent=23 // pred_check
            _
          $region26: #{geomgcn_net.5} parent=23 // pred_check_branch
            %167 = sbr.rel (0) target = $region28
          $region27: #{geomgcn_net.5} parent=23 // pred_region
            // Predicated region
            $region29: #{geomgcn_net.5} parent=27 // pred_check
              _
            $region30: #{geomgcn_net.5} parent=27 // pred_check_branch
              %169 = sbr.rel target = $region32
            $region31: #{geomgcn_net.5} parent=27 // pred_region
              // Predicated region
              $region44: #{geomgcn_net.5} parent=31 // pred_check
                _
              $region45: #{geomgcn_net.5} parent=31 // pred_check_branch
                %206 = sbr.rel (0) target = $region47
              $region46: #{geomgcn_net.5} parent=31 // pred_region
                loop: start=0, step=1, limit=1
                $region48: #{geomgcn_net.5} parent=46 // loop_pre_header
                  _
                $region49: #{geomgcn_net.5} parent=46 // loop_header
                  %s208 = sphi 0, %s212
                  %p209 = scmp.ge.s32.totalorder %s208, 1
                  %s213 = sphi %s165, %s165
                  %s214 = sphi %s161, %s161
                $region50: #{geomgcn_net.5} parent=46 // loop_header_branch
                  %211 = sbr.rel (%p209) target = $region54
                $region51: #{geomgcn_net.5} parent=46 // loop_body
                  _
                $region52: #{geomgcn_net.5} parent=46 // loop_footer
                  %s212 = sadd.s32 1, %s208
                $region53: #{geomgcn_net.5} parent=46 // loop_footer_branch
                  %207 = sbr.rel target = $region49
                $region54: #{geomgcn_net.5} parent=46 // loop_exit
                  _
                loop: start=0, step=1, limit=1
                $region55: #{geomgcn_net.5} parent=46 // loop_pre_header
                  _
                $region56: #{geomgcn_net.5} parent=46 // loop_header
                  %s217 = sphi 0, %s221
                  %p218 = scmp.ge.s32.totalorder %s217, 1
                  %s222 = sphi %s165, %s165
                  %s223 = sphi %s161, %s161
                $region57: #{geomgcn_net.5} parent=46 // loop_header_branch
                  %220 = sbr.rel (%p218) target = $region61
                $region58: #{geomgcn_net.5} parent=46 // loop_body
                  %v224 = vld [vmem:[%s222] sm:$0xf]
                  %225 = vst [vmem:[%s223] sm:$0xf] %v224
                  %v226 = vld [vmem:[%s222 + $0x4] sm:$0xf]
                  %227 = vst [vmem:[%s223 + $0x4] sm:$0xf] %v226
                  %v228 = vld [vmem:[%s222 + $0x8] sm:$0xf]
                  %229 = vst [vmem:[%s223 + $0x8] sm:$0xf] %v228
                  %v230 = vld [vmem:[%s222 + $0xc] sm:$0xf]
                  %231 = vst [vmem:[%s223 + $0xc] sm:$0xf] %v230
                  %v232 = vld [vmem:[%s222 + $0x20] sm:$0xf]
                  %233 = vst [vmem:[%s223 + $0x10] sm:$0xf] %v232
                  %v234 = vld [vmem:[%s222 + $0x24] sm:$0xf]
                  %235 = vst [vmem:[%s223 + $0x14] sm:$0xf] %v234
                  %v236 = vld [vmem:[%s222 + $0x28] sm:$0xf]
                  %237 = vst [vmem:[%s223 + $0x18] sm:$0xf] %v236
                  %v238 = vld [vmem:[%s222 + $0x2c] sm:$0xf]
                  %239 = vst [vmem:[%s223 + $0x1c] sm:$0xf] %v238
                  %v240 = vld [vmem:[%s222 + $0x40] sm:$0xf]
                  %241 = vst [vmem:[%s223 + $0x20] sm:$0xf] %v240
                  %v242 = vld [vmem:[%s222 + $0x44] sm:$0xf]
                  %243 = vst [vmem:[%s223 + $0x24] sm:$0xf] %v242
                  %v244 = vld [vmem:[%s222 + $0x48] sm:$0xf]
                  %245 = vst [vmem:[%s223 + $0x28] sm:$0xf] %v244
                  %v246 = vld [vmem:[%s222 + $0x4c] sm:$0xf]
                  %247 = vst [vmem:[%s223 + $0x2c] sm:$0xf] %v246
                $region59: #{geomgcn_net.5} parent=46 // loop_footer
                  %s221 = sadd.s32 1, %s217
                $region60: #{geomgcn_net.5} parent=46 // loop_footer_branch
                  %216 = sbr.rel target = $region56
                $region61: #{geomgcn_net.5} parent=46 // loop_exit
                  _
              $region47: #{geomgcn_net.5} parent=31 // pred_fallthru
                _
            $region32: #{geomgcn_net.5} parent=27 // pred_fallthru
              _
            // Predicated region
            $region33: #{geomgcn_net.5} parent=27 // pred_check
              _
            $region34: #{geomgcn_net.5} parent=27 // pred_check_branch
              %171 = sbr.rel (0) target = $region36
            $region35: #{geomgcn_net.5} parent=27 // pred_region
              loop: start=0, step=1, limit=1
              $region37: #{geomgcn_net.5} parent=35 // loop_pre_header
                _
              $region38: #{geomgcn_net.5} parent=35 // loop_header
                %s174 = sphi 0, %s178
                %p175 = scmp.ge.s32.totalorder %s174, 1
                %s179 = sphi %s165, %s165
                %s180 = sphi %s161, %s161
              $region39: #{geomgcn_net.5} parent=35 // loop_header_branch
                %177 = sbr.rel (%p175) target = $region43
              $region40: #{geomgcn_net.5} parent=35 // loop_body
                %v181 = vld [vmem:[%s179] sm:$0xf]
                %182 = vst [vmem:[%s180] sm:$0xf] %v181
                %v183 = vld [vmem:[%s179 + $0x4] sm:$0xf]
                %184 = vst [vmem:[%s180 + $0x4] sm:$0xf] %v183
                %v185 = vld [vmem:[%s179 + $0x8] sm:$0xf]
                %186 = vst [vmem:[%s180 + $0x8] sm:$0xf] %v185
                %v187 = vld [vmem:[%s179 + $0xc] sm:$0xf]
                %188 = vst [vmem:[%s180 + $0xc] sm:$0xf] %v187
                %v189 = vld [vmem:[%s179 + $0x20] sm:$0xf]
                %190 = vst [vmem:[%s180 + $0x10] sm:$0xf] %v189
                %v191 = vld [vmem:[%s179 + $0x24] sm:$0xf]
                %192 = vst [vmem:[%s180 + $0x14] sm:$0xf] %v191
                %v193 = vld [vmem:[%s179 + $0x28] sm:$0xf]
                %194 = vst [vmem:[%s180 + $0x18] sm:$0xf] %v193
                %v195 = vld [vmem:[%s179 + $0x2c] sm:$0xf]
                %196 = vst [vmem:[%s180 + $0x1c] sm:$0xf] %v195
                %v197 = vld [vmem:[%s179 + $0x40] sm:$0xf]
                %198 = vst [vmem:[%s180 + $0x20] sm:$0xf] %v197
                %v199 = vld [vmem:[%s179 + $0x44] sm:$0xf]
                %200 = vst [vmem:[%s180 + $0x24] sm:$0xf] %v199
                %v201 = vld [vmem:[%s179 + $0x48] sm:$0xf]
                %202 = vst [vmem:[%s180 + $0x28] sm:$0xf] %v201
                %v203 = vld [vmem:[%s179 + $0x4c] sm:$0xf]
                %204 = vst [vmem:[%s180 + $0x2c] sm:$0xf] %v203
              $region41: #{geomgcn_net.5} parent=35 // loop_footer
                %s178 = sadd.s32 1, %s174
              $region42: #{geomgcn_net.5} parent=35 // loop_footer_branch
                %173 = sbr.rel target = $region38
              $region43: #{geomgcn_net.5} parent=35 // loop_exit
                _
            $region36: #{geomgcn_net.5} parent=27 // pred_fallthru
              _
          $region28: #{geomgcn_net.5} parent=23 // pred_fallthru
            _
          %248 = vnop
        $region24: #{geomgcn_net.5} parent=19 // pred_fallthru
          _
        // Predicated region
        $region62: #{geomgcn_net.5} parent=19 // pred_check
          %p249 = pneg %p95
        $region63: #{geomgcn_net.5} parent=19 // pred_check_branch
          %251 = sbr.rel (%p249) target = $region65
        $region64: #{geomgcn_net.5} parent=19 // pred_region
          %s252 = smul.u32 4, %s16
          %p253 = scmp.lt.s32.totalorder %s252, 7
          %s254 = scalar_select %p253, %s252, 7
          %s255 = smul.addr %s254, 8
          %s256 = scalar_lea.vmem %s2, %s255
          %s257 = smul.u32 4, %s16
        $region65: #{geomgcn_net.5} parent=19 // pred_fallthru
          _
      $region20: #{geomgcn_net.5} parent=5 // pred_fallthru
        _
      %p258 = scmp.le.s32.totalorder 1, %s9
      %p259 = scmp.lt.s32.totalorder %s9, 3
      %p260 = pnand %p258, %p259
      %p261 = pneg %p260
      // Predicated region
      $region66: #{geomgcn_net.5} parent=5 // pred_check
        _
      $region67: #{geomgcn_net.5} parent=5 // pred_check_branch
        %263 = sbr.rel (%p260) target = $region69
      $region68: #{geomgcn_net.5} parent=5 // pred_region
        %s264 = ssub.s32 %s9, 1
        %s265 = sand.u32 %s36, 1
        %s266 = sand.u32 %s36, 1
        %s267 = smul.addr %s266, 48
        %s268 = scalar_lea.vmem [#allocation3], %s267
        // Predicated region
        $region70: #{geomgcn_net.5} parent=68 // pred_check
          %p269 = pneg %p49
        $region71: #{geomgcn_net.5} parent=68 // pred_check_branch
          %271 = sbr.rel (%p269) target = $region73
        $region72: #{geomgcn_net.5} parent=68 // pred_region
          _
        $region73: #{geomgcn_net.5} parent=68 // pred_fallthru
          _
        %s272 = sand.u32 %s36, 1
        %s273 = sand.u32 %s36, 1
        %s274 = smul.addr %s273, 48
        %s275 = scalar_lea.vmem [#allocation3], %s274
        %p276 = pneg %p49
        %p277 = pneg %p46
        %s278 = smul.u32 8, %s19
        %p279 = scmp.lt.s32.totalorder %s278, 7
        %s280 = scalar_select %p279, %s278, 7
        %s281 = smul.addr %s280, 4
        %s282 = scalar_lea.vmem %s1, %s281
        %p283 = pneg %p75
        %p284 = pneg %p72
        %s285 = smul.u32 4, %s18
        %p286 = scmp.lt.s32.totalorder %s285, 7
        %s287 = scalar_select %p286, %s285, 7
        %s288 = smul.addr %s287, 8
        %s289 = scalar_lea.vmem %s2, %s288
        %p290 = pneg %p101
        %p291 = pneg %p98
        %p292 = pneg %p127
        %p293 = pneg %p124
        %s294 = smul.u32 4, %s18
        %p295 = scmp.lt.s32.totalorder %s294, 7
        %s296 = scalar_select %p295, %s294, 7
        %s297 = smul.addr %s296, 4
        %s298 = scalar_lea.vmem %s3, %s297
        %s299 = smul.u32 4, %s18
        %s300 = smul.u32 8, %s19
        %p301 = scmp.lt.s32.totalorder %s300, 7
        %s302 = scalar_select %p301, %s300, 7
        %s303 = smul.addr %s302, 4
        %s304 = scalar_lea.vmem %s1, %s303
        %s305 = smul.u32 8, %s19
        %s306 = smul.u32 4, %s18
        %p307 = scmp.lt.s32.totalorder %s306, 7
        %s308 = scalar_select %p307, %s306, 7
        %s309 = smul.addr %s308, 8
        %s310 = scalar_lea.vmem %s2, %s309
        %s311 = smul.u32 4, %s18
        %s312 = smul.u32 4, %s18
        %p313 = scmp.lt.s32.totalorder %s312, 7
        %s314 = scalar_select %p313, %s312, 7
        %s315 = smul.addr %s314, 4
        %s316 = scalar_lea.vmem %s3, %s315
        %s317 = smul.u32 4, %s18
        %p319 = scmp.eq.s32.totalorder %s19, 0
        // Predicated region
        $region74: #{geomgcn_net.5} parent=68 // pred_check
          %p320 = pneg %p319
        $region75: #{geomgcn_net.5} parent=68 // pred_check_branch
          %322 = sbr.rel (%p320) target = $region77
        $region76: #{geomgcn_net.5} parent=68 // pred_region
          %vm323 = vcmask 261120
          %324 = vst.msk [vmem:[#allocation2] sm:$0xff] %vm323, 0.0
          %325 = vst.msk [vmem:[#allocation2 + $0x8] sm:$0xff] %vm323, 0.0
          %326 = vst.msk [vmem:[#allocation2 + $0x10] sm:$0xff] %vm323, 0.0
          %327 = vst.msk [vmem:[#allocation2 + $0x18] sm:$0xff] %vm323, 0.0
          %328 = vst.msk [vmem:[#allocation2 + $0x20] sm:$0xff] %vm323, 0.0
          %329 = vst.msk [vmem:[#allocation2 + $0x28] sm:$0xff] %vm323, 0.0
          %330 = vst.msk [vmem:[#allocation2 + $0x30] sm:$0xff] %vm323, 0.0
          %331 = vst.msk [vmem:[#allocation2 + $0x38] sm:$0xff] %vm323, 0.0
          %332 = vst.msk [vmem:[#allocation2 + $0x40] sm:$0xff] %vm323, 0.0
          %333 = vst.msk [vmem:[#allocation2 + $0x48] sm:$0xff] %vm323, 0.0
          %334 = vst.msk [vmem:[#allocation2 + $0x50] sm:$0xff] %vm323, 0.0
          %335 = vst.msk [vmem:[#allocation2 + $0x58] sm:$0xff] %vm323, 0.0
        $region77: #{geomgcn_net.5} parent=68 // pred_fallthru
          _
        %v336 = vld [vmem:[#allocation2] sm:$0xff]
        %v337 = vld [vmem:[#allocation2 + $0x8] sm:$0xff]
        %v338 = vld [vmem:[#allocation2 + $0x10] sm:$0xff]
        %v339 = vld [vmem:[#allocation2 + $0x18] sm:$0xff]
        %v340 = vld [vmem:[%s268] sm:$0xf]
        %v341 = vld [vmem:[%s268 + $0x4] sm:$0xf]
        %v342 = vld [vmem:[%s268 + $0x8] sm:$0xf]
        %v343 = vld [vmem:[%s268 + $0xc] sm:$0xf]
        %v344 = vld [vmem:[%s304] sm:$0xf]
        %v345 = vld [vmem:[%s304 + $0x4] sm:$0xf]
        %v346 = vld [vmem:[%s304 + $0x8] sm:$0xf]
        %v347 = vld [vmem:[%s304 + $0xc] sm:$0xf]
        %v348 = vld [vmem:[%s304 + $0x10] sm:$0xf]
        %v349 = vld [vmem:[%s304 + $0x14] sm:$0xf]
        %v350 = vld [vmem:[%s304 + $0x18] sm:$0xf]
        %v351 = vld [vmem:[%s304 + $0x1c] sm:$0xf]
        %v356 = vunpack.c.l.b16 %v340
        %v357 = vunpack.c.l.b16 %v341
        %v358 = vunpack.c.l.b16 %v342
        %v359 = vunpack.c.l.b16 %v343
        %v360 = vpack.c.b16 %v357, %v356
        %v361 = vpack.c.b16 %v359, %v358
        %v370 = vunpack.c.l.b16 %v344
        %v371 = vunpack.c.l.b16 %v345
        %v372 = vunpack.c.l.b16 %v346
        %v373 = vunpack.c.l.b16 %v347
        %v374 = vunpack.c.l.b16 %v348
        %v375 = vunpack.c.l.b16 %v349
        %v376 = vunpack.c.l.b16 %v350
        %v377 = vunpack.c.l.b16 %v351
        %v378 = vpack.c.b16 %v371, %v370
        %v379 = vpack.c.b16 %v373, %v372
        %v380 = vpack.c.b16 %v375, %v374
        %v381 = vpack.c.b16 %v377, %v376
        %vm386 = vcmask 523264
        %v388 = vsel %vm386, %v360, 0
        %v391 = vsel %vm386, %v361, 0
        %393 = vmatprep.subr.bf16.mxu0 0
        %394 = vmatpush1.bf16.msra.mxu0 %v378
        %395 = vmatprep.subr.bf16.mxu0 0
        %396 = vmatpush1.bf16.msra.mxu0 %v379
        %397 = vmatprep.subr.bf16.mxu0 0
        %398 = vmatpush1.bf16.msra.mxu0 %v380
        %399 = vmatprep.subr.bf16.mxu0 0
        %400 = vmatpush1.bf16.msra.mxu0 %v381
        %401 = vmatprep.subr.bf16.mxu0 0
        %402 = vmatpush1.bf16.msra.mxu0 0
        %403 = vmatprep.subr.bf16.mxu0 0
        %404 = vmatpush1.bf16.msra.mxu0 0
        %405 = vmatprep.subr.bf16.mxu0 0
        %406 = vmatpush1.bf16.msra.mxu0 0
        %407 = vmatprep.subr.bf16.mxu0 0
        %408 = vmatpush1.bf16.msra.mxu0 0
        %409 = vmatprep.subr.bf16.mxu0 0
        %410 = vmatpush1.bf16.msra.mxu0 0
        %411 = vmatprep.subr.bf16.mxu0 0
        %412 = vmatpush1.bf16.msra.mxu0 0
        %413 = vmatprep.subr.bf16.mxu0 0
        %414 = vmatpush1.bf16.msra.mxu0 0
        %415 = vmatprep.subr.bf16.mxu0 0
        %416 = vmatpush1.bf16.msra.mxu0 0
        %417 = vmatprep.subr.bf16.mxu0 0
        %418 = vmatpush1.bf16.msra.mxu0 0
        %419 = vmatprep.subr.bf16.mxu0 0
        %420 = vmatpush1.bf16.msra.mxu0 0
        %421 = vmatprep.subr.bf16.mxu0 0
        %422 = vmatpush1.bf16.msra.mxu0 0
        %423 = vmatprep.subr.bf16.mxu0 0
        %424 = vmatpush1.bf16.msra.mxu0 0
        %425 = vmatprep.mubr.bf16.mxu0 0
        %426 = vmatmul.mubr.bf16.gmra.mrb[0].mxu0 %v388
        %v427 = vpop.f32.mrb[0].mxu0
        %v428 = vadd.f32 0.0, %v427
        %v429 = vpop.f32.mrb[0].mxu0
        %v430 = vpop.f32.mrb[0].mxu0
        %v431 = vadd.f32 0.0, %v430
        %v432 = vpop.f32.mrb[0].mxu0
        %433 = vmatprep.mubr.bf16.mxu0 0
        %434 = vmatmul.mubr.bf16.gmra.mrb[0].mxu0 %v391
        %v435 = vpop.f32.mrb[0].mxu0
        %v436 = vadd.f32 0.0, %v435
        %v437 = vpop.f32.mrb[0].mxu0
        %v438 = vpop.f32.mrb[0].mxu0
        %v439 = vadd.f32 0.0, %v438
        %v440 = vpop.f32.mrb[0].mxu0
        %441 = vdwg.mxu0
        %v442 = vadd.f32 %v336, %v428
        %v443 = vadd.f32 %v337, %v431
        %v444 = vadd.f32 %v338, %v436
        %v445 = vadd.f32 %v339, %v439
        %vm446 = vcmask 261120
        %447 = vst.msk [vmem:[#allocation2] sm:$0xff] %vm446, %v442
        %448 = vst.msk [vmem:[#allocation2 + $0x8] sm:$0xff] %vm446, %v443
        %449 = vst.msk [vmem:[#allocation2 + $0x10] sm:$0xff] %vm446, %v444
        %450 = vst.msk [vmem:[#allocation2 + $0x18] sm:$0xff] %vm446, %v445
        %s451 = scalar_lea.vmem [#allocation2], 32
        %v452 = vld [vmem:[%s451] sm:$0xff]
        %v453 = vld [vmem:[%s451 + $0x8] sm:$0xff]
        %v454 = vld [vmem:[%s451 + $0x10] sm:$0xff]
        %v455 = vld [vmem:[%s451 + $0x18] sm:$0xff]
        %s456 = scalar_lea.vmem %s268, 16 [#allocation3]
        %v457 = vld [vmem:[%s456] sm:$0xf]
        %v458 = vld [vmem:[%s456 + $0x4] sm:$0xf]
        %v459 = vld [vmem:[%s456 + $0x8] sm:$0xf]
        %v460 = vld [vmem:[%s456 + $0xc] sm:$0xf]
        %s461 = scalar_lea.vmem %s304, 32
        %v462 = vld [vmem:[%s461] sm:$0xf]
        %v463 = vld [vmem:[%s461 + $0x4] sm:$0xf]
        %v464 = vld [vmem:[%s461 + $0x8] sm:$0xf]
        %v465 = vld [vmem:[%s461 + $0xc] sm:$0xf]
        %v466 = vld [vmem:[%s461 + $0x10] sm:$0xf]
        %v467 = vld [vmem:[%s461 + $0x14] sm:$0xf]
        %v468 = vld [vmem:[%s461 + $0x18] sm:$0xf]
        %v469 = vld [vmem:[%s461 + $0x1c] sm:$0xf]
        %v474 = vunpack.c.l.b16 %v457
        %v475 = vunpack.c.l.b16 %v458
        %v476 = vunpack.c.l.b16 %v459
        %v477 = vunpack.c.l.b16 %v460
        %v478 = vpack.c.b16 %v475, %v474
        %v479 = vpack.c.b16 %v477, %v476
        %v488 = vunpack.c.l.b16 %v462
        %v489 = vunpack.c.l.b16 %v463
        %v490 = vunpack.c.l.b16 %v464
        %v491 = vunpack.c.l.b16 %v465
        %v492 = vunpack.c.l.b16 %v466
        %v493 = vunpack.c.l.b16 %v467
        %v494 = vunpack.c.l.b16 %v468
        %v495 = vunpack.c.l.b16 %v469
        %v496 = vpack.c.b16 %v489, %v488
        %v497 = vpack.c.b16 %v491, %v490
        %v498 = vpack.c.b16 %v493, %v492
        %v499 = vpack.c.b16 %v495, %v494
        %v505 = vsel %vm386, %v478, 0
        %v508 = vsel %vm386, %v479, 0
        %510 = vmatprep.subr.bf16.mxu0 0
        %511 = vmatpush1.bf16.msra.mxu0 %v496
        %512 = vmatprep.subr.bf16.mxu0 0
        %513 = vmatpush1.bf16.msra.mxu0 %v497
        %514 = vmatprep.subr.bf16.mxu0 0
        %515 = vmatpush1.bf16.msra.mxu0 %v498
        %516 = vmatprep.subr.bf16.mxu0 0
        %517 = vmatpush1.bf16.msra.mxu0 %v499
        %518 = vmatprep.subr.bf16.mxu0 0
        %519 = vmatpush1.bf16.msra.mxu0 0
        %520 = vmatprep.subr.bf16.mxu0 0
        %521 = vmatpush1.bf16.msra.mxu0 0
        %522 = vmatprep.subr.bf16.mxu0 0
        %523 = vmatpush1.bf16.msra.mxu0 0
        %524 = vmatprep.subr.bf16.mxu0 0
        %525 = vmatpush1.bf16.msra.mxu0 0
        %526 = vmatprep.subr.bf16.mxu0 0
        %527 = vmatpush1.bf16.msra.mxu0 0
        %528 = vmatprep.subr.bf16.mxu0 0
        %529 = vmatpush1.bf16.msra.mxu0 0
        %530 = vmatprep.subr.bf16.mxu0 0
        %531 = vmatpush1.bf16.msra.mxu0 0
        %532 = vmatprep.subr.bf16.mxu0 0
        %533 = vmatpush1.bf16.msra.mxu0 0
        %534 = vmatprep.subr.bf16.mxu0 0
        %535 = vmatpush1.bf16.msra.mxu0 0
        %536 = vmatprep.subr.bf16.mxu0 0
        %537 = vmatpush1.bf16.msra.mxu0 0
        %538 = vmatprep.subr.bf16.mxu0 0
        %539 = vmatpush1.bf16.msra.mxu0 0
        %540 = vmatprep.subr.bf16.mxu0 0
        %541 = vmatpush1.bf16.msra.mxu0 0
        %542 = vmatprep.mubr.bf16.mxu0 0
        %543 = vmatmul.mubr.bf16.gmra.mrb[0].mxu0 %v505
        %v544 = vpop.f32.mrb[0].mxu0
        %v545 = vadd.f32 0.0, %v544
        %v546 = vpop.f32.mrb[0].mxu0
        %v547 = vpop.f32.mrb[0].mxu0
        %v548 = vadd.f32 0.0, %v547
        %v549 = vpop.f32.mrb[0].mxu0
        %550 = vmatprep.mubr.bf16.mxu0 0
        %551 = vmatmul.mubr.bf16.gmra.mrb[0].mxu0 %v508
        %v552 = vpop.f32.mrb[0].mxu0
        %v553 = vadd.f32 0.0, %v552
        %v554 = vpop.f32.mrb[0].mxu0
        %v555 = vpop.f32.mrb[0].mxu0
        %v556 = vadd.f32 0.0, %v555
        %v557 = vpop.f32.mrb[0].mxu0
        %558 = vdwg.mxu0
        %v559 = vadd.f32 %v452, %v545
        %v560 = vadd.f32 %v453, %v548
        %v561 = vadd.f32 %v454, %v553
        %v562 = vadd.f32 %v455, %v556
        %563 = vst.msk [vmem:[%s451] sm:$0xff] %vm446, %v559
        %564 = vst.msk [vmem:[%s451 + $0x8] sm:$0xff] %vm446, %v560
        %565 = vst.msk [vmem:[%s451 + $0x10] sm:$0xff] %vm446, %v561
        %566 = vst.msk [vmem:[%s451 + $0x18] sm:$0xff] %vm446, %v562
        %s567 = scalar_lea.vmem [#allocation2], 64
        %v568 = vld [vmem:[%s567] sm:$0xff]
        %v569 = vld [vmem:[%s567 + $0x8] sm:$0xff]
        %v570 = vld [vmem:[%s567 + $0x10] sm:$0xff]
        %v571 = vld [vmem:[%s567 + $0x18] sm:$0xff]
        %s572 = scalar_lea.vmem %s268, 32 [#allocation3]
        %v573 = vld [vmem:[%s572] sm:$0xf]
        %v574 = vld [vmem:[%s572 + $0x4] sm:$0xf]
        %v575 = vld [vmem:[%s572 + $0x8] sm:$0xf]
        %v576 = vld [vmem:[%s572 + $0xc] sm:$0xf]
        %s577 = scalar_lea.vmem %s304, 64
        %v578 = vld [vmem:[%s577] sm:$0xf]
        %v579 = vld [vmem:[%s577 + $0x4] sm:$0xf]
        %v580 = vld [vmem:[%s577 + $0x8] sm:$0xf]
        %v581 = vld [vmem:[%s577 + $0xc] sm:$0xf]
        %v582 = vld [vmem:[%s577 + $0x10] sm:$0xf]
        %v583 = vld [vmem:[%s577 + $0x14] sm:$0xf]
        %v584 = vld [vmem:[%s577 + $0x18] sm:$0xf]
        %v585 = vld [vmem:[%s577 + $0x1c] sm:$0xf]
        %v590 = vunpack.c.l.b16 %v573
        %v591 = vunpack.c.l.b16 %v574
        %v592 = vunpack.c.l.b16 %v575
        %v593 = vunpack.c.l.b16 %v576
        %v594 = vpack.c.b16 %v591, %v590
        %v595 = vpack.c.b16 %v593, %v592
        %v604 = vunpack.c.l.b16 %v578
        %v605 = vunpack.c.l.b16 %v579
        %v606 = vunpack.c.l.b16 %v580
        %v607 = vunpack.c.l.b16 %v581
        %v608 = vunpack.c.l.b16 %v582
        %v609 = vunpack.c.l.b16 %v583
        %v610 = vunpack.c.l.b16 %v584
        %v611 = vunpack.c.l.b16 %v585
        %v612 = vpack.c.b16 %v605, %v604
        %v613 = vpack.c.b16 %v607, %v606
        %v614 = vpack.c.b16 %v609, %v608
        %v615 = vpack.c.b16 %v611, %v610
        %v621 = vsel %vm386, %v594, 0
        %v624 = vsel %vm386, %v595, 0
        %626 = vmatprep.subr.bf16.mxu0 0
        %627 = vmatpush1.bf16.msra.mxu0 %v612
        %628 = vmatprep.subr.bf16.mxu0 0
        %629 = vmatpush1.bf16.msra.mxu0 %v613
        %630 = vmatprep.subr.bf16.mxu0 0
        %631 = vmatpush1.bf16.msra.mxu0 %v614
        %632 = vmatprep.subr.bf16.mxu0 0
        %633 = vmatpush1.bf16.msra.mxu0 %v615
        %634 = vmatprep.subr.bf16.mxu0 0
        %635 = vmatpush1.bf16.msra.mxu0 0
        %636 = vmatprep.subr.bf16.mxu0 0
        %637 = vmatpush1.bf16.msra.mxu0 0
        %638 = vmatprep.subr.bf16.mxu0 0
        %639 = vmatpush1.bf16.msra.mxu0 0
        %640 = vmatprep.subr.bf16.mxu0 0
        %641 = vmatpush1.bf16.msra.mxu0 0
        %642 = vmatprep.subr.bf16.mxu0 0
        %643 = vmatpush1.bf16.msra.mxu0 0
        %644 = vmatprep.subr.bf16.mxu0 0
        %645 = vmatpush1.bf16.msra.mxu0 0
        %646 = vmatprep.subr.bf16.mxu0 0
        %647 = vmatpush1.bf16.msra.mxu0 0
        %648 = vmatprep.subr.bf16.mxu0 0
        %649 = vmatpush1.bf16.msra.mxu0 0
        %650 = vmatprep.subr.bf16.mxu0 0
        %651 = vmatpush1.bf16.msra.mxu0 0
        %652 = vmatprep.subr.bf16.mxu0 0
        %653 = vmatpush1.bf16.msra.mxu0 0
        %654 = vmatprep.subr.bf16.mxu0 0
        %655 = vmatpush1.bf16.msra.mxu0 0
        %656 = vmatprep.subr.bf16.mxu0 0
        %657 = vmatpush1.bf16.msra.mxu0 0
        %658 = vmatprep.mubr.bf16.mxu0 0
        %659 = vmatmul.mubr.bf16.gmra.mrb[0].mxu0 %v621
        %v660 = vpop.f32.mrb[0].mxu0
        %v661 = vadd.f32 0.0, %v660
        %v662 = vpop.f32.mrb[0].mxu0
        %v663 = vpop.f32.mrb[0].mxu0
        %v664 = vadd.f32 0.0, %v663
        %v665 = vpop.f32.mrb[0].mxu0
        %666 = vmatprep.mubr.bf16.mxu0 0
        %667 = vmatmul.mubr.bf16.gmra.mrb[0].mxu0 %v624
        %v668 = vpop.f32.mrb[0].mxu0
        %v669 = vadd.f32 0.0, %v668
        %v670 = vpop.f32.mrb[0].mxu0
        %v671 = vpop.f32.mrb[0].mxu0
        %v672 = vadd.f32 0.0, %v671
        %v673 = vpop.f32.mrb[0].mxu0
        %674 = vdwg.mxu0
        %v675 = vadd.f32 %v568, %v661
        %v676 = vadd.f32 %v569, %v664
        %v677 = vadd.f32 %v570, %v669
        %v678 = vadd.f32 %v571, %v672
        %679 = vst.msk [vmem:[%s567] sm:$0xff] %vm446, %v675
        %680 = vst.msk [vmem:[%s567 + $0x8] sm:$0xff] %vm446, %v676
        %681 = vst.msk [vmem:[%s567 + $0x10] sm:$0xff] %vm446, %v677
        %682 = vst.msk [vmem:[%s567 + $0x18] sm:$0xff] %vm446, %v678
        // Predicated region
        $region78: #{geomgcn_net.5} parent=68 // pred_check
          %p683 = pneg %p319
        $region79: #{geomgcn_net.5} parent=68 // pred_check_branch
          %685 = sbr.rel (%p683) target = $region81
        $region80: #{geomgcn_net.5} parent=68 // pred_region
          %v686 = vld [vmem:[%s310] sm:$0xff]
          %v687 = vld [vmem:[%s310 + $0x8] sm:$0xff]
          %v688 = vld [vmem:[%s310 + $0x10] sm:$0xff]
          %v689 = vld [vmem:[%s310 + $0x18] sm:$0xff]
          %v690 = vld [vmem:[#allocation2] sm:$0xff]
          %v691 = vld [vmem:[#allocation2 + $0x8] sm:$0xff]
          %v692 = vld [vmem:[#allocation2 + $0x10] sm:$0xff]
          %v693 = vld [vmem:[#allocation2 + $0x18] sm:$0xff]
          %695 = vset.pattern.permute.xlu0 0
          %696 = vperm.xlu0 %695, %v686
          %v697 = vpop.permute.xlu0 %696
          %700 = vset.pattern.permute.xlu0 0
          %701 = vperm.xlu0 %700, %v687
          %v702 = vpop.permute.xlu0 %701
          %705 = vset.pattern.permute.xlu0 0
          %706 = vperm.xlu0 %705, %v688
          %v707 = vpop.permute.xlu0 %706
          %710 = vset.pattern.permute.xlu0 0
          %711 = vperm.xlu0 %710, %v689
          %v712 = vpop.permute.xlu0 %711
          %v714 = vmul.f32 %v690, %v697
          %v715 = vmul.f32 %v691, %v702
          %v716 = vmul.f32 %v692, %v707
          %v717 = vmul.f32 %v693, %v712
          %v718 = vmax.f32 %v714, 0.0
          %v719 = vmax.f32 %v715, 0.0
          %v720 = vmax.f32 %v716, 0.0
          %v721 = vmax.f32 %v717, 0.0
          %v722 = vpack.c.bf16 %v719, %v718
          %v723 = vpack.c.bf16 %v721, %v720
          %v726 = vunpack.c.l.b16 %v722
          %v727 = vunpack.c.h.b16 %v722
          %v728 = vunpack.c.l.b16 %v723
          %v729 = vunpack.c.h.b16 %v723
          %v730 = vpack.c.b16 %v726, %v726
          %v731 = vpack.c.b16 %v727, %v727
          %v732 = vpack.c.b16 %v728, %v728
          %v733 = vpack.c.b16 %v729, %v729
          %vm738 = vcmask 125952
          %739 = vst.msk [vmem:[%s316] sm:$0xf] %vm738, %v730
          %740 = vst.msk [vmem:[%s316 + $0x4] sm:$0xf] %vm738, %v731
          %741 = vst.msk [vmem:[%s316 + $0x8] sm:$0xf] %vm738, %v732
          %742 = vst.msk [vmem:[%s316 + $0xc] sm:$0xf] %vm738, %v733
          %743 = vrot.lane.b32.xlu0 %v730, 32
          %v744 = vpop.permute.xlu0 %743
          %745 = vrot.lane.b32.xlu0 %v731, 32
          %v746 = vpop.permute.xlu0 %745
          %747 = vrot.lane.b32.xlu0 %v732, 32
          %v748 = vpop.permute.xlu0 %747
          %749 = vrot.lane.b32.xlu0 %v733, 32
          %v750 = vpop.permute.xlu0 %749
          %vm755 = vcmask 519552
          %756 = vst.msk [vmem:[%s316] sm:$0xf] %vm755, %v744
          %757 = vst.msk [vmem:[%s316 + $0x4] sm:$0xf] %vm755, %v746
          %758 = vst.msk [vmem:[%s316 + $0x8] sm:$0xf] %vm755, %v748
          %759 = vst.msk [vmem:[%s316 + $0xc] sm:$0xf] %vm755, %v750
          %v760 = vld [vmem:[%s451] sm:$0xff]
          %v761 = vld [vmem:[%s451 + $0x8] sm:$0xff]
          %v762 = vld [vmem:[%s451 + $0x10] sm:$0xff]
          %v763 = vld [vmem:[%s451 + $0x18] sm:$0xff]
          %v764 = vmul.f32 %v760, %v697
          %v765 = vmul.f32 %v761, %v702
          %v766 = vmul.f32 %v762, %v707
          %v767 = vmul.f32 %v763, %v712
          %v768 = vmax.f32 %v764, 0.0
          %v769 = vmax.f32 %v765, 0.0
          %v770 = vmax.f32 %v766, 0.0
          %v771 = vmax.f32 %v767, 0.0
          %v772 = vpack.c.bf16 %v769, %v768
          %v773 = vpack.c.bf16 %v771, %v770
          %v776 = vunpack.c.l.b16 %v772
          %v777 = vunpack.c.h.b16 %v772
          %v778 = vunpack.c.l.b16 %v773
          %v779 = vunpack.c.h.b16 %v773
          %v780 = vpack.c.b16 %v776, %v776
          %v781 = vpack.c.b16 %v777, %v777
          %v782 = vpack.c.b16 %v778, %v778
          %v783 = vpack.c.b16 %v779, %v779
          %784 = vrot.lane.b32.xlu0 %v780, 16
          %v785 = vpop.permute.xlu0 %784
          %786 = vrot.lane.b32.xlu0 %v781, 16
          %v787 = vpop.permute.xlu0 %786
          %788 = vrot.lane.b32.xlu0 %v782, 16
          %v789 = vpop.permute.xlu0 %788
          %790 = vrot.lane.b32.xlu0 %v783, 16
          %v791 = vpop.permute.xlu0 %790
          %vm796 = vcmask 257152
          %797 = vst.msk [vmem:[%s316] sm:$0xf] %vm796, %v785
          %798 = vst.msk [vmem:[%s316 + $0x4] sm:$0xf] %vm796, %v787
          %799 = vst.msk [vmem:[%s316 + $0x8] sm:$0xf] %vm796, %v789
          %800 = vst.msk [vmem:[%s316 + $0xc] sm:$0xf] %vm796, %v791
          %801 = vrot.lane.b32.xlu0 %v780, 48
          %v802 = vpop.permute.xlu0 %801
          %803 = vrot.lane.b32.xlu0 %v781, 48
          %v804 = vpop.permute.xlu0 %803
          %805 = vrot.lane.b32.xlu0 %v782, 48
          %v806 = vpop.permute.xlu0 %805
          %807 = vrot.lane.b32.xlu0 %v783, 48
          %v808 = vpop.permute.xlu0 %807
          %vm813 = vcmask 650752
          %814 = vst.msk [vmem:[%s316] sm:$0xf] %vm813, %v802
          %815 = vst.msk [vmem:[%s316 + $0x4] sm:$0xf] %vm813, %v804
          %816 = vst.msk [vmem:[%s316 + $0x8] sm:$0xf] %vm813, %v806
          %817 = vst.msk [vmem:[%s316 + $0xc] sm:$0xf] %vm813, %v808
          %v818 = vld [vmem:[%s567] sm:$0xff]
          %v819 = vld [vmem:[%s567 + $0x8] sm:$0xff]
          %v820 = vld [vmem:[%s567 + $0x10] sm:$0xff]
          %v821 = vld [vmem:[%s567 + $0x18] sm:$0xff]
          %v822 = vmul.f32 %v818, %v697
          %v823 = vmul.f32 %v819, %v702
          %v824 = vmul.f32 %v820, %v707
          %v825 = vmul.f32 %v821, %v712
          %v826 = vmax.f32 %v822, 0.0
          %v827 = vmax.f32 %v823, 0.0
          %v828 = vmax.f32 %v824, 0.0
          %v829 = vmax.f32 %v825, 0.0
          %v830 = vpack.c.bf16 %v827, %v826
          %v831 = vpack.c.bf16 %v829, %v828
          %v834 = vunpack.c.l.b16 %v830
          %v835 = vunpack.c.h.b16 %v830
          %v836 = vunpack.c.l.b16 %v831
          %v837 = vunpack.c.h.b16 %v831
          %v838 = vpack.c.b16 %v834, %v834
          %v839 = vpack.c.b16 %v835, %v835
          %v840 = vpack.c.b16 %v836, %v836
          %v841 = vpack.c.b16 %v837, %v837
          %842 = vrot.lane.b32.xlu0 %v838, 32
          %v843 = vpop.permute.xlu0 %842
          %844 = vrot.lane.b32.xlu0 %v839, 32
          %v845 = vpop.permute.xlu0 %844
          %846 = vrot.lane.b32.xlu0 %v840, 32
          %v847 = vpop.permute.xlu0 %846
          %848 = vrot.lane.b32.xlu0 %v841, 32
          %v849 = vpop.permute.xlu0 %848
          %vm854 = vcmask 388352
          %855 = vst.msk [vmem:[%s316] sm:$0xf] %vm854, %v843
          %856 = vst.msk [vmem:[%s316 + $0x4] sm:$0xf] %vm854, %v845
          %857 = vst.msk [vmem:[%s316 + $0x8] sm:$0xf] %vm854, %v847
          %858 = vst.msk [vmem:[%s316 + $0xc] sm:$0xf] %vm854, %v849
          %859 = vrot.lane.b32.xlu0 %v838, 64
          %v860 = vpop.permute.xlu0 %859
          %861 = vrot.lane.b32.xlu0 %v839, 64
          %v862 = vpop.permute.xlu0 %861
          %863 = vrot.lane.b32.xlu0 %v840, 64
          %v864 = vpop.permute.xlu0 %863
          %865 = vrot.lane.b32.xlu0 %v841, 64
          %v866 = vpop.permute.xlu0 %865
          %vm871 = vcmask 781952
          %872 = vst.msk [vmem:[%s316] sm:$0xf] %vm871, %v860
          %873 = vst.msk [vmem:[%s316 + $0x4] sm:$0xf] %vm871, %v862
          %874 = vst.msk [vmem:[%s316 + $0x8] sm:$0xf] %vm871, %v864
          %875 = vst.msk [vmem:[%s316 + $0xc] sm:$0xf] %vm871, %v866
        $region81: #{geomgcn_net.5} parent=68 // pred_fallthru
          _
        %s876 = smul.u32 4, %s18
        %p877 = scmp.lt.s32.totalorder %s876, 7
        %s878 = scalar_select %p877, %s876, 7
        %s879 = smul.addr %s878, 4
        %s880 = scalar_lea.vmem %s3, %s879
        // Predicated region
        $region82: #{geomgcn_net.5} parent=68 // pred_check
          %p881 = pneg %p124
        $region83: #{geomgcn_net.5} parent=68 // pred_check_branch
          %883 = sbr.rel (%p881) target = $region85
        $region84: #{geomgcn_net.5} parent=68 // pred_region
          %s884 = smul.u32 4, %s18
        $region85: #{geomgcn_net.5} parent=68 // pred_fallthru
          _
      $region69: #{geomgcn_net.5} parent=5 // pred_fallthru
        _
      %p885 = scmp.le.s32.totalorder 2, %s9
      // Predicated region
      $region86: #{geomgcn_net.5} parent=5 // pred_check
        %p886 = pneg %p885
      $region87: #{geomgcn_net.5} parent=5 // pred_check_branch
        %888 = sbr.rel (%p886) target = $region89
      $region88: #{geomgcn_net.5} parent=5 // pred_region
        %s889 = ssub.s32 %s9, 2
        // Predicated region
        $region90: #{geomgcn_net.5} parent=88 // pred_check
          %p890 = pneg %p130
        $region91: #{geomgcn_net.5} parent=88 // pred_check_branch
          %892 = sbr.rel (%p890) target = $region93
        $region92: #{geomgcn_net.5} parent=88 // pred_region
          %s893 = smul.u32 4, %s20
          %p894 = scmp.lt.s32.totalorder %s893, 7
          %s895 = scalar_select %p894, %s893, 7
          %s896 = smul.addr %s895, 4
          %s897 = scalar_lea.vmem %s3, %s896
        $region93: #{geomgcn_net.5} parent=88 // pred_fallthru
          _
      $region89: #{geomgcn_net.5} parent=5 // pred_fallthru
        _
    $region6: #{geomgcn_net.5} parent=1 // loop_footer
      %s13 = sadd.s32 1, %s9
    $region7: #{geomgcn_net.5} parent=1 // loop_footer_branch
      %8 = sbr.rel target = $region3
    $region8: #{geomgcn_net.5} parent=1 // loop_exit
      _

// kernel: geomgcn_net.7
$region0: #{geomgcn_net.7}
  #allocation0 [shape = 'u32[]', space=smem, size = 0x4, offset = 0x4, fixed_abs, tag = 'smem constant byte address 0x4 - core index']
  #allocation1 [shape = 'u32[144,128]{1,0:T(1,128)}', space=vmem, size = 0x12000, scoped, tag = 'internal scratch']
  #allocation2 [shape = 'f32[32,8]{1,0:T(8,128)}', space=vmem, size = 0x4000, scoped, tag = 'scratch operand']
  %s0 = inlined_call_operand.vmem [shape: bf16[64,192], index: 0, kind: input, shape index: {}]
  %s1 = inlined_call_operand.vmem [shape: bf16[192,8], index: 1, kind: input, shape index: {}]
  %s2 = inlined_call_operand.vmem [shape: f32[64,1], index: 2, kind: input, shape index: {}]
  %s3 = inlined_call_operand.vmem [shape: f32[64,8], index: 3, kind: output, shape index: {}]
  %s4 = sld [smem:[#allocation0]]
  $region53: #{geomgcn_net.7} parent=0
    _
  %s6 = ssub.s32 1, %s4
  %s7 = scalar_select 0, %s6, %s4
  loop: start=0, step=1, limit=4
  $region2: #{geomgcn_net.7} parent=0 // loop_pre_header
    _
  $region3: #{geomgcn_net.7} parent=0 // loop_header
    %s9 = sphi 0, %s13
    %p10 = scmp.ge.s32.totalorder %s9, 4
    %s16 = sphi 0, %s28
    %s17 = sphi 0, %s24
    %s18 = sphi 0, %s16
    %s19 = sphi 0, %s17
    %s20 = sphi 0, %s18
    %s21 = sphi 0, %s19
    %s33 = sphi 0, %s35
    %s36 = sphi 0, %s33
    %s37 = sphi 0, %s36
    %s53 = sphi 0, %s37
    %s59 = sphi 0, %s61
    %s62 = sphi 0, %s59
    %s63 = sphi 0, %s62
    %s79 = sphi 0, %s63
    %s85 = sphi 0, %s87
    %s88 = sphi 0, %s85
    %s89 = sphi 0, %s88
    %s105 = sphi 0, %s89
    %s111 = sphi 0, %s113
    %s114 = sphi 0, %s111
    %s115 = sphi 0, %s114
    %s131 = sphi 0, %s115
  $region4: #{geomgcn_net.7} parent=0 // loop_header_branch
    %12 = sbr.rel (%p10) target = $region8
  $region5: #{geomgcn_net.7} parent=0 // loop_body
    %s14 = ssub.s32 %s9, 1
    %s15 = ssub.s32 %s9, 2
    %s22 = sadd.s32 1, %s17
    %p23 = scmp.ge.s32.totalorder %s22, 1
    %s24 = scalar_select %p23, 0, %s22
    %s25 = sadd.s32 1, %s16
    %s26 = scalar_select %p23, %s25, %s16
    %p27 = scmp.ge.s32.totalorder %s26, 2
    %s28 = scalar_select %p27, 0, %s26
    %s29 = ssub.s32 %s16, %s28
    %s30 = ssub.s32 %s17, %s24
    %s31 = sor.u32 %s29, %s30
    %p32 = scmp.eq.s32.totalorder %s31, 0
    %s34 = sadd.s32 %s33, 1
    %s35 = scalar_select %p32, %s33, %s34
    %p38 = pneg %p32
    %p39 = scmp.eq.s32.totalorder %s9, 1
    %p40 = por %p38, %p39
    %p41 = scmp.ne.s32.totalorder %s33, %s36
    %p42 = scmp.eq.s32.totalorder %s9, 0
    %p43 = por %p41, %p42
    %p44 = scmp.ne.s32.totalorder %s33, %s36
    %p45 = scmp.eq.s32.totalorder %s14, 1
    %p46 = por %p44, %p45
    %p47 = scmp.ne.s32.totalorder %s36, %s37
    %p48 = scmp.eq.s32.totalorder %s14, 0
    %p49 = por %p47, %p48
    %p50 = scmp.ne.s32.totalorder %s36, %s37
    %p51 = scmp.eq.s32.totalorder %s15, 1
    %p52 = por %p50, %p51
    %p54 = scmp.ne.s32.totalorder %s37, %s53
    %p55 = scmp.eq.s32.totalorder %s15, 0
    %p56 = por %p54, %p55
    %s57 = ssub.s32 %s17, %s24
    %p58 = scmp.eq.s32.totalorder %s57, 0
    %s60 = sadd.s32 %s59, 1
    %s61 = scalar_select %p58, %s59, %s60
    %p64 = pneg %p58
    %p65 = scmp.eq.s32.totalorder %s9, 1
    %p66 = por %p64, %p65
    %p67 = scmp.ne.s32.totalorder %s59, %s62
    %p68 = scmp.eq.s32.totalorder %s9, 0
    %p69 = por %p67, %p68
    %p70 = scmp.ne.s32.totalorder %s59, %s62
    %p71 = scmp.eq.s32.totalorder %s14, 1
    %p72 = por %p70, %p71
    %p73 = scmp.ne.s32.totalorder %s62, %s63
    %p74 = scmp.eq.s32.totalorder %s14, 0
    %p75 = por %p73, %p74
    %p76 = scmp.ne.s32.totalorder %s62, %s63
    %p77 = scmp.eq.s32.totalorder %s15, 1
    %p78 = por %p76, %p77
    %p80 = scmp.ne.s32.totalorder %s63, %s79
    %p81 = scmp.eq.s32.totalorder %s15, 0
    %p82 = por %p80, %p81
    %s83 = ssub.s32 %s16, %s28
    %p84 = scmp.eq.s32.totalorder %s83, 0
    %s86 = sadd.s32 %s85, 1
    %s87 = scalar_select %p84, %s85, %s86
    %p90 = pneg %p84
    %p91 = scmp.eq.s32.totalorder %s9, 1
    %p92 = por %p90, %p91
    %p93 = scmp.ne.s32.totalorder %s85, %s88
    %p94 = scmp.eq.s32.totalorder %s9, 0
    %p95 = por %p93, %p94
    %p96 = scmp.ne.s32.totalorder %s85, %s88
    %p97 = scmp.eq.s32.totalorder %s14, 1
    %p98 = por %p96, %p97
    %p99 = scmp.ne.s32.totalorder %s88, %s89
    %p100 = scmp.eq.s32.totalorder %s14, 0
    %p101 = por %p99, %p100
    %p102 = scmp.ne.s32.totalorder %s88, %s89
    %p103 = scmp.eq.s32.totalorder %s15, 1
    %p104 = por %p102, %p103
    %p106 = scmp.ne.s32.totalorder %s89, %s105
    %p107 = scmp.eq.s32.totalorder %s15, 0
    %p108 = por %p106, %p107
    %s109 = ssub.s32 %s16, %s28
    %p110 = scmp.eq.s32.totalorder %s109, 0
    %s112 = sadd.s32 %s111, 1
    %s113 = scalar_select %p110, %s111, %s112
    %p116 = pneg %p110
    %p117 = scmp.eq.s32.totalorder %s9, 1
    %p118 = por %p116, %p117
    %p119 = scmp.ne.s32.totalorder %s111, %s114
    %p120 = scmp.eq.s32.totalorder %s9, 0
    %p121 = por %p119, %p120
    %p122 = scmp.ne.s32.totalorder %s111, %s114
    %p123 = scmp.eq.s32.totalorder %s14, 1
    %p124 = por %p122, %p123
    %p125 = scmp.ne.s32.totalorder %s114, %s115
    %p126 = scmp.eq.s32.totalorder %s14, 0
    %p127 = por %p125, %p126
    %p128 = scmp.ne.s32.totalorder %s114, %s115
    %p129 = scmp.eq.s32.totalorder %s15, 1
    %p130 = por %p128, %p129
    %p132 = scmp.ne.s32.totalorder %s115, %s131
    %p133 = scmp.eq.s32.totalorder %s15, 0
    %p134 = por %p132, %p133
    %p135 = scmp.le.s32.totalorder 1, %s9
    %p136 = scmp.lt.s32.totalorder %s9, 3
    %p137 = pnand %p135, %p136
    %p138 = pneg %p137
    // Predicated region
    $region9: #{geomgcn_net.7} parent=5 // pred_check
      _
    $region10: #{geomgcn_net.7} parent=5 // pred_check_branch
      %140 = sbr.rel (%p137) target = $region12
    $region11: #{geomgcn_net.7} parent=5 // pred_region
      %s141 = ssub.s32 %s9, 1
      // Predicated region
      $region13: #{geomgcn_net.7} parent=11 // pred_check
        %p142 = pneg %p75
      $region14: #{geomgcn_net.7} parent=11 // pred_check_branch
        %144 = sbr.rel (%p142) target = $region16
      $region15: #{geomgcn_net.7} parent=11 // pred_region
        %s145 = smul.u32 24, %s19
        %p146 = scmp.lt.s32.totalorder %s145, 23
        %s147 = scalar_select %p146, %s145, 23
        %s148 = smul.addr %s147, 4
        %s149 = scalar_lea.vmem %s1, %s148
        %s150 = smul.u32 24, %s19
      $region16: #{geomgcn_net.7} parent=11 // pred_fallthru
        _
    $region12: #{geomgcn_net.7} parent=5 // pred_fallthru
      _
    %p151 = scmp.lt.s32.totalorder %s9, 2
    // Predicated region
    $region17: #{geomgcn_net.7} parent=5 // pred_check
      %p152 = pneg %p151
    $region18: #{geomgcn_net.7} parent=5 // pred_check_branch
      %154 = sbr.rel (%p152) target = $region20
    $region19: #{geomgcn_net.7} parent=5 // pred_region
      // Predicated region
      $region21: #{geomgcn_net.7} parent=19 // pred_check
        %p155 = pneg %p43
      $region22: #{geomgcn_net.7} parent=19 // pred_check_branch
        %157 = sbr.rel (%p155) target = $region24
      $region23: #{geomgcn_net.7} parent=19 // pred_region
        %s158 = smul.u32 4, %s16
        %s159 = smul.u32 2, %s17
        %p160 = scmp.lt.s32.totalorder %s158, 7
        %s161 = scalar_select %p160, %s158, 7
        %p162 = scmp.lt.s32.totalorder %s159, 1
        %s163 = scalar_select %p162, %s159, 1
        %s164 = smul.addr %s161, 2
        %s165 = sadd.s32 %s163, %s164
        %s166 = smul.addr %s165, 4
        %s167 = scalar_lea.vmem %s0, %s166
        %s168 = smul.u32 4, %s16
        %s169 = smul.u32 2, %s17
      $region24: #{geomgcn_net.7} parent=19 // pred_fallthru
        _
      // Predicated region
      $region25: #{geomgcn_net.7} parent=19 // pred_check
        %p170 = pneg %p95
      $region26: #{geomgcn_net.7} parent=19 // pred_check_branch
        %172 = sbr.rel (%p170) target = $region28
      $region27: #{geomgcn_net.7} parent=19 // pred_region
        %s173 = smul.u32 4, %s16
        %p174 = scmp.lt.s32.totalorder %s173, 7
        %s175 = scalar_select %p174, %s173, 7
        %s176 = smul.addr %s175, 8
        %s177 = scalar_lea.vmem %s2, %s176
        %s178 = smul.u32 4, %s16
      $region28: #{geomgcn_net.7} parent=19 // pred_fallthru
        _
    $region20: #{geomgcn_net.7} parent=5 // pred_fallthru
      _
    %p179 = scmp.le.s32.totalorder 1, %s9
    %p180 = scmp.lt.s32.totalorder %s9, 3
    %p181 = pnand %p179, %p180
    %p182 = pneg %p181
    // Predicated region
    $region29: #{geomgcn_net.7} parent=5 // pred_check
      _
    $region30: #{geomgcn_net.7} parent=5 // pred_check_branch
      %184 = sbr.rel (%p181) target = $region32
    $region31: #{geomgcn_net.7} parent=5 // pred_region
      %s185 = ssub.s32 %s9, 1
      %s186 = smul.u32 4, %s18
      %s187 = smul.u32 2, %s19
      %p188 = scmp.lt.s32.totalorder %s186, 7
      %s189 = scalar_select %p188, %s186, 7
      %p190 = scmp.lt.s32.totalorder %s187, 1
      %s191 = scalar_select %p190, %s187, 1
      %s192 = smul.addr %s189, 2
      %s193 = sadd.s32 %s191, %s192
      %s194 = smul.addr %s193, 4
      %s195 = scalar_lea.vmem %s0, %s194
      %p196 = pneg %p49
      %p197 = pneg %p46
      %s198 = smul.u32 24, %s19
      %p199 = scmp.lt.s32.totalorder %s198, 23
      %s200 = scalar_select %p199, %s198, 23
      %s201 = smul.addr %s200, 4
      %s202 = scalar_lea.vmem %s1, %s201
      %p203 = pneg %p75
      %p204 = pneg %p72
      %s205 = smul.u32 4, %s18
      %p206 = scmp.lt.s32.totalorder %s205, 7
      %s207 = scalar_select %p206, %s205, 7
      %s208 = smul.addr %s207, 8
      %s209 = scalar_lea.vmem %s2, %s208
      %p210 = pneg %p101
      %p211 = pneg %p98
      %p212 = pneg %p127
      %p213 = pneg %p124
      %s214 = smul.u32 4, %s18
      %p215 = scmp.lt.s32.totalorder %s214, 7
      %s216 = scalar_select %p215, %s214, 7
      %s217 = smul.addr %s216, 8
      %s218 = scalar_lea.vmem %s3, %s217
      %s219 = smul.u32 4, %s18
      %s220 = smul.u32 2, %s19
      %p221 = scmp.lt.s32.totalorder %s219, 7
      %s222 = scalar_select %p221, %s219, 7
      %p223 = scmp.lt.s32.totalorder %s220, 1
      %s224 = scalar_select %p223, %s220, 1
      %s225 = smul.addr %s222, 2
      %s226 = sadd.s32 %s224, %s225
      %s227 = smul.addr %s226, 4
      %s228 = scalar_lea.vmem %s0, %s227
      %s229 = smul.u32 4, %s18
      %s230 = smul.u32 2, %s19
      %s231 = smul.u32 24, %s19
      %p232 = scmp.lt.s32.totalorder %s231, 23
      %s233 = scalar_select %p232, %s231, 23
      %s234 = smul.addr %s233, 4
      %s235 = scalar_lea.vmem %s1, %s234
      %s236 = smul.u32 24, %s19
      %s237 = smul.u32 4, %s18
      %p238 = scmp.lt.s32.totalorder %s237, 7
      %s239 = scalar_select %p238, %s237, 7
      %s240 = smul.addr %s239, 8
      %s241 = scalar_lea.vmem %s2, %s240
      %s242 = smul.u32 4, %s18
      %s243 = smul.u32 4, %s18
      %p244 = scmp.lt.s32.totalorder %s243, 7
      %s245 = scalar_select %p244, %s243, 7
      %s246 = smul.addr %s245, 8
      %s247 = scalar_lea.vmem %s3, %s246
      %s248 = smul.u32 4, %s18
      %p250 = scmp.eq.s32.totalorder %s19, 0
      // Predicated region
      $region33: #{geomgcn_net.7} parent=31 // pred_check
        %p251 = pneg %p250
      $region34: #{geomgcn_net.7} parent=31 // pred_check_branch
        %253 = sbr.rel (%p251) target = $region36
      $region35: #{geomgcn_net.7} parent=31 // pred_region
        %vm254 = vcmask 64512
        %255 = vst.msk [vmem:[#allocation2] sm:$0xff] %vm254, 0.0
        %256 = vst.msk [vmem:[#allocation2 + $0x8] sm:$0xff] %vm254, 0.0
        %257 = vst.msk [vmem:[#allocation2 + $0x10] sm:$0xff] %vm254, 0.0
        %258 = vst.msk [vmem:[#allocation2 + $0x18] sm:$0xff] %vm254, 0.0
      $region36: #{geomgcn_net.7} parent=31 // pred_fallthru
        _
      %v259 = vld [vmem:[#allocation2] sm:$0xff]
      %v260 = vld [vmem:[#allocation2 + $0x8] sm:$0xff]
      %v261 = vld [vmem:[#allocation2 + $0x10] sm:$0xff]
      %v262 = vld [vmem:[#allocation2 + $0x18] sm:$0xff]
      %v263 = vld [vmem:[%s228] sm:$0xff]
      %v264 = vld [vmem:[%s228 + $0x8] sm:$0xff]
      %v265 = vld [vmem:[%s228 + $0x10] sm:$0xff]
      %v266 = vld [vmem:[%s228 + $0x18] sm:$0xff]
      %v267 = vld [vmem:[%s235] sm:$0xf]
      %v268 = vld [vmem:[%s235 + $0x4] sm:$0xf]
      %v269 = vld [vmem:[%s235 + $0x8] sm:$0xf]
      %v270 = vld [vmem:[%s235 + $0xc] sm:$0xf]
      %v271 = vld [vmem:[%s235 + $0x10] sm:$0xf]
      %v272 = vld [vmem:[%s235 + $0x14] sm:$0xf]
      %v273 = vld [vmem:[%s235 + $0x18] sm:$0xf]
      %v274 = vld [vmem:[%s235 + $0x1c] sm:$0xf]
      %v275 = vld [vmem:[%s235 + $0x20] sm:$0xf]
      %v276 = vld [vmem:[%s235 + $0x24] sm:$0xf]
      %v277 = vld [vmem:[%s235 + $0x28] sm:$0xf]
      %v278 = vld [vmem:[%s235 + $0x2c] sm:$0xf]
      %v279 = vld [vmem:[%s235 + $0x30] sm:$0xf]
      %v280 = vld [vmem:[%s235 + $0x34] sm:$0xf]
      %v281 = vld [vmem:[%s235 + $0x38] sm:$0xf]
      %v282 = vld [vmem:[%s235 + $0x3c] sm:$0xf]
      %v283 = vld [vmem:[%s235 + $0x40] sm:$0xf]
      %v284 = vld [vmem:[%s235 + $0x44] sm:$0xf]
      %v285 = vld [vmem:[%s235 + $0x48] sm:$0xf]
      %v286 = vld [vmem:[%s235 + $0x4c] sm:$0xf]
      %v287 = vld [vmem:[%s235 + $0x50] sm:$0xf]
      %v288 = vld [vmem:[%s235 + $0x54] sm:$0xf]
      %v289 = vld [vmem:[%s235 + $0x58] sm:$0xf]
      %v290 = vld [vmem:[%s235 + $0x5c] sm:$0xf]
      %v295 = vunpack.c.l.b16 %v263
      %v296 = vunpack.c.h.b16 %v263
      %v297 = vunpack.c.l.b16 %v264
      %v298 = vunpack.c.h.b16 %v264
      %v299 = vunpack.c.l.b16 %v265
      %v300 = vunpack.c.h.b16 %v265
      %v301 = vunpack.c.l.b16 %v266
      %v302 = vunpack.c.h.b16 %v266
      %v303 = vpack.c.b16 %v297, %v295
      %v304 = vpack.c.b16 %v298, %v296
      %v305 = vpack.c.b16 %v301, %v299
      %v306 = vpack.c.b16 %v302, %v300
      %v333 = vunpack.c.l.b16 %v267
      %v334 = vunpack.c.l.b16 %v268
      %v335 = vunpack.c.l.b16 %v269
      %v336 = vunpack.c.l.b16 %v270
      %v337 = vunpack.c.l.b16 %v271
      %v338 = vunpack.c.l.b16 %v272
      %v339 = vunpack.c.l.b16 %v273
      %v340 = vunpack.c.l.b16 %v274
      %v341 = vunpack.c.l.b16 %v275
      %v342 = vunpack.c.l.b16 %v276
      %v343 = vunpack.c.l.b16 %v277
      %v344 = vunpack.c.l.b16 %v278
      %v345 = vunpack.c.l.b16 %v279
      %v346 = vunpack.c.l.b16 %v280
      %v347 = vunpack.c.l.b16 %v281
      %v348 = vunpack.c.l.b16 %v282
      %v349 = vunpack.c.l.b16 %v283
      %v350 = vunpack.c.l.b16 %v284
      %v351 = vunpack.c.l.b16 %v285
      %v352 = vunpack.c.l.b16 %v286
      %v353 = vunpack.c.l.b16 %v287
      %v354 = vunpack.c.l.b16 %v288
      %v355 = vunpack.c.l.b16 %v289
      %v356 = vunpack.c.l.b16 %v290
      %v357 = vpack.c.b16 %v334, %v333
      %v358 = vpack.c.b16 %v336, %v335
      %v359 = vpack.c.b16 %v338, %v337
      %v360 = vpack.c.b16 %v340, %v339
      %v361 = vpack.c.b16 %v342, %v341
      %v362 = vpack.c.b16 %v344, %v343
      %v363 = vpack.c.b16 %v346, %v345
      %v364 = vpack.c.b16 %v348, %v347
      %v365 = vpack.c.b16 %v350, %v349
      %v366 = vpack.c.b16 %v352, %v351
      %v367 = vpack.c.b16 %v354, %v353
      %v368 = vpack.c.b16 %v356, %v355
      %vm381 = vcmask 523264
      %v383 = vsel %vm381, %v304, 0
      %v386 = vsel %vm381, %v306, 0
      %388 = vmatprep.subr.bf16.mxu0 0
      %389 = vmatpush1.bf16.msra.mxu0 %v357
      %390 = vmatprep.subr.bf16.mxu0 0
      %391 = vmatpush1.bf16.msra.mxu0 %v358
      %392 = vmatprep.subr.bf16.mxu0 0
      %393 = vmatpush1.bf16.msra.mxu0 %v359
      %394 = vmatprep.subr.bf16.mxu0 0
      %395 = vmatpush1.bf16.msra.mxu0 %v360
      %396 = vmatprep.subr.bf16.mxu0 0
      %397 = vmatpush1.bf16.msra.mxu0 %v361
      %398 = vmatprep.subr.bf16.mxu0 0
      %399 = vmatpush1.bf16.msra.mxu0 %v362
      %400 = vmatprep.subr.bf16.mxu0 0
      %401 = vmatpush1.bf16.msra.mxu0 %v363
      %402 = vmatprep.subr.bf16.mxu0 0
      %403 = vmatpush1.bf16.msra.mxu0 %v364
      %404 = vmatprep.subr.bf16.mxu0 0
      %405 = vmatpush1.bf16.msra.mxu0 %v365
      %406 = vmatprep.subr.bf16.mxu0 0
      %407 = vmatpush1.bf16.msra.mxu0 %v366
      %408 = vmatprep.subr.bf16.mxu0 0
      %409 = vmatpush1.bf16.msra.mxu0 %v367
      %410 = vmatprep.subr.bf16.mxu0 0
      %411 = vmatpush1.bf16.msra.mxu0 %v368
      %412 = vmatprep.subr.bf16.mxu0 0
      %413 = vmatpush1.bf16.msra.mxu0 0
      %414 = vmatprep.subr.bf16.mxu0 0
      %415 = vmatpush1.bf16.msra.mxu0 0
      %416 = vmatprep.subr.bf16.mxu0 0
      %417 = vmatpush1.bf16.msra.mxu0 0
      %418 = vmatprep.subr.bf16.mxu0 0
      %419 = vmatpush1.bf16.msra.mxu0 0
      %420 = vmatprep.mubr.bf16.mxu0 %v383
      %421 = vmatmul.mubr.bf16.gmra.mrb[0].mxu0 %v303
      %v422 = vpop.f32.mrb[0].mxu0
      %v423 = vadd.f32 0.0, %v422
      %v424 = vpop.f32.mrb[0].mxu0
      %v425 = vpop.f32.mrb[0].mxu0
      %v426 = vadd.f32 0.0, %v425
      %v427 = vpop.f32.mrb[0].mxu0
      %428 = vmatprep.mubr.bf16.mxu0 %v386
      %429 = vmatmul.mubr.bf16.gmra.mrb[0].mxu0 %v305
      %v430 = vpop.f32.mrb[0].mxu0
      %v431 = vadd.f32 0.0, %v430
      %v432 = vpop.f32.mrb[0].mxu0
      %v433 = vpop.f32.mrb[0].mxu0
      %v434 = vadd.f32 0.0, %v433
      %v435 = vpop.f32.mrb[0].mxu0
      %436 = vdwg.mxu0
      %v437 = vadd.f32 %v259, %v423
      %v438 = vadd.f32 %v260, %v426
      %v439 = vadd.f32 %v261, %v431
      %v440 = vadd.f32 %v262, %v434
      %vm441 = vcmask 64512
      %442 = vst.msk [vmem:[#allocation2] sm:$0xff] %vm441, %v437
      %443 = vst.msk [vmem:[#allocation2 + $0x8] sm:$0xff] %vm441, %v438
      %444 = vst.msk [vmem:[#allocation2 + $0x10] sm:$0xff] %vm441, %v439
      %445 = vst.msk [vmem:[#allocation2 + $0x18] sm:$0xff] %vm441, %v440
      // Predicated region
      $region37: #{geomgcn_net.7} parent=31 // pred_check
        %p446 = pneg %p250
      $region38: #{geomgcn_net.7} parent=31 // pred_check_branch
        %448 = sbr.rel (%p446) target = $region40
      $region39: #{geomgcn_net.7} parent=31 // pred_region
        %v449 = vld [vmem:[#allocation2] sm:$0xff]
        %v450 = vld [vmem:[#allocation2 + $0x8] sm:$0xff]
        %v451 = vld [vmem:[#allocation2 + $0x10] sm:$0xff]
        %v452 = vld [vmem:[#allocation2 + $0x18] sm:$0xff]
        %v453 = vld [vmem:[%s241] sm:$0xff]
        %v454 = vld [vmem:[%s241 + $0x8] sm:$0xff]
        %v455 = vld [vmem:[%s241 + $0x10] sm:$0xff]
        %v456 = vld [vmem:[%s241 + $0x18] sm:$0xff]
        %v457 = vmul.f32 %v453, 0.33333334
        %v458 = vmul.f32 %v454, 0.33333334
        %v459 = vmul.f32 %v455, 0.33333334
        %v460 = vmul.f32 %v456, 0.33333334
        %462 = vset.pattern.permute.xlu0 0
        %463 = vperm.xlu0 %462, %v457
        %v464 = vpop.permute.xlu0 %463
        %467 = vset.pattern.permute.xlu0 0
        %468 = vperm.xlu0 %467, %v458
        %v469 = vpop.permute.xlu0 %468
        %472 = vset.pattern.permute.xlu0 0
        %473 = vperm.xlu0 %472, %v459
        %v474 = vpop.permute.xlu0 %473
        %477 = vset.pattern.permute.xlu0 0
        %478 = vperm.xlu0 %477, %v460
        %v479 = vpop.permute.xlu0 %478
        %v481 = vmul.f32 %v449, %v464
        %v482 = vmul.f32 %v450, %v469
        %v483 = vmul.f32 %v451, %v474
        %v484 = vmul.f32 %v452, %v479
        %485 = vst.msk [vmem:[%s247] sm:$0xff] %vm441, %v481
        %486 = vst.msk [vmem:[%s247 + $0x8] sm:$0xff] %vm441, %v482
        %487 = vst.msk [vmem:[%s247 + $0x10] sm:$0xff] %vm441, %v483
        %488 = vst.msk [vmem:[%s247 + $0x18] sm:$0xff] %vm441, %v484
      $region40: #{geomgcn_net.7} parent=31 // pred_fallthru
        _
      %s489 = smul.u32 4, %s18
      %p490 = scmp.lt.s32.totalorder %s489, 7
      %s491 = scalar_select %p490, %s489, 7
      %s492 = smul.addr %s491, 8
      %s493 = scalar_lea.vmem %s3, %s492
      // Predicated region
      $region41: #{geomgcn_net.7} parent=31 // pred_check
        %p494 = pneg %p124
      $region42: #{geomgcn_net.7} parent=31 // pred_check_branch
        %496 = sbr.rel (%p494) target = $region44
      $region43: #{geomgcn_net.7} parent=31 // pred_region
        %s497 = smul.u32 4, %s18
      $region44: #{geomgcn_net.7} parent=31 // pred_fallthru
        _
    $region32: #{geomgcn_net.7} parent=5 // pred_fallthru
      _
    %p498 = scmp.le.s32.totalorder 2, %s9
    // Predicated region
    $region45: #{geomgcn_net.7} parent=5 // pred_check
      %p499 = pneg %p498
    $region46: #{geomgcn_net.7} parent=5 // pred_check_branch
      %501 = sbr.rel (%p499) target = $region48
    $region47: #{geomgcn_net.7} parent=5 // pred_region
      %s502 = ssub.s32 %s9, 2
      // Predicated region
      $region49: #{geomgcn_net.7} parent=47 // pred_check
        %p503 = pneg %p130
      $region50: #{geomgcn_net.7} parent=47 // pred_check_branch
        %505 = sbr.rel (%p503) target = $region52
      $region51: #{geomgcn_net.7} parent=47 // pred_region
        %s506 = smul.u32 4, %s20
        %p507 = scmp.lt.s32.totalorder %s506, 7
        %s508 = scalar_select %p507, %s506, 7
        %s509 = smul.addr %s508, 8
        %s510 = scalar_lea.vmem %s3, %s509
      $region52: #{geomgcn_net.7} parent=47 // pred_fallthru
        _
    $region48: #{geomgcn_net.7} parent=5 // pred_fallthru
      _
  $region6: #{geomgcn_net.7} parent=0 // loop_footer
    %s13 = sadd.s32 1, %s9
  $region7: #{geomgcn_net.7} parent=0 // loop_footer_branch
    %8 = sbr.rel target = $region3
  $region8: #{geomgcn_net.7} parent=0 // loop_exit
    _

</llo_original>
